<compile_context>
chip_gen: v7x
topology: tpu7x:2x2x1
jax: 0.10.0
libtpu: 0.0.40
codegen_flags: <defaults>
</compile_context>

<pallas_src>
import functools

import jax
import jax.numpy as jnp
from jax import lax
from jax.experimental import pallas as pl
from jax.experimental.pallas import tpu as pltpu


_VMEM = pl.BlockSpec(memory_space=pltpu.MemorySpace.VMEM)


# ----------------------------------------------------------------------------
# Pallas kernels
# ----------------------------------------------------------------------------
def _conv_relu_pool_kernel(cols_ref, w_ref, b_ref, o_ref):
    """Fused conv stage: o = sum_q relu(cols_q @ w + b)  (== avgpool2x2(relu(conv))).

    The 1/4 pool scale is pre-folded into w and b.  cols: (4*R, K) bf16 im2col
    patches; quarter q = rows [q*R, (q+1)*R) holds pooling-window member
    q = (dy, dx) of every 2x2 window, with identical row ordering inside each
    quarter, so row-wise summing the 4 quarters == AvgPool2d(2, 2).
    w: (K, Cout) bf16, b: (1, Cout) f32, o: (R, Cout) bf16.
    """
    y = jnp.dot(cols_ref[...], w_ref[...], preferred_element_type=jnp.float32)
    y = jnp.maximum(y + b_ref[...], 0.0)
    r = o_ref.shape[0]
    pooled = y[0:r] + y[r:2 * r] + y[2 * r:3 * r] + y[3 * r:4 * r]
    # TODO(synk): last dim 6 < 128 lanes -> masked stores; negligible at this
    # size, pack channels / fuse the two stages for large batch.
    o_ref[...] = pooled.astype(o_ref.dtype)


def _tree_sum(terms):
    """Pairwise (tree) sum of a trace-time list of arrays (no serial chain)."""
    while len(terms) > 1:
        nxt = [terms[i] + terms[i + 1] for i in range(0, len(terms) - 1, 2)]
        if len(terms) % 2:
            nxt.append(terms[-1])
        terms = nxt
    return terms[0]


def _conv_relu_pool_fc_kernel(cols_ref, w2_ref, b2_ref,
                              wfc1_ref, bfc1_ref, wfc2_ref, bfc2_ref,
                              wfc3_ref, bfc3_ref, o_ref, *, batch, n_pad):
    """Fused tail: conv2 + bias + ReLU + AvgPool2x2 + flatten + fc1..fc3.

    cols: (4*25*n_pad, 150) bf16, quartered as in _conv_relu_pool_kernel; rows
          inside a quarter are ordered (p, n) with p = h2*5 + w2 and the batch
          zero-padded to n_pad (multiple of 8) so every per-p row block is an
          8-sublane-aligned slice.
    o: (batch, 10) f32 logits.
    """
    # conv2 matmul + bias + ReLU for all 4 pooling-window members at once;
    # pool == sum of the 4 row quarters (1/4 folded into w2/b2).
    y = jnp.dot(cols_ref[...], w2_ref[...], preferred_element_type=jnp.float32)
    y = jnp.maximum(y + b2_ref[...], 0.0)                   # (4*25*n_pad, 16)
    r = 25 * n_pad
    pooled = y[0:r] + y[r:2 * r] + y[2 * r:3 * r] + y[3 * r:4 * r]
    # pooled: (25*n_pad, 16), row index = p*n_pad + n.

    # Flatten (h2, w2, c) + fc1: h1[n,f] = sum_{p,c} pooled[p*n_pad+n, c] *
    # wfc1[p*16+c, f].  Expressed as 25 independent dots on 8-aligned row
    # blocks (zero-cost vreg slices), tree-summed.  wfc1 rows were
    # pre-permuted to (h2, w2, c) order and zero-padded to 128 output lanes.
    wfc1 = wfc1_ref[...]                                    # (400, 128) bf16
    terms = [
        jnp.dot(pooled[p * n_pad:(p + 1) * n_pad, :].astype(jnp.bfloat16),
                wfc1[p * 16:(p + 1) * 16, :],
                preferred_element_type=jnp.float32)
        for p in range(25)
    ]
    h1 = jnp.maximum(_tree_sum(terms) + bfc1_ref[...], 0.0)     # (n_pad, 128)
    h2 = jnp.dot(h1.astype(jnp.bfloat16), wfc2_ref[...],
                 preferred_element_type=jnp.float32) + bfc2_ref[...]
    h2 = jnp.maximum(h2, 0.0)                                   # (n_pad, 128)
    logits = jnp.dot(h2.astype(jnp.bfloat16), wfc3_ref[...],
                     preferred_element_type=jnp.float32) + bfc3_ref[...]
    o_ref[...] = logits[:batch]                                 # (batch, 10)


# ----------------------------------------------------------------------------
# XLA glue (runs fused under jax.jit): im2col patch extraction + regrouping
# ----------------------------------------------------------------------------
def _patches(x_nhwc, kh, kw):
    """(N,H,W,C) -> (N,Ho,Wo,C*kh*kw) stride-1 VALID patches.

    Feature order is channel-major (c, i, j), matching weight.reshape(Cout,-1).T.
    """
    return lax.conv_general_dilated_patches(
        x_nhwc, (kh, kw), (1, 1), "VALID",
        dimension_numbers=("NHWC", "HWIO", "NHWC"))


def _quartered_cols_nhw(patches):
    """Stride-1 patches -> (4*N*H2*W2, K); quarter q=(dy,dx), rows (n,h2,w2)."""
    k = patches.shape[-1]
    quarters = []
    for dy in (0, 1):
        for dx in (0, 1):
            quarters.append(patches[:, dy::2, dx::2, :].reshape(-1, k))
    return jnp.concatenate(quarters, axis=0)


def _quartered_cols_pn(patches, n_pad):
    """Stride-1 patches -> (4*H2*W2*n_pad, K); quarter q=(dy,dx), rows (p,n).

    The batch dim is zero-padded to n_pad (multiple of 8) so every per-p row
    block inside kernel 2 is an 8-sublane-aligned slice.
    """
    n, _, _, k = patches.shape
    quarters = []
    for dy in (0, 1):
        for dx in (0, 1):
            q = patches[:, dy::2, dx::2, :]                   # (N, H2, W2, K)
            q = jnp.pad(q, ((0, n_pad - n), (0, 0), (0, 0), (0, 0)))
            q = q.transpose(1, 2, 0, 3).reshape(-1, k)        # (H2*W2*n_pad, K)
            quarters.append(q)
    return jnp.concatenate(quarters, axis=0)


# ----------------------------------------------------------------------------
# Weight repacking -- call ONCE, outside the jitted forward
# ----------------------------------------------------------------------------
def pack_params(p):
    """Repack PyTorch-layout weights into kernel layouts.

    Must be called once ahead of time (not inside the jitted forward), so the
    reshape/transpose/pad/cast work does not run per call.  The 0.25 AvgPool
    scale is folded into the conv weights and biases in f32 (exact).
    """
    bf16, f32 = jnp.bfloat16, jnp.float32
    # conv weights -> (Cin*kh*kw, Cout); row order (c, i, j) matches _patches.
    w1 = (0.25 * p["conv1_w"]).reshape(6, 25).T.astype(bf16)         # (25, 6)
    b1 = (0.25 * p["conv1_b"]).reshape(1, 6).astype(f32)
    w2 = (0.25 * p["conv2_w"]).reshape(16, 150).T.astype(bf16)       # (150, 16)
    b2 = (0.25 * p["conv2_b"]).reshape(1, 16).astype(f32)
    # fc1: torch flattens NCHW -> column order (c, h2, w2); the kernel's
    # flatten order is (h2, w2, c) -> permute columns, transpose, zero-pad the
    # output width 120 -> 128 lanes.
    wfc1 = p["fc1_w"].reshape(120, 16, 5, 5).transpose(2, 3, 1, 0)
    wfc1 = jnp.pad(wfc1.reshape(400, 120), ((0, 0), (0, 8))).astype(bf16)
    bfc1 = jnp.pad(p["fc1_b"], (0, 8)).reshape(1, 128).astype(f32)
    # fc2: (84,120) -> (120,84) -> zero-pad to (128,128).
    wfc2 = jnp.pad(p["fc2_w"].T, ((0, 8), (0, 44))).astype(bf16)
    bfc2 = jnp.pad(p["fc2_b"], (0, 44)).reshape(1, 128).astype(f32)
    # fc3: (10,84) -> (84,10) -> zero-pad input rows to 128.
    wfc3 = jnp.pad(p["fc3_w"].T, ((0, 44), (0, 0))).astype(bf16)
    bfc3 = p["fc3_b"].reshape(1, 10).astype(f32)
    return dict(w1=w1, b1=b1, w2=w2, b2=b2, wfc1=wfc1, bfc1=bfc1,
                wfc2=wfc2, bfc2=bfc2, wfc3=wfc3, bfc3=bfc3)


# ----------------------------------------------------------------------------
# LeNet-5 forward (jit this; `packed` must come from pack_params)
# ----------------------------------------------------------------------------
def lenet5_forward(packed, x):
    """x: (N, 1, 32, 32) float32 (PyTorch NCHW). Returns (N, 10) f32 logits."""
    n = x.shape[0]
    n_pad = ((n + 7) // 8) * 8     # sublane-align per-p row blocks in kernel 2

    # ---- stage 1: conv1(5x5, 1->6) + ReLU + AvgPool2x2 ----------------------
    x_nhwc = jnp.transpose(x, (0, 2, 3, 1)).astype(jnp.bfloat16)   # (N,32,32,1)
    cols1 = _quartered_cols_nhw(_patches(x_nhwc, 5, 5))            # (4*N*196, 25)
    r1 = n * 14 * 14
    pooled1 = pl.pallas_call(
        _conv_relu_pool_kernel,
        out_shape=jax.ShapeDtypeStruct((r1, 6), jnp.bfloat16),
        in_specs=[_VMEM] * 3,
        out_specs=_VMEM,
    )(cols1, packed["w1"], packed["b1"])              # rows (n, h2, w2), bf16

    # ---- stage 2: conv2(5x5, 6->16)+ReLU+AvgPool2x2 + flatten + fc1..fc3 ----
    img1 = pooled1.reshape(n, 14, 14, 6)
    cols2 = _quartered_cols_pn(_patches(img1, 5, 5), n_pad)        # (4*25*n_pad, 150)
    out = pl.pallas_call(
        functools.partial(_conv_relu_pool_fc_kernel, batch=n, n_pad=n_pad),
        out_shape=jax.ShapeDtypeStruct((n, 10), jnp.float32),
        in_specs=[_VMEM] * 9,
        out_specs=_VMEM,
    )(cols2, packed["w2"], packed["b2"], packed["wfc1"], packed["bfc1"],
      packed["wfc2"], packed["bfc2"], packed["wfc3"], packed["bfc3"])
    return out


# ----------------------------------------------------------------------------
# Deterministic parameter initialization (synthetic, PyTorch-like fan-in unif)
# ----------------------------------------------------------------------------
def _init_params():
    key = jax.random.PRNGKey(42)
    keys = jax.random.split(key, 10)

    def unif(k, shape, fan_in):
        bound = 1.0 / jnp.sqrt(fan_in)
        return jax.random.uniform(k, shape, jnp.float32, -bound, bound)

    return {
        "conv1_w": unif(keys[0], (6, 1, 5, 5), 1 * 5 * 5),
        "conv1_b": unif(keys[1], (6,), 1 * 5 * 5),
        "conv2_w": unif(keys[2], (16, 6, 5, 5), 6 * 5 * 5),
        "conv2_b": unif(keys[3], (16,), 6 * 5 * 5),
        "fc1_w": unif(keys[4], (120, 400), 400),
        "fc1_b": unif(keys[5], (120,), 400),
        "fc2_w": unif(keys[6], (84, 120), 120),
        "fc2_b": unif(keys[7], (84,), 120),
        "fc3_w": unif(keys[8], (10, 84), 84),
        "fc3_b": unif(keys[9], (10,), 84),
    }


if __name__ == "__main__":
    # LeNet-5's fc stack needs 400 = 16*5*5 flattened features, which fixes the
    # input to (N, 1, 32, 32); use a small batch of 2.
    x = jax.random.normal(jax.random.PRNGKey(0), (2, 1, 32, 32), jnp.float32)

    params = _init_params()
    packed = jax.block_until_ready(pack_params(params))   # hoisted out of jit
    fwd = jax.jit(lenet5_forward)
    out = jax.block_until_ready(fwd(packed, x))
    assert out.shape == (2, 10), out.shape
    print("KERNEL_OK")
</pallas_src>

<mosaic_0001>
module attributes {stable_mosaic.version = 11 : i64} {
  func.func @_conv_relu_pool_kernel(%arg0: memref<1568x25xbf16, #tpu.memory_space<vmem>>, %arg1: memref<25x6xbf16, #tpu.memory_space<vmem>>, %arg2: memref<1x6xf32, #tpu.memory_space<vmem>>, %arg3: memref<392x6xbf16, #tpu.memory_space<vmem>>) attributes {dimension_semantics = [], scalar_prefetch = 0 : i64, scratch_operands = 0 : i64, tpu.core_type = #tpu.core_type<tc>} {
    %c0 = arith.constant 0 : index
    %c0_0 = arith.constant 0 : index
    %0 = vector.load %arg0[%c0, %c0_0] : memref<1568x25xbf16, #tpu.memory_space<vmem>>, vector<1568x25xbf16>
    %c0_1 = arith.constant 0 : index
    %c0_2 = arith.constant 0 : index
    %1 = vector.load %arg1[%c0_1, %c0_2] : memref<25x6xbf16, #tpu.memory_space<vmem>>, vector<25x6xbf16>
    %cst = arith.constant dense<0.000000e+00> : vector<1568x6xf32>
    %2 = tpu.matmul %0, %1, %cst {dimension_numbers = #tpu.dot_dimension_numbers<[1], [0], [0], [1], [0, 0, 1, 1], [], []>} : vector<1568x25xbf16>, vector<25x6xbf16>, vector<1568x6xf32> -> vector<1568x6xf32>
    %c0_3 = arith.constant 0 : index
    %c0_4 = arith.constant 0 : index
    %3 = vector.load %arg2[%c0_3, %c0_4] : memref<1x6xf32, #tpu.memory_space<vmem>>, vector<1x6xf32>
    %4 = vector.broadcast %3 : vector<1x6xf32> to vector<1568x6xf32>
    %5 = arith.addf %2, %4 : vector<1568x6xf32>
    %cst_5 = arith.constant 0.000000e+00 : f32
    %6 = vector.broadcast %cst_5 : f32 to vector<1568x6xf32>
    %7 = arith.maximumf %5, %6 : vector<1568x6xf32>
    %8 = vector.extract_strided_slice %7 {offsets = [0, 0], sizes = [392, 6], strides = [1, 1]} : vector<1568x6xf32> to vector<392x6xf32>
    %9 = vector.extract_strided_slice %7 {offsets = [392, 0], sizes = [392, 6], strides = [1, 1]} : vector<1568x6xf32> to vector<392x6xf32>
    %10 = arith.addf %8, %9 : vector<392x6xf32>
    %11 = vector.extract_strided_slice %7 {offsets = [784, 0], sizes = [392, 6], strides = [1, 1]} : vector<1568x6xf32> to vector<392x6xf32>
    %12 = arith.addf %10, %11 : vector<392x6xf32>
    %13 = vector.extract_strided_slice %7 {offsets = [1176, 0], sizes = [392, 6], strides = [1, 1]} : vector<1568x6xf32> to vector<392x6xf32>
    %14 = arith.addf %12, %13 : vector<392x6xf32>
    %15 = arith.truncf %14 : vector<392x6xf32> to vector<392x6xbf16>
    %c0_6 = arith.constant 0 : index
    %c0_7 = arith.constant 0 : index
    %16 = vector.load %arg3[%c0_6, %c0_7] : memref<392x6xbf16, #tpu.memory_space<vmem>>, vector<392x6xbf16>
    tpu.vector_store %arg3[%c0_6, %c0_7], %15 {strides = array<i32>} : memref<392x6xbf16, #tpu.memory_space<vmem>>, vector<392x6xbf16>,
    return
  }
}

module attributes {stable_mosaic.version = 11 : i64} {
  func.func @_conv_relu_pool_fc_kernel(%arg0: memref<800x150xbf16, #tpu.memory_space<vmem>>, %arg1: memref<150x16xbf16, #tpu.memory_space<vmem>>, %arg2: memref<1x16xf32, #tpu.memory_space<vmem>>, %arg3: memref<400x128xbf16, #tpu.memory_space<vmem>>, %arg4: memref<1x128xf32, #tpu.memory_space<vmem>>, %arg5: memref<128x128xbf16, #tpu.memory_space<vmem>>, %arg6: memref<1x128xf32, #tpu.memory_space<vmem>>, %arg7: memref<128x10xbf16, #tpu.memory_space<vmem>>, %arg8: memref<1x10xf32, #tpu.memory_space<vmem>>, %arg9: memref<2x10xf32, #tpu.memory_space<vmem>>) attributes {dimension_semantics = [], scalar_prefetch = 0 : i64, scratch_operands = 0 : i64, tpu.core_type = #tpu.core_type<tc>} {
    %c0 = arith.constant 0 : index
    %c0_0 = arith.constant 0 : index
    %0 = vector.load %arg0[%c0, %c0_0] : memref<800x150xbf16, #tpu.memory_space<vmem>>, vector<800x150xbf16>
    %c0_1 = arith.constant 0 : index
    %c0_2 = arith.constant 0 : index
    %1 = vector.load %arg1[%c0_1, %c0_2] : memref<150x16xbf16, #tpu.memory_space<vmem>>, vector<150x16xbf16>
    %cst = arith.constant dense<0.000000e+00> : vector<800x16xf32>
    %2 = tpu.matmul %0, %1, %cst {dimension_numbers = #tpu.dot_dimension_numbers<[1], [0], [0], [1], [0, 0, 1, 1], [], []>} : vector<800x150xbf16>, vector<150x16xbf16>, vector<800x16xf32> -> vector<800x16xf32>
    %c0_3 = arith.constant 0 : index
    %c0_4 = arith.constant 0 : index
    %3 = vector.load %arg2[%c0_3, %c0_4] : memref<1x16xf32, #tpu.memory_space<vmem>>, vector<1x16xf32>
    %4 = vector.broadcast %3 : vector<1x16xf32> to vector<800x16xf32>
    %5 = arith.addf %2, %4 : vector<800x16xf32>
    %cst_5 = arith.constant 0.000000e+00 : f32
    %6 = vector.broadcast %cst_5 : f32 to vector<800x16xf32>
    %7 = arith.maximumf %5, %6 : vector<800x16xf32>
    %8 = vector.extract_strided_slice %7 {offsets = [0, 0], sizes = [200, 16], strides = [1, 1]} : vector<800x16xf32> to vector<200x16xf32>
    %9 = vector.extract_strided_slice %7 {offsets = [200, 0], sizes = [200, 16], strides = [1, 1]} : vector<800x16xf32> to vector<200x16xf32>
    %10 = arith.addf %8, %9 : vector<200x16xf32>
    %11 = vector.extract_strided_slice %7 {offsets = [400, 0], sizes = [200, 16], strides = [1, 1]} : vector<800x16xf32> to vector<200x16xf32>
    %12 = arith.addf %10, %11 : vector<200x16xf32>
    %13 = vector.extract_strided_slice %7 {offsets = [600, 0], sizes = [200, 16], strides = [1, 1]} : vector<800x16xf32> to vector<200x16xf32>
    %14 = arith.addf %12, %13 : vector<200x16xf32>
    %c0_6 = arith.constant 0 : index
    %c0_7 = arith.constant 0 : index
    %15 = vector.load %arg3[%c0_6, %c0_7] : memref<400x128xbf16, #tpu.memory_space<vmem>>, vector<400x128xbf16>
    %16 = vector.extract_strided_slice %14 {offsets = [0, 0], sizes = [8, 16], strides = [1, 1]} : vector<200x16xf32> to vector<8x16xf32>
    %17 = arith.truncf %16 : vector<8x16xf32> to vector<8x16xbf16>
    %18 = vector.extract_strided_slice %15 {offsets = [0, 0], sizes = [16, 128], strides = [1, 1]} : vector<400x128xbf16> to vector<16x128xbf16>
    %cst_8 = arith.constant dense<0.000000e+00> : vector<8x128xf32>
    %19 = tpu.matmul %17, %18, %cst_8 {dimension_numbers = #tpu.dot_dimension_numbers<[1], [0], [0], [1], [0, 0, 1, 1], [], []>} : vector<8x16xbf16>, vector<16x128xbf16>, vector<8x128xf32> -> vector<8x128xf32>
    %20 = vector.extract_strided_slice %14 {offsets = [8, 0], sizes = [8, 16], strides = [1, 1]} : vector<200x16xf32> to vector<8x16xf32>
    %21 = arith.truncf %20 : vector<8x16xf32> to vector<8x16xbf16>
    %22 = vector.extract_strided_slice %15 {offsets = [16, 0], sizes = [16, 128], strides = [1, 1]} : vector<400x128xbf16> to vector<16x128xbf16>
    %cst_9 = arith.constant dense<0.000000e+00> : vector<8x128xf32>
    %23 = tpu.matmul %21, %22, %cst_9 {dimension_numbers = #tpu.dot_dimension_numbers<[1], [0], [0], [1], [0, 0, 1, 1], [], []>} : vector<8x16xbf16>, vector<16x128xbf16>, vector<8x128xf32> -> vector<8x128xf32>
    %24 = vector.extract_strided_slice %14 {offsets = [16, 0], sizes = [8, 16], strides = [1, 1]} : vector<200x16xf32> to vector<8x16xf32>
    %25 = arith.truncf %24 : vector<8x16xf32> to vector<8x16xbf16>
    %26 = vector.extract_strided_slice %15 {offsets = [32, 0], sizes = [16, 128], strides = [1, 1]} : vector<400x128xbf16> to vector<16x128xbf16>
    %cst_10 = arith.constant dense<0.000000e+00> : vector<8x128xf32>
    %27 = tpu.matmul %25, %26, %cst_10 {dimension_numbers = #tpu.dot_dimension_numbers<[1], [0], [0], [1], [0, 0, 1, 1], [], []>} : vector<8x16xbf16>, vector<16x128xbf16>, vector<8x128xf32> -> vector<8x128xf32>
    %28 = vector.extract_strided_slice %14 {offsets = [24, 0], sizes = [8, 16], strides = [1, 1]} : vector<200x16xf32> to vector<8x16xf32>
    %29 = arith.truncf %28 : vector<8x16xf32> to vector<8x16xbf16>
    %30 = vector.extract_strided_slice %15 {offsets = [48, 0], sizes = [16, 128], strides = [1, 1]} : vector<400x128xbf16> to vector<16x128xbf16>
    %cst_11 = arith.constant dense<0.000000e+00> : vector<8x128xf32>
    %31 = tpu.matmul %29, %30, %cst_11 {dimension_numbers = #tpu.dot_dimension_numbers<[1], [0], [0], [1], [0, 0, 1, 1], [], []>} : vector<8x16xbf16>, vector<16x128xbf16>, vector<8x128xf32> -> vector<8x128xf32>
    %32 = vector.extract_strided_slice %14 {offsets = [32, 0], sizes = [8, 16], strides = [1, 1]} : vector<200x16xf32> to vector<8x16xf32>
    %33 = arith.truncf %32 : vector<8x16xf32> to vector<8x16xbf16>
    %34 = vector.extract_strided_slice %15 {offsets = [64, 0], sizes = [16, 128], strides = [1, 1]} : vector<400x128xbf16> to vector<16x128xbf16>
    %cst_12 = arith.constant dense<0.000000e+00> : vector<8x128xf32>
    %35 = tpu.matmul %33, %34, %cst_12 {dimension_numbers = #tpu.dot_dimension_numbers<[1], [0], [0], [1], [0, 0, 1, 1], [], []>} : vector<8x16xbf16>, vector<16x128xbf16>, vector<8x128xf32> -> vector<8x128xf32>
    %36 = vector.extract_strided_slice %14 {offsets = [40, 0], sizes = [8, 16], strides = [1, 1]} : vector<200x16xf32> to vector<8x16xf32>
    %37 = arith.truncf %36 : vector<8x16xf32> to vector<8x16xbf16>
    %38 = vector.extract_strided_slice %15 {offsets = [80, 0], sizes = [16, 128], strides = [1, 1]} : vector<400x128xbf16> to vector<16x128xbf16>
    %cst_13 = arith.constant dense<0.000000e+00> : vector<8x128xf32>
    %39 = tpu.matmul %37, %38, %cst_13 {dimension_numbers = #tpu.dot_dimension_numbers<[1], [0], [0], [1], [0, 0, 1, 1], [], []>} : vector<8x16xbf16>, vector<16x128xbf16>, vector<8x128xf32> -> vector<8x128xf32>
    %40 = vector.extract_strided_slice %14 {offsets = [48, 0], sizes = [8, 16], strides = [1, 1]} : vector<200x16xf32> to vector<8x16xf32>
    %41 = arith.truncf %40 : vector<8x16xf32> to vector<8x16xbf16>
    %42 = vector.extract_strided_slice %15 {offsets = [96, 0], sizes = [16, 128], strides = [1, 1]} : vector<400x128xbf16> to vector<16x128xbf16>
    %cst_14 = arith.constant dense<0.000000e+00> : vector<8x128xf32>
    %43 = tpu.matmul %41, %42, %cst_14 {dimension_numbers = #tpu.dot_dimension_numbers<[1], [0], [0], [1], [0, 0, 1, 1], [], []>} : vector<8x16xbf16>, vector<16x128xbf16>, vector<8x128xf32> -> vector<8x128xf32>
    %44 = vector.extract_strided_slice %14 {offsets = [56, 0], sizes = [8, 16], strides = [1, 1]} : vector<200x16xf32> to vector<8x16xf32>
    %45 = arith.truncf %44 : vector<8x16xf32> to vector<8x16xbf16>
    %46 = vector.extract_strided_slice %15 {offsets = [112, 0], sizes = [16, 128], strides = [1, 1]} : vector<400x128xbf16> to vector<16x128xbf16>
    %cst_15 = arith.constant dense<0.000000e+00> : vector<8x128xf32>
    %47 = tpu.matmul %45, %46, %cst_15 {dimension_numbers = #tpu.dot_dimension_numbers<[1], [0], [0], [1], [0, 0, 1, 1], [], []>} : vector<8x16xbf16>, vector<16x128xbf16>, vector<8x128xf32> -> vector<8x128xf32>
    %48 = vector.extract_strided_slice %14 {offsets = [64, 0], sizes = [8, 16], strides = [1, 1]} : vector<200x16xf32> to vector<8x16xf32>
    %49 = arith.truncf %48 : vector<8x16xf32> to vector<8x16xbf16>
    %50 = vector.extract_strided_slice %15 {offsets = [128, 0], sizes = [16, 128], strides = [1, 1]} : vector<400x128xbf16> to vector<16x128xbf16>
    %cst_16 = arith.constant dense<0.000000e+00> : vector<8x128xf32>
    %51 = tpu.matmul %49, %50, %cst_16 {dimension_numbers = #tpu.dot_dimension_numbers<[1], [0], [0], [1], [0, 0, 1, 1], [], []>} : vector<8x16xbf16>, vector<16x128xbf16>, vector<8x128xf32> -> vector<8x128xf32>
    %52 = vector.extract_strided_slice %14 {offsets = [72, 0], sizes = [8, 16], strides = [1, 1]} : vector<200x16xf32> to vector<8x16xf32>
    %53 = arith.truncf %52 : vector<8x16xf32> to vector<8x16xbf16>
    %54 = vector.extract_strided_slice %15 {offsets = [144, 0], sizes = [16, 128], strides = [1, 1]} : vector<400x128xbf16> to vector<16x128xbf16>
    %cst_17 = arith.constant dense<0.000000e+00> : vector<8x128xf32>
    %55 = tpu.matmul %53, %54, %cst_17 {dimension_numbers = #tpu.dot_dimension_numbers<[1], [0], [0], [1], [0, 0, 1, 1], [], []>} : vector<8x16xbf16>, vector<16x128xbf16>, vector<8x128xf32> -> vector<8x128xf32>
    %56 = vector.extract_strided_slice %14 {offsets = [80, 0], sizes = [8, 16], strides = [1, 1]} : vector<200x16xf32> to vector<8x16xf32>
    %57 = arith.truncf %56 : vector<8x16xf32> to vector<8x16xbf16>
    %58 = vector.extract_strided_slice %15 {offsets = [160, 0], sizes = [16, 128], strides = [1, 1]} : vector<400x128xbf16> to vector<16x128xbf16>
    %cst_18 = arith.constant dense<0.000000e+00> : vector<8x128xf32>
    %59 = tpu.matmul %57, %58, %cst_18 {dimension_numbers = #tpu.dot_dimension_numbers<[1], [0], [0], [1], [0, 0, 1, 1], [], []>} : vector<8x16xbf16>, vector<16x128xbf16>, vector<8x128xf32> -> vector<8x128xf32>
    %60 = vector.extract_strided_slice %14 {offsets = [88, 0], sizes = [8, 16], strides = [1, 1]} : vector<200x16xf32> to vector<8x16xf32>
    %61 = arith.truncf %60 : vector<8x16xf32> to vector<8x16xbf16>
    %62 = vector.extract_strided_slice %15 {offsets = [176, 0], sizes = [16, 128], strides = [1, 1]} : vector<400x128xbf16> to vector<16x128xbf16>
    %cst_19 = arith.constant dense<0.000000e+00> : vector<8x128xf32>
    %63 = tpu.matmul %61, %62, %cst_19 {dimension_numbers = #tpu.dot_dimension_numbers<[1], [0], [0], [1], [0, 0, 1, 1], [], []>} : vector<8x16xbf16>, vector<16x128xbf16>, vector<8x128xf32> -> vector<8x128xf32>
    %64 = vector.extract_strided_slice %14 {offsets = [96, 0], sizes = [8, 16], strides = [1, 1]} : vector<200x16xf32> to vector<8x16xf32>
    %65 = arith.truncf %64 : vector<8x16xf32> to vector<8x16xbf16>
    %66 = vector.extract_strided_slice %15 {offsets = [192, 0], sizes = [16, 128], strides = [1, 1]} : vector<400x128xbf16> to vector<16x128xbf16>
    %cst_20 = arith.constant dense<0.000000e+00> : vector<8x128xf32>
    %67 = tpu.matmul %65, %66, %cst_20 {dimension_numbers = #tpu.dot_dimension_numbers<[1], [0], [0], [1], [0, 0, 1, 1], [], []>} : vector<8x16xbf16>, vector<16x128xbf16>, vector<8x128xf32> -> vector<8x128xf32>
    %68 = vector.extract_strided_slice %14 {offsets = [104, 0], sizes = [8, 16], strides = [1, 1]} : vector<200x16xf32> to vector<8x16xf32>
    %69 = arith.truncf %68 : vector<8x16xf32> to vector<8x16xbf16>
    %70 = vector.extract_strided_slice %15 {offsets = [208, 0], sizes = [16, 128], strides = [1, 1]} : vector<400x128xbf16> to vector<16x128xbf16>
    %cst_21 = arith.constant dense<0.000000e+00> : vector<8x128xf32>
    %71 = tpu.matmul %69, %70, %cst_21 {dimension_numbers = #tpu.dot_dimension_numbers<[1], [0], [0], [1], [0, 0, 1, 1], [], []>} : vector<8x16xbf16>, vector<16x128xbf16>, vector<8x128xf32> -> vector<8x128xf32>
    %72 = vector.extract_strided_slice %14 {offsets = [112, 0], sizes = [8, 16], strides = [1, 1]} : vector<200x16xf32> to vector<8x16xf32>
    %73 = arith.truncf %72 : vector<8x16xf32> to vector<8x16xbf16>
    %74 = vector.extract_strided_slice %15 {offsets = [224, 0], sizes = [16, 128], strides = [1, 1]} : vector<400x128xbf16> to vector<16x128xbf16>
    %cst_22 = arith.constant dense<0.000000e+00> : vector<8x128xf32>
    %75 = tpu.matmul %73, %74, %cst_22 {dimension_numbers = #tpu.dot_dimension_numbers<[1], [0], [0], [1], [0, 0, 1, 1], [], []>} : vector<8x16xbf16>, vector<16x128xbf16>, vector<8x128xf32> -> vector<8x128xf32>
    %76 = vector.extract_strided_slice %14 {offsets = [120, 0], sizes = [8, 16], strides = [1, 1]} : vector<200x16xf32> to vector<8x16xf32>
    %77 = arith.truncf %76 : vector<8x16xf32> to vector<8x16xbf16>
    %78 = vector.extract_strided_slice %15 {offsets = [240, 0], sizes = [16, 128], strides = [1, 1]} : vector<400x128xbf16> to vector<16x128xbf16>
    %cst_23 = arith.constant dense<0.000000e+00> : vector<8x128xf32>
    %79 = tpu.matmul %77, %78, %cst_23 {dimension_numbers = #tpu.dot_dimension_numbers<[1], [0], [0], [1], [0, 0, 1, 1], [], []>} : vector<8x16xbf16>, vector<16x128xbf16>, vector<8x128xf32> -> vector<8x128xf32>
    %80 = vector.extract_strided_slice %14 {offsets = [128, 0], sizes = [8, 16], strides = [1, 1]} : vector<200x16xf32> to vector<8x16xf32>
    %81 = arith.truncf %80 : vector<8x16xf32> to vector<8x16xbf16>
    %82 = vector.extract_strided_slice %15 {offsets = [256, 0], sizes = [16, 128], strides = [1, 1]} : vector<400x128xbf16> to vector<16x128xbf16>
    %cst_24 = arith.constant dense<0.000000e+00> : vector<8x128xf32>
    %83 = tpu.matmul %81, %82, %cst_24 {dimension_numbers = #tpu.dot_dimension_numbers<[1], [0], [0], [1], [0, 0, 1, 1], [], []>} : vector<8x16xbf16>, vector<16x128xbf16>, vector<8x128xf32> -> vector<8x128xf32>
    %84 = vector.extract_strided_slice %14 {offsets = [136, 0], sizes = [8, 16], strides = [1, 1]} : vector<200x16xf32> to vector<8x16xf32>
    %85 = arith.truncf %84 : vector<8x16xf32> to vector<8x16xbf16>
    %86 = vector.extract_strided_slice %15 {offsets = [272, 0], sizes = [16, 128], strides = [1, 1]} : vector<400x128xbf16> to vector<16x128xbf16>
    %cst_25 = arith.constant dense<0.000000e+00> : vector<8x128xf32>
    %87 = tpu.matmul %85, %86, %cst_25 {dimension_numbers = #tpu.dot_dimension_numbers<[1], [0], [0], [1], [0, 0, 1, 1], [], []>} : vector<8x16xbf16>, vector<16x128xbf16>, vector<8x128xf32> -> vector<8x128xf32>
    %88 = vector.extract_strided_slice %14 {offsets = [144, 0], sizes = [8, 16], strides = [1, 1]} : vector<200x16xf32> to vector<8x16xf32>
    %89 = arith.truncf %88 : vector<8x16xf32> to vector<8x16xbf16>
    %90 = vector.extract_strided_slice %15 {offsets = [288, 0], sizes = [16, 128], strides = [1, 1]} : vector<400x128xbf16> to vector<16x128xbf16>
    %cst_26 = arith.constant dense<0.000000e+00> : vector<8x128xf32>
    %91 = tpu.matmul %89, %90, %cst_26 {dimension_numbers = #tpu.dot_dimension_numbers<[1], [0], [0], [1], [0, 0, 1, 1], [], []>} : vector<8x16xbf16>, vector<16x128xbf16>, vector<8x128xf32> -> vector<8x128xf32>
    %92 = vector.extract_strided_slice %14 {offsets = [152, 0], sizes = [8, 16], strides = [1, 1]} : vector<200x16xf32> to vector<8x16xf32>
    %93 = arith.truncf %92 : vector<8x16xf32> to vector<8x16xbf16>
    %94 = vector.extract_strided_slice %15 {offsets = [304, 0], sizes = [16, 128], strides = [1, 1]} : vector<400x128xbf16> to vector<16x128xbf16>
    %cst_27 = arith.constant dense<0.000000e+00> : vector<8x128xf32>
    %95 = tpu.matmul %93, %94, %cst_27 {dimension_numbers = #tpu.dot_dimension_numbers<[1], [0], [0], [1], [0, 0, 1, 1], [], []>} : vector<8x16xbf16>, vector<16x128xbf16>, vector<8x128xf32> -> vector<8x128xf32>
    %96 = vector.extract_strided_slice %14 {offsets = [160, 0], sizes = [8, 16], strides = [1, 1]} : vector<200x16xf32> to vector<8x16xf32>
    %97 = arith.truncf %96 : vector<8x16xf32> to vector<8x16xbf16>
    %98 = vector.extract_strided_slice %15 {offsets = [320, 0], sizes = [16, 128], strides = [1, 1]} : vector<400x128xbf16> to vector<16x128xbf16>
    %cst_28 = arith.constant dense<0.000000e+00> : vector<8x128xf32>
    %99 = tpu.matmul %97, %98, %cst_28 {dimension_numbers = #tpu.dot_dimension_numbers<[1], [0], [0], [1], [0, 0, 1, 1], [], []>} : vector<8x16xbf16>, vector<16x128xbf16>, vector<8x128xf32> -> vector<8x128xf32>
    %100 = vector.extract_strided_slice %14 {offsets = [168, 0], sizes = [8, 16], strides = [1, 1]} : vector<200x16xf32> to vector<8x16xf32>
    %101 = arith.truncf %100 : vector<8x16xf32> to vector<8x16xbf16>
    %102 = vector.extract_strided_slice %15 {offsets = [336, 0], sizes = [16, 128], strides = [1, 1]} : vector<400x128xbf16> to vector<16x128xbf16>
    %cst_29 = arith.constant dense<0.000000e+00> : vector<8x128xf32>
    %103 = tpu.matmul %101, %102, %cst_29 {dimension_numbers = #tpu.dot_dimension_numbers<[1], [0], [0], [1], [0, 0, 1, 1], [], []>} : vector<8x16xbf16>, vector<16x128xbf16>, vector<8x128xf32> -> vector<8x128xf32>
    %104 = vector.extract_strided_slice %14 {offsets = [176, 0], sizes = [8, 16], strides = [1, 1]} : vector<200x16xf32> to vector<8x16xf32>
    %105 = arith.truncf %104 : vector<8x16xf32> to vector<8x16xbf16>
    %106 = vector.extract_strided_slice %15 {offsets = [352, 0], sizes = [16, 128], strides = [1, 1]} : vector<400x128xbf16> to vector<16x128xbf16>
    %cst_30 = arith.constant dense<0.000000e+00> : vector<8x128xf32>
    %107 = tpu.matmul %105, %106, %cst_30 {dimension_numbers = #tpu.dot_dimension_numbers<[1], [0], [0], [1], [0, 0, 1, 1], [], []>} : vector<8x16xbf16>, vector<16x128xbf16>, vector<8x128xf32> -> vector<8x128xf32>
    %108 = vector.extract_strided_slice %14 {offsets = [184, 0], sizes = [8, 16], strides = [1, 1]} : vector<200x16xf32> to vector<8x16xf32>
    %109 = arith.truncf %108 : vector<8x16xf32> to vector<8x16xbf16>
    %110 = vector.extract_strided_slice %15 {offsets = [368, 0], sizes = [16, 128], strides = [1, 1]} : vector<400x128xbf16> to vector<16x128xbf16>
    %cst_31 = arith.constant dense<0.000000e+00> : vector<8x128xf32>
    %111 = tpu.matmul %109, %110, %cst_31 {dimension_numbers = #tpu.dot_dimension_numbers<[1], [0], [0], [1], [0, 0, 1, 1], [], []>} : vector<8x16xbf16>, vector<16x128xbf16>, vector<8x128xf32> -> vector<8x128xf32>
    %112 = vector.extract_strided_slice %14 {offsets = [192, 0], sizes = [8, 16], strides = [1, 1]} : vector<200x16xf32> to vector<8x16xf32>
    %113 = arith.truncf %112 : vector<8x16xf32> to vector<8x16xbf16>
    %114 = vector.extract_strided_slice %15 {offsets = [384, 0], sizes = [16, 128], strides = [1, 1]} : vector<400x128xbf16> to vector<16x128xbf16>
    %cst_32 = arith.constant dense<0.000000e+00> : vector<8x128xf32>
    %115 = tpu.matmul %113, %114, %cst_32 {dimension_numbers = #tpu.dot_dimension_numbers<[1], [0], [0], [1], [0, 0, 1, 1], [], []>} : vector<8x16xbf16>, vector<16x128xbf16>, vector<8x128xf32> -> vector<8x128xf32>
    %116 = arith.addf %19, %23 : vector<8x128xf32>
    %117 = arith.addf %27, %31 : vector<8x128xf32>
    %118 = arith.addf %35, %39 : vector<8x128xf32>
    %119 = arith.addf %43, %47 : vector<8x128xf32>
    %120 = arith.addf %51, %55 : vector<8x128xf32>
    %121 = arith.addf %59, %63 : vector<8x128xf32>
    %122 = arith.addf %67, %71 : vector<8x128xf32>
    %123 = arith.addf %75, %79 : vector<8x128xf32>
    %124 = arith.addf %83, %87 : vector<8x128xf32>
    %125 = arith.addf %91, %95 : vector<8x128xf32>
    %126 = arith.addf %99, %103 : vector<8x128xf32>
    %127 = arith.addf %107, %111 : vector<8x128xf32>
    %128 = arith.addf %116, %117 : vector<8x128xf32>
    %129 = arith.addf %118, %119 : vector<8x128xf32>
    %130 = arith.addf %120, %121 : vector<8x128xf32>
    %131 = arith.addf %122, %123 : vector<8x128xf32>
    %132 = arith.addf %124, %125 : vector<8x128xf32>
    %133 = arith.addf %126, %127 : vector<8x128xf32>
    %134 = arith.addf %128, %129 : vector<8x128xf32>
    %135 = arith.addf %130, %131 : vector<8x128xf32>
    %136 = arith.addf %132, %133 : vector<8x128xf32>
    %137 = arith.addf %134, %135 : vector<8x128xf32>
    %138 = arith.addf %136, %115 : vector<8x128xf32>
    %139 = arith.addf %137, %138 : vector<8x128xf32>
    %c0_33 = arith.constant 0 : index
    %c0_34 = arith.constant 0 : index
    %140 = vector.load %arg4[%c0_33, %c0_34] : memref<1x128xf32, #tpu.memory_space<vmem>>, vector<1x128xf32>
    %141 = vector.broadcast %140 : vector<1x128xf32> to vector<8x128xf32>
    %142 = arith.addf %139, %141 : vector<8x128xf32>
    %cst_35 = arith.constant 0.000000e+00 : f32
    %143 = vector.broadcast %cst_35 : f32 to vector<8x128xf32>
    %144 = arith.maximumf %142, %143 : vector<8x128xf32>
    %145 = arith.truncf %144 : vector<8x128xf32> to vector<8x128xbf16>
    %c0_36 = arith.constant 0 : index
    %c0_37 = arith.constant 0 : index
    %146 = vector.load %arg5[%c0_36, %c0_37] : memref<128x128xbf16, #tpu.memory_space<vmem>>, vector<128x128xbf16>
    %cst_38 = arith.constant dense<0.000000e+00> : vector<8x128xf32>
    %147 = tpu.matmul %145, %146, %cst_38 {dimension_numbers = #tpu.dot_dimension_numbers<[1], [0], [0], [1], [0, 0, 1, 1], [], []>} : vector<8x128xbf16>, vector<128x128xbf16>, vector<8x128xf32> -> vector<8x128xf32>
    %c0_39 = arith.constant 0 : index
    %c0_40 = arith.constant 0 : index
    %148 = vector.load %arg6[%c0_39, %c0_40] : memref<1x128xf32, #tpu.memory_space<vmem>>, vector<1x128xf32>
    %149 = vector.broadcast %148 : vector<1x128xf32> to vector<8x128xf32>
    %150 = arith.addf %147, %149 : vector<8x128xf32>
    %cst_41 = arith.constant 0.000000e+00 : f32
    %151 = vector.broadcast %cst_41 : f32 to vector<8x128xf32>
    %152 = arith.maximumf %150, %151 : vector<8x128xf32>
    %153 = arith.truncf %152 : vector<8x128xf32> to vector<8x128xbf16>
    %c0_42 = arith.constant 0 : index
    %c0_43 = arith.constant 0 : index
    %154 = vector.load %arg7[%c0_42, %c0_43] : memref<128x10xbf16, #tpu.memory_space<vmem>>, vector<128x10xbf16>
    %cst_44 = arith.constant dense<0.000000e+00> : vector<8x10xf32>
    %155 = tpu.matmul %153, %154, %cst_44 {dimension_numbers = #tpu.dot_dimension_numbers<[1], [0], [0], [1], [0, 0, 1, 1], [], []>} : vector<8x128xbf16>, vector<128x10xbf16>, vector<8x10xf32> -> vector<8x10xf32>
    %c0_45 = arith.constant 0 : index
    %c0_46 = arith.constant 0 : index
    %156 = vector.load %arg8[%c0_45, %c0_46] : memref<1x10xf32, #tpu.memory_space<vmem>>, vector<1x10xf32>
    %157 = vector.broadcast %156 : vector<1x10xf32> to vector<8x10xf32>
    %158 = arith.addf %155, %157 : vector<8x10xf32>
    %159 = vector.extract_strided_slice %158 {offsets = [0, 0], sizes = [2, 10], strides = [1, 1]} : vector<8x10xf32> to vector<2x10xf32>
    %c0_47 = arith.constant 0 : index
    %c0_48 = arith.constant 0 : index
    %160 = vector.load %arg9[%c0_47, %c0_48] : memref<2x10xf32, #tpu.memory_space<vmem>>, vector<2x10xf32>
    tpu.vector_store %arg9[%c0_47, %c0_48], %159 {strides = array<i32>} : memref<2x10xf32, #tpu.memory_space<vmem>>, vector<2x10xf32>,
    return
  }
}

</mosaic_0001>

<llo_original>
// kernel: lenet5_forward.2
$region0: #{lenet5_forward.2}
  #allocation0 [shape = 'u32[]', space=smem, size = 0x4, offset = 0x4, fixed_abs, tag = 'smem constant byte address 0x4 - core index']
  #allocation1 [shape = 'u32[144,128]{1,0:T(1,128)}', space=vmem, size = 0x12000, scoped, tag = 'internal scratch']
  %s0 = inlined_call_operand.vmem [shape: bf16[1568,25], index: 0, kind: input, shape index: {}]
  %s1 = inlined_call_operand.vmem [shape: bf16[25,6], index: 1, kind: input, shape index: {}]
  %s2 = inlined_call_operand.vmem [shape: f32[1,6], index: 2, kind: input, shape index: {}]
  %s3 = inlined_call_operand.vmem [shape: bf16[392,6], index: 3, kind: output, shape index: {}]
  %s4 = sld [smem:[#allocation0]]
  $region22: #{lenet5_forward.2} parent=0
    _
  %s6 = ssub.s32 1, %s4
  %s7 = scalar_select 0, %s6, %s4
  // Predicated region
  $region2: #{lenet5_forward.2} parent=0 // pred_check
    _
  $region3: #{lenet5_forward.2} parent=0 // pred_check_branch
    %9 = sbr.rel (0) target = $region5
  $region4: #{lenet5_forward.2} parent=0 // pred_region
    _
  $region5: #{lenet5_forward.2} parent=0 // pred_fallthru
    _
  // Predicated region
  $region6: #{lenet5_forward.2} parent=0 // pred_check
    _
  $region7: #{lenet5_forward.2} parent=0 // pred_check_branch
    %11 = sbr.rel (0) target = $region9
  $region8: #{lenet5_forward.2} parent=0 // pred_region
    _
  $region9: #{lenet5_forward.2} parent=0 // pred_fallthru
    _
  // Predicated region
  $region10: #{lenet5_forward.2} parent=0 // pred_check
    _
  $region11: #{lenet5_forward.2} parent=0 // pred_check_branch
    %13 = sbr.rel (0) target = $region13
  $region12: #{lenet5_forward.2} parent=0 // pred_region
    _
  $region13: #{lenet5_forward.2} parent=0 // pred_fallthru
    _
  %v15 = vld [vmem:[%s0] sm:$0xf]
  %v16 = vld [vmem:[%s0 + $0x4] sm:$0xf]
  %v17 = vld [vmem:[%s0 + $0x8] sm:$0xf]
  %v18 = vld [vmem:[%s0 + $0xc] sm:$0xf]
  %v19 = vld [vmem:[%s0 + $0x10] sm:$0xf]
  %v20 = vld [vmem:[%s0 + $0x14] sm:$0xf]
  %v21 = vld [vmem:[%s0 + $0x18] sm:$0xf]
  %v22 = vld [vmem:[%s0 + $0x1c] sm:$0xf]
  %v23 = vld [vmem:[%s0 + $0x20] sm:$0xf]
  %v24 = vld [vmem:[%s0 + $0x24] sm:$0xf]
  %v25 = vld [vmem:[%s0 + $0x28] sm:$0xf]
  %v26 = vld [vmem:[%s0 + $0x2c] sm:$0xf]
  %v27 = vld [vmem:[%s0 + $0x30] sm:$0xf]
  %v28 = vld [vmem:[%s0 + $0x34] sm:$0xf]
  %v29 = vld [vmem:[%s0 + $0x38] sm:$0xf]
  %v30 = vld [vmem:[%s0 + $0x3c] sm:$0xf]
  %v31 = vld [vmem:[%s0 + $0x40] sm:$0xf]
  %v32 = vld [vmem:[%s0 + $0x44] sm:$0xf]
  %v33 = vld [vmem:[%s0 + $0x48] sm:$0xf]
  %v34 = vld [vmem:[%s0 + $0x4c] sm:$0xf]
  %v35 = vld [vmem:[%s0 + $0x50] sm:$0xf]
  %v36 = vld [vmem:[%s0 + $0x54] sm:$0xf]
  %v37 = vld [vmem:[%s0 + $0x58] sm:$0xf]
  %v38 = vld [vmem:[%s0 + $0x5c] sm:$0xf]
  %v39 = vld [vmem:[%s0 + $0x60] sm:$0xf]
  %v40 = vld [vmem:[%s0 + $0x64] sm:$0xf]
  %v41 = vld [vmem:[%s0 + $0x68] sm:$0xf]
  %v42 = vld [vmem:[%s0 + $0x6c] sm:$0xf]
  %v43 = vld [vmem:[%s0 + $0x70] sm:$0xf]
  %v44 = vld [vmem:[%s0 + $0x74] sm:$0xf]
  %v45 = vld [vmem:[%s0 + $0x78] sm:$0xf]
  %v46 = vld [vmem:[%s0 + $0x7c] sm:$0xf]
  %v47 = vld [vmem:[%s0 + $0x80] sm:$0xf]
  %v48 = vld [vmem:[%s0 + $0x84] sm:$0xf]
  %v49 = vld [vmem:[%s0 + $0x88] sm:$0xf]
  %v50 = vld [vmem:[%s0 + $0x8c] sm:$0xf]
  %v51 = vld [vmem:[%s0 + $0x90] sm:$0xf]
  %v52 = vld [vmem:[%s0 + $0x94] sm:$0xf]
  %v53 = vld [vmem:[%s0 + $0x98] sm:$0xf]
  %v54 = vld [vmem:[%s0 + $0x9c] sm:$0xf]
  %v55 = vld [vmem:[%s0 + $0xa0] sm:$0xf]
  %v56 = vld [vmem:[%s0 + $0xa4] sm:$0xf]
  %v57 = vld [vmem:[%s0 + $0xa8] sm:$0xf]
  %v58 = vld [vmem:[%s0 + $0xac] sm:$0xf]
  %v59 = vld [vmem:[%s0 + $0xb0] sm:$0xf]
  %v60 = vld [vmem:[%s0 + $0xb4] sm:$0xf]
  %v61 = vld [vmem:[%s0 + $0xb8] sm:$0xf]
  %v62 = vld [vmem:[%s0 + $0xbc] sm:$0xf]
  %v63 = vld [vmem:[%s0 + $0xc0] sm:$0xf]
  %v64 = vld [vmem:[%s0 + $0xc4] sm:$0xf]
  %v65 = vld [vmem:[%s0 + $0xc8] sm:$0xf]
  %v66 = vld [vmem:[%s0 + $0xcc] sm:$0xf]
  %v67 = vld [vmem:[%s0 + $0xd0] sm:$0xf]
  %v68 = vld [vmem:[%s0 + $0xd4] sm:$0xf]
  %v69 = vld [vmem:[%s0 + $0xd8] sm:$0xf]
  %v70 = vld [vmem:[%s0 + $0xdc] sm:$0xf]
  %v71 = vld [vmem:[%s0 + $0xe0] sm:$0xf]
  %v72 = vld [vmem:[%s0 + $0xe4] sm:$0xf]
  %v73 = vld [vmem:[%s0 + $0xe8] sm:$0xf]
  %v74 = vld [vmem:[%s0 + $0xec] sm:$0xf]
  %v75 = vld [vmem:[%s0 + $0xf0] sm:$0xf]
  %v76 = vld [vmem:[%s0 + $0xf4] sm:$0xf]
  %v77 = vld [vmem:[%s0 + $0xf8] sm:$0xf]
  %v78 = vld [vmem:[%s0 + $0xfc] sm:$0xf]
  %v79 = vld [vmem:[%s0 + $0x100] sm:$0xf]
  %v80 = vld [vmem:[%s0 + $0x104] sm:$0xf]
  %v81 = vld [vmem:[%s0 + $0x108] sm:$0xf]
  %v82 = vld [vmem:[%s0 + $0x10c] sm:$0xf]
  %v83 = vld [vmem:[%s0 + $0x110] sm:$0xf]
  %v84 = vld [vmem:[%s0 + $0x114] sm:$0xf]
  %v85 = vld [vmem:[%s0 + $0x118] sm:$0xf]
  %v86 = vld [vmem:[%s0 + $0x11c] sm:$0xf]
  %v87 = vld [vmem:[%s0 + $0x120] sm:$0xf]
  %v88 = vld [vmem:[%s0 + $0x124] sm:$0xf]
  %v89 = vld [vmem:[%s0 + $0x128] sm:$0xf]
  %v90 = vld [vmem:[%s0 + $0x12c] sm:$0xf]
  %v91 = vld [vmem:[%s0 + $0x130] sm:$0xf]
  %v92 = vld [vmem:[%s0 + $0x134] sm:$0xf]
  %v93 = vld [vmem:[%s0 + $0x138] sm:$0xf]
  %v94 = vld [vmem:[%s0 + $0x13c] sm:$0xf]
  %v95 = vld [vmem:[%s0 + $0x140] sm:$0xf]
  %v96 = vld [vmem:[%s0 + $0x144] sm:$0xf]
  %v97 = vld [vmem:[%s0 + $0x148] sm:$0xf]
  %v98 = vld [vmem:[%s0 + $0x14c] sm:$0xf]
  %v99 = vld [vmem:[%s0 + $0x150] sm:$0xf]
  %v100 = vld [vmem:[%s0 + $0x154] sm:$0xf]
  %v101 = vld [vmem:[%s0 + $0x158] sm:$0xf]
  %v102 = vld [vmem:[%s0 + $0x15c] sm:$0xf]
  %v103 = vld [vmem:[%s0 + $0x160] sm:$0xf]
  %v104 = vld [vmem:[%s0 + $0x164] sm:$0xf]
  %v105 = vld [vmem:[%s0 + $0x168] sm:$0xf]
  %v106 = vld [vmem:[%s0 + $0x16c] sm:$0xf]
  %v107 = vld [vmem:[%s0 + $0x170] sm:$0xf]
  %v108 = vld [vmem:[%s0 + $0x174] sm:$0xf]
  %v109 = vld [vmem:[%s0 + $0x178] sm:$0xf]
  %v110 = vld [vmem:[%s0 + $0x17c] sm:$0xf]
  %v111 = vld [vmem:[%s0 + $0x180] sm:$0xf]
  %v112 = vld [vmem:[%s0 + $0x184] sm:$0xf]
  %v113 = vld [vmem:[%s0 + $0x188] sm:$0xf]
  %v114 = vld [vmem:[%s0 + $0x18c] sm:$0xf]
  %v115 = vld [vmem:[%s0 + $0x190] sm:$0xf]
  %v116 = vld [vmem:[%s0 + $0x194] sm:$0xf]
  %v117 = vld [vmem:[%s0 + $0x198] sm:$0xf]
  %v118 = vld [vmem:[%s0 + $0x19c] sm:$0xf]
  %v119 = vld [vmem:[%s0 + $0x1a0] sm:$0xf]
  %v120 = vld [vmem:[%s0 + $0x1a4] sm:$0xf]
  %v121 = vld [vmem:[%s0 + $0x1a8] sm:$0xf]
  %v122 = vld [vmem:[%s0 + $0x1ac] sm:$0xf]
  %v123 = vld [vmem:[%s0 + $0x1b0] sm:$0xf]
  %v124 = vld [vmem:[%s0 + $0x1b4] sm:$0xf]
  %v125 = vld [vmem:[%s0 + $0x1b8] sm:$0xf]
  %v126 = vld [vmem:[%s0 + $0x1bc] sm:$0xf]
  %v127 = vld [vmem:[%s0 + $0x1c0] sm:$0xf]
  %v128 = vld [vmem:[%s0 + $0x1c4] sm:$0xf]
  %v129 = vld [vmem:[%s0 + $0x1c8] sm:$0xf]
  %v130 = vld [vmem:[%s0 + $0x1cc] sm:$0xf]
  %v131 = vld [vmem:[%s0 + $0x1d0] sm:$0xf]
  %v132 = vld [vmem:[%s0 + $0x1d4] sm:$0xf]
  %v133 = vld [vmem:[%s0 + $0x1d8] sm:$0xf]
  %v134 = vld [vmem:[%s0 + $0x1dc] sm:$0xf]
  %v135 = vld [vmem:[%s0 + $0x1e0] sm:$0xf]
  %v136 = vld [vmem:[%s0 + $0x1e4] sm:$0xf]
  %v137 = vld [vmem:[%s0 + $0x1e8] sm:$0xf]
  %v138 = vld [vmem:[%s0 + $0x1ec] sm:$0xf]
  %v139 = vld [vmem:[%s0 + $0x1f0] sm:$0xf]
  %v140 = vld [vmem:[%s0 + $0x1f4] sm:$0xf]
  %v141 = vld [vmem:[%s0 + $0x1f8] sm:$0xf]
  %v142 = vld [vmem:[%s0 + $0x1fc] sm:$0xf]
  %v143 = vld [vmem:[%s0 + $0x200] sm:$0xf]
  %v144 = vld [vmem:[%s0 + $0x204] sm:$0xf]
  %v145 = vld [vmem:[%s0 + $0x208] sm:$0xf]
  %v146 = vld [vmem:[%s0 + $0x20c] sm:$0xf]
  %v147 = vld [vmem:[%s0 + $0x210] sm:$0xf]
  %v148 = vld [vmem:[%s0 + $0x214] sm:$0xf]
  %v149 = vld [vmem:[%s0 + $0x218] sm:$0xf]
  %v150 = vld [vmem:[%s0 + $0x21c] sm:$0xf]
  %v151 = vld [vmem:[%s0 + $0x220] sm:$0xf]
  %v152 = vld [vmem:[%s0 + $0x224] sm:$0xf]
  %v153 = vld [vmem:[%s0 + $0x228] sm:$0xf]
  %v154 = vld [vmem:[%s0 + $0x22c] sm:$0xf]
  %v155 = vld [vmem:[%s0 + $0x230] sm:$0xf]
  %v156 = vld [vmem:[%s0 + $0x234] sm:$0xf]
  %v157 = vld [vmem:[%s0 + $0x238] sm:$0xf]
  %v158 = vld [vmem:[%s0 + $0x23c] sm:$0xf]
  %v159 = vld [vmem:[%s0 + $0x240] sm:$0xf]
  %v160 = vld [vmem:[%s0 + $0x244] sm:$0xf]
  %v161 = vld [vmem:[%s0 + $0x248] sm:$0xf]
  %v162 = vld [vmem:[%s0 + $0x24c] sm:$0xf]
  %v163 = vld [vmem:[%s0 + $0x250] sm:$0xf]
  %v164 = vld [vmem:[%s0 + $0x254] sm:$0xf]
  %v165 = vld [vmem:[%s0 + $0x258] sm:$0xf]
  %v166 = vld [vmem:[%s0 + $0x25c] sm:$0xf]
  %v167 = vld [vmem:[%s0 + $0x260] sm:$0xf]
  %v168 = vld [vmem:[%s0 + $0x264] sm:$0xf]
  %v169 = vld [vmem:[%s0 + $0x268] sm:$0xf]
  %v170 = vld [vmem:[%s0 + $0x26c] sm:$0xf]
  %v171 = vld [vmem:[%s0 + $0x270] sm:$0xf]
  %v172 = vld [vmem:[%s0 + $0x274] sm:$0xf]
  %v173 = vld [vmem:[%s0 + $0x278] sm:$0xf]
  %v174 = vld [vmem:[%s0 + $0x27c] sm:$0xf]
  %v175 = vld [vmem:[%s0 + $0x280] sm:$0xf]
  %v176 = vld [vmem:[%s0 + $0x284] sm:$0xf]
  %v177 = vld [vmem:[%s0 + $0x288] sm:$0xf]
  %v178 = vld [vmem:[%s0 + $0x28c] sm:$0xf]
  %v179 = vld [vmem:[%s0 + $0x290] sm:$0xf]
  %v180 = vld [vmem:[%s0 + $0x294] sm:$0xf]
  %v181 = vld [vmem:[%s0 + $0x298] sm:$0xf]
  %v182 = vld [vmem:[%s0 + $0x29c] sm:$0xf]
  %v183 = vld [vmem:[%s0 + $0x2a0] sm:$0xf]
  %v184 = vld [vmem:[%s0 + $0x2a4] sm:$0xf]
  %v185 = vld [vmem:[%s0 + $0x2a8] sm:$0xf]
  %v186 = vld [vmem:[%s0 + $0x2ac] sm:$0xf]
  %v187 = vld [vmem:[%s0 + $0x2b0] sm:$0xf]
  %v188 = vld [vmem:[%s0 + $0x2b4] sm:$0xf]
  %v189 = vld [vmem:[%s0 + $0x2b8] sm:$0xf]
  %v190 = vld [vmem:[%s0 + $0x2bc] sm:$0xf]
  %v191 = vld [vmem:[%s0 + $0x2c0] sm:$0xf]
  %v192 = vld [vmem:[%s0 + $0x2c4] sm:$0xf]
  %v193 = vld [vmem:[%s0 + $0x2c8] sm:$0xf]
  %v194 = vld [vmem:[%s0 + $0x2cc] sm:$0xf]
  %v195 = vld [vmem:[%s0 + $0x2d0] sm:$0xf]
  %v196 = vld [vmem:[%s0 + $0x2d4] sm:$0xf]
  %v197 = vld [vmem:[%s0 + $0x2d8] sm:$0xf]
  %v198 = vld [vmem:[%s0 + $0x2dc] sm:$0xf]
  %v199 = vld [vmem:[%s0 + $0x2e0] sm:$0xf]
  %v200 = vld [vmem:[%s0 + $0x2e4] sm:$0xf]
  %v201 = vld [vmem:[%s0 + $0x2e8] sm:$0xf]
  %v202 = vld [vmem:[%s0 + $0x2ec] sm:$0xf]
  %v203 = vld [vmem:[%s0 + $0x2f0] sm:$0xf]
  %v204 = vld [vmem:[%s0 + $0x2f4] sm:$0xf]
  %v205 = vld [vmem:[%s0 + $0x2f8] sm:$0xf]
  %v206 = vld [vmem:[%s0 + $0x2fc] sm:$0xf]
  %v207 = vld [vmem:[%s0 + $0x300] sm:$0xf]
  %v208 = vld [vmem:[%s0 + $0x304] sm:$0xf]
  %v209 = vld [vmem:[%s0 + $0x308] sm:$0xf]
  %v210 = vld [vmem:[%s0 + $0x30c] sm:$0xf]
  %v211 = vld [vmem:[%s1] sm:$0xf]
  %v212 = vld [vmem:[%s1 + $0x4] sm:$0xf]
  %v213 = vld [vmem:[%s1 + $0x8] sm:$0xf]
  %v214 = vld [vmem:[%s1 + $0xc] sm:$0x1]
  %v215 = vld [vmem:[%s2] sm:$0x1]
  %v217 = vlaneseq
  %v218 = vshrl.u32 %v217, 7
  %v219 = vsub.s32 0, %v218
  %v220 = vrot.slane %v215, %v219
  %v418 = vunpack.c.l.b16 %v15
  %v419 = vunpack.c.l.b16 %v16
  %v420 = vunpack.c.l.b16 %v17
  %v421 = vunpack.c.l.b16 %v18
  %v422 = vunpack.c.l.b16 %v19
  %v423 = vunpack.c.l.b16 %v20
  %v424 = vunpack.c.l.b16 %v21
  %v425 = vunpack.c.l.b16 %v22
  %v426 = vunpack.c.l.b16 %v23
  %v427 = vunpack.c.l.b16 %v24
  %v428 = vunpack.c.l.b16 %v25
  %v429 = vunpack.c.l.b16 %v26
  %v430 = vunpack.c.l.b16 %v27
  %v431 = vunpack.c.l.b16 %v28
  %v432 = vunpack.c.l.b16 %v29
  %v433 = vunpack.c.l.b16 %v30
  %v434 = vunpack.c.l.b16 %v31
  %v435 = vunpack.c.l.b16 %v32
  %v436 = vunpack.c.l.b16 %v33
  %v437 = vunpack.c.l.b16 %v34
  %v438 = vunpack.c.l.b16 %v35
  %v439 = vunpack.c.l.b16 %v36
  %v440 = vunpack.c.l.b16 %v37
  %v441 = vunpack.c.l.b16 %v38
  %v442 = vunpack.c.l.b16 %v39
  %v443 = vunpack.c.l.b16 %v40
  %v444 = vunpack.c.l.b16 %v41
  %v445 = vunpack.c.l.b16 %v42
  %v446 = vunpack.c.l.b16 %v43
  %v447 = vunpack.c.l.b16 %v44
  %v448 = vunpack.c.l.b16 %v45
  %v449 = vunpack.c.l.b16 %v46
  %v450 = vunpack.c.l.b16 %v47
  %v451 = vunpack.c.l.b16 %v48
  %v452 = vunpack.c.l.b16 %v49
  %v453 = vunpack.c.l.b16 %v50
  %v454 = vunpack.c.l.b16 %v51
  %v455 = vunpack.c.l.b16 %v52
  %v456 = vunpack.c.l.b16 %v53
  %v457 = vunpack.c.l.b16 %v54
  %v458 = vunpack.c.l.b16 %v55
  %v459 = vunpack.c.l.b16 %v56
  %v460 = vunpack.c.l.b16 %v57
  %v461 = vunpack.c.l.b16 %v58
  %v462 = vunpack.c.l.b16 %v59
  %v463 = vunpack.c.l.b16 %v60
  %v464 = vunpack.c.l.b16 %v61
  %v465 = vunpack.c.l.b16 %v62
  %v466 = vunpack.c.l.b16 %v63
  %v467 = vunpack.c.l.b16 %v64
  %v468 = vunpack.c.l.b16 %v65
  %v469 = vunpack.c.l.b16 %v66
  %v470 = vunpack.c.l.b16 %v67
  %v471 = vunpack.c.l.b16 %v68
  %v472 = vunpack.c.l.b16 %v69
  %v473 = vunpack.c.l.b16 %v70
  %v474 = vunpack.c.l.b16 %v71
  %v475 = vunpack.c.l.b16 %v72
  %v476 = vunpack.c.l.b16 %v73
  %v477 = vunpack.c.l.b16 %v74
  %v478 = vunpack.c.l.b16 %v75
  %v479 = vunpack.c.l.b16 %v76
  %v480 = vunpack.c.l.b16 %v77
  %v481 = vunpack.c.l.b16 %v78
  %v482 = vunpack.c.l.b16 %v79
  %v483 = vunpack.c.l.b16 %v80
  %v484 = vunpack.c.l.b16 %v81
  %v485 = vunpack.c.l.b16 %v82
  %v486 = vunpack.c.l.b16 %v83
  %v487 = vunpack.c.l.b16 %v84
  %v488 = vunpack.c.l.b16 %v85
  %v489 = vunpack.c.l.b16 %v86
  %v490 = vunpack.c.l.b16 %v87
  %v491 = vunpack.c.l.b16 %v88
  %v492 = vunpack.c.l.b16 %v89
  %v493 = vunpack.c.l.b16 %v90
  %v494 = vunpack.c.l.b16 %v91
  %v495 = vunpack.c.l.b16 %v92
  %v496 = vunpack.c.l.b16 %v93
  %v497 = vunpack.c.l.b16 %v94
  %v498 = vunpack.c.l.b16 %v95
  %v499 = vunpack.c.l.b16 %v96
  %v500 = vunpack.c.l.b16 %v97
  %v501 = vunpack.c.l.b16 %v98
  %v502 = vunpack.c.l.b16 %v99
  %v503 = vunpack.c.l.b16 %v100
  %v504 = vunpack.c.l.b16 %v101
  %v505 = vunpack.c.l.b16 %v102
  %v506 = vunpack.c.l.b16 %v103
  %v507 = vunpack.c.l.b16 %v104
  %v508 = vunpack.c.l.b16 %v105
  %v509 = vunpack.c.l.b16 %v106
  %v510 = vunpack.c.l.b16 %v107
  %v511 = vunpack.c.l.b16 %v108
  %v512 = vunpack.c.l.b16 %v109
  %v513 = vunpack.c.l.b16 %v110
  %v514 = vunpack.c.l.b16 %v111
  %v515 = vunpack.c.l.b16 %v112
  %v516 = vunpack.c.l.b16 %v113
  %v517 = vunpack.c.l.b16 %v114
  %v518 = vunpack.c.l.b16 %v115
  %v519 = vunpack.c.l.b16 %v116
  %v520 = vunpack.c.l.b16 %v117
  %v521 = vunpack.c.l.b16 %v118
  %v522 = vunpack.c.l.b16 %v119
  %v523 = vunpack.c.l.b16 %v120
  %v524 = vunpack.c.l.b16 %v121
  %v525 = vunpack.c.l.b16 %v122
  %v526 = vunpack.c.l.b16 %v123
  %v527 = vunpack.c.l.b16 %v124
  %v528 = vunpack.c.l.b16 %v125
  %v529 = vunpack.c.l.b16 %v126
  %v530 = vunpack.c.l.b16 %v127
  %v531 = vunpack.c.l.b16 %v128
  %v532 = vunpack.c.l.b16 %v129
  %v533 = vunpack.c.l.b16 %v130
  %v534 = vunpack.c.l.b16 %v131
  %v535 = vunpack.c.l.b16 %v132
  %v536 = vunpack.c.l.b16 %v133
  %v537 = vunpack.c.l.b16 %v134
  %v538 = vunpack.c.l.b16 %v135
  %v539 = vunpack.c.l.b16 %v136
  %v540 = vunpack.c.l.b16 %v137
  %v541 = vunpack.c.l.b16 %v138
  %v542 = vunpack.c.l.b16 %v139
  %v543 = vunpack.c.l.b16 %v140
  %v544 = vunpack.c.l.b16 %v141
  %v545 = vunpack.c.l.b16 %v142
  %v546 = vunpack.c.l.b16 %v143
  %v547 = vunpack.c.l.b16 %v144
  %v548 = vunpack.c.l.b16 %v145
  %v549 = vunpack.c.l.b16 %v146
  %v550 = vunpack.c.l.b16 %v147
  %v551 = vunpack.c.l.b16 %v148
  %v552 = vunpack.c.l.b16 %v149
  %v553 = vunpack.c.l.b16 %v150
  %v554 = vunpack.c.l.b16 %v151
  %v555 = vunpack.c.l.b16 %v152
  %v556 = vunpack.c.l.b16 %v153
  %v557 = vunpack.c.l.b16 %v154
  %v558 = vunpack.c.l.b16 %v155
  %v559 = vunpack.c.l.b16 %v156
  %v560 = vunpack.c.l.b16 %v157
  %v561 = vunpack.c.l.b16 %v158
  %v562 = vunpack.c.l.b16 %v159
  %v563 = vunpack.c.l.b16 %v160
  %v564 = vunpack.c.l.b16 %v161
  %v565 = vunpack.c.l.b16 %v162
  %v566 = vunpack.c.l.b16 %v163
  %v567 = vunpack.c.l.b16 %v164
  %v568 = vunpack.c.l.b16 %v165
  %v569 = vunpack.c.l.b16 %v166
  %v570 = vunpack.c.l.b16 %v167
  %v571 = vunpack.c.l.b16 %v168
  %v572 = vunpack.c.l.b16 %v169
  %v573 = vunpack.c.l.b16 %v170
  %v574 = vunpack.c.l.b16 %v171
  %v575 = vunpack.c.l.b16 %v172
  %v576 = vunpack.c.l.b16 %v173
  %v577 = vunpack.c.l.b16 %v174
  %v578 = vunpack.c.l.b16 %v175
  %v579 = vunpack.c.l.b16 %v176
  %v580 = vunpack.c.l.b16 %v177
  %v581 = vunpack.c.l.b16 %v178
  %v582 = vunpack.c.l.b16 %v179
  %v583 = vunpack.c.l.b16 %v180
  %v584 = vunpack.c.l.b16 %v181
  %v585 = vunpack.c.l.b16 %v182
  %v586 = vunpack.c.l.b16 %v183
  %v587 = vunpack.c.l.b16 %v184
  %v588 = vunpack.c.l.b16 %v185
  %v589 = vunpack.c.l.b16 %v186
  %v590 = vunpack.c.l.b16 %v187
  %v591 = vunpack.c.l.b16 %v188
  %v592 = vunpack.c.l.b16 %v189
  %v593 = vunpack.c.l.b16 %v190
  %v594 = vunpack.c.l.b16 %v191
  %v595 = vunpack.c.l.b16 %v192
  %v596 = vunpack.c.l.b16 %v193
  %v597 = vunpack.c.l.b16 %v194
  %v598 = vunpack.c.l.b16 %v195
  %v599 = vunpack.c.l.b16 %v196
  %v600 = vunpack.c.l.b16 %v197
  %v601 = vunpack.c.l.b16 %v198
  %v602 = vunpack.c.l.b16 %v199
  %v603 = vunpack.c.l.b16 %v200
  %v604 = vunpack.c.l.b16 %v201
  %v605 = vunpack.c.l.b16 %v202
  %v606 = vunpack.c.l.b16 %v203
  %v607 = vunpack.c.l.b16 %v204
  %v608 = vunpack.c.l.b16 %v205
  %v609 = vunpack.c.l.b16 %v206
  %v610 = vunpack.c.l.b16 %v207
  %v611 = vunpack.c.l.b16 %v208
  %v612 = vunpack.c.l.b16 %v209
  %v613 = vunpack.c.l.b16 %v210
  %v614 = vpack.c.b16 %v419, %v418
  %v615 = vpack.c.b16 %v421, %v420
  %v616 = vpack.c.b16 %v423, %v422
  %v617 = vpack.c.b16 %v425, %v424
  %v618 = vpack.c.b16 %v427, %v426
  %v619 = vpack.c.b16 %v429, %v428
  %v620 = vpack.c.b16 %v431, %v430
  %v621 = vpack.c.b16 %v433, %v432
  %v622 = vpack.c.b16 %v435, %v434
  %v623 = vpack.c.b16 %v437, %v436
  %v624 = vpack.c.b16 %v439, %v438
  %v625 = vpack.c.b16 %v441, %v440
  %v626 = vpack.c.b16 %v443, %v442
  %v627 = vpack.c.b16 %v445, %v444
  %v628 = vpack.c.b16 %v447, %v446
  %v629 = vpack.c.b16 %v449, %v448
  %v630 = vpack.c.b16 %v451, %v450
  %v631 = vpack.c.b16 %v453, %v452
  %v632 = vpack.c.b16 %v455, %v454
  %v633 = vpack.c.b16 %v457, %v456
  %v634 = vpack.c.b16 %v459, %v458
  %v635 = vpack.c.b16 %v461, %v460
  %v636 = vpack.c.b16 %v463, %v462
  %v637 = vpack.c.b16 %v465, %v464
  %v638 = vpack.c.b16 %v467, %v466
  %v639 = vpack.c.b16 %v469, %v468
  %v640 = vpack.c.b16 %v471, %v470
  %v641 = vpack.c.b16 %v473, %v472
  %v642 = vpack.c.b16 %v475, %v474
  %v643 = vpack.c.b16 %v477, %v476
  %v644 = vpack.c.b16 %v479, %v478
  %v645 = vpack.c.b16 %v481, %v480
  %v646 = vpack.c.b16 %v483, %v482
  %v647 = vpack.c.b16 %v485, %v484
  %v648 = vpack.c.b16 %v487, %v486
  %v649 = vpack.c.b16 %v489, %v488
  %v650 = vpack.c.b16 %v491, %v490
  %v651 = vpack.c.b16 %v493, %v492
  %v652 = vpack.c.b16 %v495, %v494
  %v653 = vpack.c.b16 %v497, %v496
  %v654 = vpack.c.b16 %v499, %v498
  %v655 = vpack.c.b16 %v501, %v500
  %v656 = vpack.c.b16 %v503, %v502
  %v657 = vpack.c.b16 %v505, %v504
  %v658 = vpack.c.b16 %v507, %v506
  %v659 = vpack.c.b16 %v509, %v508
  %v660 = vpack.c.b16 %v511, %v510
  %v661 = vpack.c.b16 %v513, %v512
  %v662 = vpack.c.b16 %v515, %v514
  %v663 = vpack.c.b16 %v517, %v516
  %v664 = vpack.c.b16 %v519, %v518
  %v665 = vpack.c.b16 %v521, %v520
  %v666 = vpack.c.b16 %v523, %v522
  %v667 = vpack.c.b16 %v525, %v524
  %v668 = vpack.c.b16 %v527, %v526
  %v669 = vpack.c.b16 %v529, %v528
  %v670 = vpack.c.b16 %v531, %v530
  %v671 = vpack.c.b16 %v533, %v532
  %v672 = vpack.c.b16 %v535, %v534
  %v673 = vpack.c.b16 %v537, %v536
  %v674 = vpack.c.b16 %v539, %v538
  %v675 = vpack.c.b16 %v541, %v540
  %v676 = vpack.c.b16 %v543, %v542
  %v677 = vpack.c.b16 %v545, %v544
  %v678 = vpack.c.b16 %v547, %v546
  %v679 = vpack.c.b16 %v549, %v548
  %v680 = vpack.c.b16 %v551, %v550
  %v681 = vpack.c.b16 %v553, %v552
  %v682 = vpack.c.b16 %v555, %v554
  %v683 = vpack.c.b16 %v557, %v556
  %v684 = vpack.c.b16 %v559, %v558
  %v685 = vpack.c.b16 %v561, %v560
  %v686 = vpack.c.b16 %v563, %v562
  %v687 = vpack.c.b16 %v565, %v564
  %v688 = vpack.c.b16 %v567, %v566
  %v689 = vpack.c.b16 %v569, %v568
  %v690 = vpack.c.b16 %v571, %v570
  %v691 = vpack.c.b16 %v573, %v572
  %v692 = vpack.c.b16 %v575, %v574
  %v693 = vpack.c.b16 %v577, %v576
  %v694 = vpack.c.b16 %v579, %v578
  %v695 = vpack.c.b16 %v581, %v580
  %v696 = vpack.c.b16 %v583, %v582
  %v697 = vpack.c.b16 %v585, %v584
  %v698 = vpack.c.b16 %v587, %v586
  %v699 = vpack.c.b16 %v589, %v588
  %v700 = vpack.c.b16 %v591, %v590
  %v701 = vpack.c.b16 %v593, %v592
  %v702 = vpack.c.b16 %v595, %v594
  %v703 = vpack.c.b16 %v597, %v596
  %v704 = vpack.c.b16 %v599, %v598
  %v705 = vpack.c.b16 %v601, %v600
  %v706 = vpack.c.b16 %v603, %v602
  %v707 = vpack.c.b16 %v605, %v604
  %v708 = vpack.c.b16 %v607, %v606
  %v709 = vpack.c.b16 %v609, %v608
  %v710 = vpack.c.b16 %v611, %v610
  %v711 = vpack.c.b16 %v613, %v612
  %v716 = vunpack.c.l.b16 %v211
  %v717 = vunpack.c.l.b16 %v212
  %v718 = vunpack.c.l.b16 %v213
  %v719 = vunpack.c.l.b16 %v214
  %v720 = vpack.c.b16 %v717, %v716
  %v721 = vpack.c.b16 %v719, %v718
  %vm723 = vcmask 203776
  %v725 = vsel %vm723, %v614, 0
  %v728 = vsel %vm723, %v615, 0
  %v731 = vsel %vm723, %v616, 0
  %v734 = vsel %vm723, %v617, 0
  %v737 = vsel %vm723, %v618, 0
  %v740 = vsel %vm723, %v619, 0
  %v743 = vsel %vm723, %v620, 0
  %v746 = vsel %vm723, %v621, 0
  %v749 = vsel %vm723, %v622, 0
  %v752 = vsel %vm723, %v623, 0
  %v755 = vsel %vm723, %v624, 0
  %v758 = vsel %vm723, %v625, 0
  %v761 = vsel %vm723, %v626, 0
  %v764 = vsel %vm723, %v627, 0
  %v767 = vsel %vm723, %v628, 0
  %v770 = vsel %vm723, %v629, 0
  %v773 = vsel %vm723, %v630, 0
  %v776 = vsel %vm723, %v631, 0
  %v779 = vsel %vm723, %v632, 0
  %v782 = vsel %vm723, %v633, 0
  %v785 = vsel %vm723, %v634, 0
  %v788 = vsel %vm723, %v635, 0
  %v791 = vsel %vm723, %v636, 0
  %v794 = vsel %vm723, %v637, 0
  %v797 = vsel %vm723, %v638, 0
  %v800 = vsel %vm723, %v639, 0
  %v803 = vsel %vm723, %v640, 0
  %v806 = vsel %vm723, %v641, 0
  %v809 = vsel %vm723, %v642, 0
  %v812 = vsel %vm723, %v643, 0
  %v815 = vsel %vm723, %v644, 0
  %v818 = vsel %vm723, %v645, 0
  %v821 = vsel %vm723, %v646, 0
  %v824 = vsel %vm723, %v647, 0
  %v827 = vsel %vm723, %v648, 0
  %v830 = vsel %vm723, %v649, 0
  %v833 = vsel %vm723, %v650, 0
  %v836 = vsel %vm723, %v651, 0
  %v839 = vsel %vm723, %v652, 0
  %v842 = vsel %vm723, %v653, 0
  %v845 = vsel %vm723, %v654, 0
  %v848 = vsel %vm723, %v655, 0
  %v851 = vsel %vm723, %v656, 0
  %v854 = vsel %vm723, %v657, 0
  %v857 = vsel %vm723, %v658, 0
  %v860 = vsel %vm723, %v659, 0
  %v863 = vsel %vm723, %v660, 0
  %v866 = vsel %vm723, %v661, 0
  %v869 = vsel %vm723, %v662, 0
  %v872 = vsel %vm723, %v663, 0
  %v875 = vsel %vm723, %v664, 0
  %v878 = vsel %vm723, %v665, 0
  %v881 = vsel %vm723, %v666, 0
  %v884 = vsel %vm723, %v667, 0
  %v887 = vsel %vm723, %v668, 0
  %v890 = vsel %vm723, %v669, 0
  %v893 = vsel %vm723, %v670, 0
  %v896 = vsel %vm723, %v671, 0
  %v899 = vsel %vm723, %v672, 0
  %v902 = vsel %vm723, %v673, 0
  %v905 = vsel %vm723, %v674, 0
  %v908 = vsel %vm723, %v675, 0
  %v911 = vsel %vm723, %v676, 0
  %v914 = vsel %vm723, %v677, 0
  %v917 = vsel %vm723, %v678, 0
  %v920 = vsel %vm723, %v679, 0
  %v923 = vsel %vm723, %v680, 0
  %v926 = vsel %vm723, %v681, 0
  %v929 = vsel %vm723, %v682, 0
  %v932 = vsel %vm723, %v683, 0
  %v935 = vsel %vm723, %v684, 0
  %v938 = vsel %vm723, %v685, 0
  %v941 = vsel %vm723, %v686, 0
  %v944 = vsel %vm723, %v687, 0
  %v947 = vsel %vm723, %v688, 0
  %v950 = vsel %vm723, %v689, 0
  %v953 = vsel %vm723, %v690, 0
  %v956 = vsel %vm723, %v691, 0
  %v959 = vsel %vm723, %v692, 0
  %v962 = vsel %vm723, %v693, 0
  %v965 = vsel %vm723, %v694, 0
  %v968 = vsel %vm723, %v695, 0
  %v971 = vsel %vm723, %v696, 0
  %v974 = vsel %vm723, %v697, 0
  %v977 = vsel %vm723, %v698, 0
  %v980 = vsel %vm723, %v699, 0
  %v983 = vsel %vm723, %v700, 0
  %v986 = vsel %vm723, %v701, 0
  %v989 = vsel %vm723, %v702, 0
  %v992 = vsel %vm723, %v703, 0
  %v995 = vsel %vm723, %v704, 0
  %v998 = vsel %vm723, %v705, 0
  %v1001 = vsel %vm723, %v706, 0
  %v1004 = vsel %vm723, %v707, 0
  %v1007 = vsel %vm723, %v708, 0
  %v1010 = vsel %vm723, %v709, 0
  %v1013 = vsel %vm723, %v710, 0
  %v1016 = vsel %vm723, %v711, 0
  %vm1018 = vcmask 1043456
  %vm1019 = vcmask 1044480
  %v1020 = vsel %vm1018, 4294967295, 65535
  %v1021 = vsel %vm1019, %v1020, 0
  %v1023 = vand.u32 %v721, %v1021
  %1025 = vmatprep.subr.bf16.mxu0 0
  %1026 = vmatpush1.bf16.msra.mxu0 %v720
  %1027 = vmatprep.subr.bf16.mxu0 0
  %1028 = vmatpush1.bf16.msra.mxu0 %v1023
  %1029 = vmatprep.subr.bf16.mxu0 0
  %1030 = vmatpush1.bf16.msra.mxu0 0
  %1031 = vmatprep.subr.bf16.mxu0 0
  %1032 = vmatpush1.bf16.msra.mxu0 0
  %1033 = vmatprep.subr.bf16.mxu0 0
  %1034 = vmatpush1.bf16.msra.mxu0 0
  %1035 = vmatprep.subr.bf16.mxu0 0
  %1036 = vmatpush1.bf16.msra.mxu0 0
  %1037 = vmatprep.subr.bf16.mxu0 0
  %1038 = vmatpush1.bf16.msra.mxu0 0
  %1039 = vmatprep.subr.bf16.mxu0 0
  %1040 = vmatpush1.bf16.msra.mxu0 0
  %1041 = vmatprep.subr.bf16.mxu0 0
  %1042 = vmatpush1.bf16.msra.mxu0 0
  %1043 = vmatprep.subr.bf16.mxu0 0
  %1044 = vmatpush1.bf16.msra.mxu0 0
  %1045 = vmatprep.subr.bf16.mxu0 0
  %1046 = vmatpush1.bf16.msra.mxu0 0
  %1047 = vmatprep.subr.bf16.mxu0 0
  %1048 = vmatpush1.bf16.msra.mxu0 0
  %1049 = vmatprep.subr.bf16.mxu0 0
  %1050 = vmatpush1.bf16.msra.mxu0 0
  %1051 = vmatprep.subr.bf16.mxu0 0
  %1052 = vmatpush1.bf16.msra.mxu0 0
  %1053 = vmatprep.subr.bf16.mxu0 0
  %1054 = vmatpush1.bf16.msra.mxu0 0
  %1055 = vmatprep.subr.bf16.mxu0 0
  %1056 = vmatpush1.bf16.msra.mxu0 0
  %1057 = vmatprep.mubr.bf16.mxu0 0
  %1058 = vmatmul.mubr.bf16.gmra.mrb[0].mxu0 %v725
  %v1059 = vpop.f32.mrb[0].mxu0
  %v1060 = vadd.f32 %v220, %v1059
  %v1061 = vpop.f32.mrb[0].mxu0
  %v1062 = vpop.f32.mrb[0].mxu0
  %v1063 = vadd.f32 %v220, %v1062
  %v1064 = vpop.f32.mrb[0].mxu0
  %1065 = vmatprep.mubr.bf16.mxu0 0
  %1066 = vmatmul.mubr.bf16.gmra.mrb[0].mxu0 %v728
  %v1067 = vpop.f32.mrb[0].mxu0
  %v1068 = vadd.f32 %v220, %v1067
  %v1069 = vpop.f32.mrb[0].mxu0
  %v1070 = vpop.f32.mrb[0].mxu0
  %v1071 = vadd.f32 %v220, %v1070
  %v1072 = vpop.f32.mrb[0].mxu0
  %1073 = vmatprep.mubr.bf16.mxu0 0
  %1074 = vmatmul.mubr.bf16.gmra.mrb[0].mxu0 %v731
  %v1075 = vpop.f32.mrb[0].mxu0
  %v1076 = vadd.f32 %v220, %v1075
  %v1077 = vpop.f32.mrb[0].mxu0
  %v1078 = vpop.f32.mrb[0].mxu0
  %v1079 = vadd.f32 %v220, %v1078
  %v1080 = vpop.f32.mrb[0].mxu0
  %1081 = vmatprep.mubr.bf16.mxu0 0
  %1082 = vmatmul.mubr.bf16.gmra.mrb[0].mxu0 %v734
  %v1083 = vpop.f32.mrb[0].mxu0
  %v1084 = vadd.f32 %v220, %v1083
  %v1085 = vpop.f32.mrb[0].mxu0
  %v1086 = vpop.f32.mrb[0].mxu0
  %v1087 = vadd.f32 %v220, %v1086
  %v1088 = vpop.f32.mrb[0].mxu0
  %1089 = vmatprep.mubr.bf16.mxu0 0
  %1090 = vmatmul.mubr.bf16.gmra.mrb[0].mxu0 %v737
  %v1091 = vpop.f32.mrb[0].mxu0
  %v1092 = vadd.f32 %v220, %v1091
  %v1093 = vpop.f32.mrb[0].mxu0
  %v1094 = vpop.f32.mrb[0].mxu0
  %v1095 = vadd.f32 %v220, %v1094
  %v1096 = vpop.f32.mrb[0].mxu0
  %1097 = vmatprep.mubr.bf16.mxu0 0
  %1098 = vmatmul.mubr.bf16.gmra.mrb[0].mxu0 %v740
  %v1099 = vpop.f32.mrb[0].mxu0
  %v1100 = vadd.f32 %v220, %v1099
  %v1101 = vpop.f32.mrb[0].mxu0
  %v1102 = vpop.f32.mrb[0].mxu0
  %v1103 = vadd.f32 %v220, %v1102
  %v1104 = vpop.f32.mrb[0].mxu0
  %1105 = vmatprep.mubr.bf16.mxu0 0
  %1106 = vmatmul.mubr.bf16.gmra.mrb[0].mxu0 %v743
  %v1107 = vpop.f32.mrb[0].mxu0
  %v1108 = vadd.f32 %v220, %v1107
  %v1109 = vpop.f32.mrb[0].mxu0
  %v1110 = vpop.f32.mrb[0].mxu0
  %v1111 = vadd.f32 %v220, %v1110
  %v1112 = vpop.f32.mrb[0].mxu0
  %1113 = vmatprep.mubr.bf16.mxu0 0
  %1114 = vmatmul.mubr.bf16.gmra.mrb[0].mxu0 %v746
  %v1115 = vpop.f32.mrb[0].mxu0
  %v1116 = vadd.f32 %v220, %v1115
  %v1117 = vpop.f32.mrb[0].mxu0
  %v1118 = vpop.f32.mrb[0].mxu0
  %v1119 = vadd.f32 %v220, %v1118
  %v1120 = vpop.f32.mrb[0].mxu0
  %1121 = vmatprep.mubr.bf16.mxu0 0
  %1122 = vmatmul.mubr.bf16.gmra.mrb[0].mxu0 %v749
  %v1123 = vpop.f32.mrb[0].mxu0
  %v1124 = vadd.f32 %v220, %v1123
  %v1125 = vpop.f32.mrb[0].mxu0
  %v1126 = vpop.f32.mrb[0].mxu0
  %v1127 = vadd.f32 %v220, %v1126
  %v1128 = vpop.f32.mrb[0].mxu0
  %1129 = vmatprep.mubr.bf16.mxu0 0
  %1130 = vmatmul.mubr.bf16.gmra.mrb[0].mxu0 %v752
  %v1131 = vpop.f32.mrb[0].mxu0
  %v1132 = vadd.f32 %v220, %v1131
  %v1133 = vpop.f32.mrb[0].mxu0
  %v1134 = vpop.f32.mrb[0].mxu0
  %v1135 = vadd.f32 %v220, %v1134
  %v1136 = vpop.f32.mrb[0].mxu0
  %1137 = vmatprep.mubr.bf16.mxu0 0
  %1138 = vmatmul.mubr.bf16.gmra.mrb[0].mxu0 %v755
  %v1139 = vpop.f32.mrb[0].mxu0
  %v1140 = vadd.f32 %v220, %v1139
  %v1141 = vpop.f32.mrb[0].mxu0
  %v1142 = vpop.f32.mrb[0].mxu0
  %v1143 = vadd.f32 %v220, %v1142
  %v1144 = vpop.f32.mrb[0].mxu0
  %1145 = vmatprep.mubr.bf16.mxu0 0
  %1146 = vmatmul.mubr.bf16.gmra.mrb[0].mxu0 %v758
  %v1147 = vpop.f32.mrb[0].mxu0
  %v1148 = vadd.f32 %v220, %v1147
  %v1149 = vpop.f32.mrb[0].mxu0
  %v1150 = vpop.f32.mrb[0].mxu0
  %v1151 = vadd.f32 %v220, %v1150
  %v1152 = vpop.f32.mrb[0].mxu0
  %1153 = vmatprep.mubr.bf16.mxu0 0
  %1154 = vmatmul.mubr.bf16.gmra.mrb[0].mxu0 %v761
  %v1155 = vpop.f32.mrb[0].mxu0
  %v1156 = vadd.f32 %v220, %v1155
  %v1157 = vpop.f32.mrb[0].mxu0
  %v1158 = vpop.f32.mrb[0].mxu0
  %v1159 = vadd.f32 %v220, %v1158
  %v1160 = vpop.f32.mrb[0].mxu0
  %1161 = vmatprep.mubr.bf16.mxu0 0
  %1162 = vmatmul.mubr.bf16.gmra.mrb[0].mxu0 %v764
  %v1163 = vpop.f32.mrb[0].mxu0
  %v1164 = vadd.f32 %v220, %v1163
  %v1165 = vpop.f32.mrb[0].mxu0
  %v1166 = vpop.f32.mrb[0].mxu0
  %v1167 = vadd.f32 %v220, %v1166
  %v1168 = vpop.f32.mrb[0].mxu0
  %1169 = vmatprep.mubr.bf16.mxu0 0
  %1170 = vmatmul.mubr.bf16.gmra.mrb[0].mxu0 %v767
  %v1171 = vpop.f32.mrb[0].mxu0
  %v1172 = vadd.f32 %v220, %v1171
  %v1173 = vpop.f32.mrb[0].mxu0
  %v1174 = vpop.f32.mrb[0].mxu0
  %v1175 = vadd.f32 %v220, %v1174
  %v1176 = vpop.f32.mrb[0].mxu0
  %1177 = vmatprep.mubr.bf16.mxu0 0
  %1178 = vmatmul.mubr.bf16.gmra.mrb[0].mxu0 %v770
  %v1179 = vpop.f32.mrb[0].mxu0
  %v1180 = vadd.f32 %v220, %v1179
  %v1181 = vpop.f32.mrb[0].mxu0
  %v1182 = vpop.f32.mrb[0].mxu0
  %v1183 = vadd.f32 %v220, %v1182
  %v1184 = vpop.f32.mrb[0].mxu0
  %1185 = vmatprep.mubr.bf16.mxu0 0
  %1186 = vmatmul.mubr.bf16.gmra.mrb[0].mxu0 %v773
  %v1187 = vpop.f32.mrb[0].mxu0
  %v1188 = vadd.f32 %v220, %v1187
  %v1189 = vpop.f32.mrb[0].mxu0
  %v1190 = vpop.f32.mrb[0].mxu0
  %v1191 = vadd.f32 %v220, %v1190
  %v1192 = vpop.f32.mrb[0].mxu0
  %1193 = vmatprep.mubr.bf16.mxu0 0
  %1194 = vmatmul.mubr.bf16.gmra.mrb[0].mxu0 %v776
  %v1195 = vpop.f32.mrb[0].mxu0
  %v1196 = vadd.f32 %v220, %v1195
  %v1197 = vpop.f32.mrb[0].mxu0
  %v1198 = vpop.f32.mrb[0].mxu0
  %v1199 = vadd.f32 %v220, %v1198
  %v1200 = vpop.f32.mrb[0].mxu0
  %1201 = vmatprep.mubr.bf16.mxu0 0
  %1202 = vmatmul.mubr.bf16.gmra.mrb[0].mxu0 %v779
  %v1203 = vpop.f32.mrb[0].mxu0
  %v1204 = vadd.f32 %v220, %v1203
  %v1205 = vpop.f32.mrb[0].mxu0
  %v1206 = vpop.f32.mrb[0].mxu0
  %v1207 = vadd.f32 %v220, %v1206
  %v1208 = vpop.f32.mrb[0].mxu0
  %1209 = vmatprep.mubr.bf16.mxu0 0
  %1210 = vmatmul.mubr.bf16.gmra.mrb[0].mxu0 %v782
  %v1211 = vpop.f32.mrb[0].mxu0
  %v1212 = vadd.f32 %v220, %v1211
  %v1213 = vpop.f32.mrb[0].mxu0
  %v1214 = vpop.f32.mrb[0].mxu0
  %v1215 = vadd.f32 %v220, %v1214
  %v1216 = vpop.f32.mrb[0].mxu0
  %1217 = vmatprep.mubr.bf16.mxu0 0
  %1218 = vmatmul.mubr.bf16.gmra.mrb[0].mxu0 %v785
  %v1219 = vpop.f32.mrb[0].mxu0
  %v1220 = vadd.f32 %v220, %v1219
  %v1221 = vpop.f32.mrb[0].mxu0
  %v1222 = vpop.f32.mrb[0].mxu0
  %v1223 = vadd.f32 %v220, %v1222
  %v1224 = vpop.f32.mrb[0].mxu0
  %1225 = vmatprep.mubr.bf16.mxu0 0
  %1226 = vmatmul.mubr.bf16.gmra.mrb[0].mxu0 %v788
  %v1227 = vpop.f32.mrb[0].mxu0
  %v1228 = vadd.f32 %v220, %v1227
  %v1229 = vpop.f32.mrb[0].mxu0
  %v1230 = vpop.f32.mrb[0].mxu0
  %v1231 = vadd.f32 %v220, %v1230
  %v1232 = vpop.f32.mrb[0].mxu0
  %1233 = vmatprep.mubr.bf16.mxu0 0
  %1234 = vmatmul.mubr.bf16.gmra.mrb[0].mxu0 %v791
  %v1235 = vpop.f32.mrb[0].mxu0
  %v1236 = vadd.f32 %v220, %v1235
  %v1237 = vpop.f32.mrb[0].mxu0
  %v1238 = vpop.f32.mrb[0].mxu0
  %v1239 = vadd.f32 %v220, %v1238
  %v1240 = vpop.f32.mrb[0].mxu0
  %1241 = vmatprep.mubr.bf16.mxu0 0
  %1242 = vmatmul.mubr.bf16.gmra.mrb[0].mxu0 %v794
  %v1243 = vpop.f32.mrb[0].mxu0
  %v1244 = vadd.f32 %v220, %v1243
  %v1245 = vpop.f32.mrb[0].mxu0
  %v1246 = vpop.f32.mrb[0].mxu0
  %v1247 = vadd.f32 %v220, %v1246
  %v1248 = vpop.f32.mrb[0].mxu0
  %1249 = vmatprep.mubr.bf16.mxu0 0
  %1250 = vmatmul.mubr.bf16.gmra.mrb[0].mxu0 %v797
  %v1251 = vpop.f32.mrb[0].mxu0
  %v1252 = vadd.f32 %v220, %v1251
  %v1253 = vpop.f32.mrb[0].mxu0
  %v1254 = vpop.f32.mrb[0].mxu0
  %v1255 = vadd.f32 %v220, %v1254
  %v1256 = vpop.f32.mrb[0].mxu0
  %1257 = vmatprep.mubr.bf16.mxu0 0
  %1258 = vmatmul.mubr.bf16.gmra.mrb[0].mxu0 %v800
  %v1259 = vpop.f32.mrb[0].mxu0
  %v1260 = vadd.f32 %v220, %v1259
  %v1261 = vpop.f32.mrb[0].mxu0
  %v1262 = vpop.f32.mrb[0].mxu0
  %v1263 = vadd.f32 %v220, %v1262
  %v1264 = vpop.f32.mrb[0].mxu0
  %1265 = vmatprep.mubr.bf16.mxu0 0
  %1266 = vmatmul.mubr.bf16.gmra.mrb[0].mxu0 %v803
  %v1267 = vpop.f32.mrb[0].mxu0
  %v1268 = vadd.f32 %v220, %v1267
  %v1269 = vpop.f32.mrb[0].mxu0
  %v1270 = vpop.f32.mrb[0].mxu0
  %v1271 = vadd.f32 %v220, %v1270
  %v1272 = vpop.f32.mrb[0].mxu0
  %1273 = vmatprep.mubr.bf16.mxu0 0
  %1274 = vmatmul.mubr.bf16.gmra.mrb[0].mxu0 %v806
  %v1275 = vpop.f32.mrb[0].mxu0
  %v1276 = vadd.f32 %v220, %v1275
  %v1277 = vpop.f32.mrb[0].mxu0
  %v1278 = vpop.f32.mrb[0].mxu0
  %v1279 = vadd.f32 %v220, %v1278
  %v1280 = vpop.f32.mrb[0].mxu0
  %1281 = vmatprep.mubr.bf16.mxu0 0
  %1282 = vmatmul.mubr.bf16.gmra.mrb[0].mxu0 %v809
  %v1283 = vpop.f32.mrb[0].mxu0
  %v1284 = vadd.f32 %v220, %v1283
  %v1285 = vpop.f32.mrb[0].mxu0
  %v1286 = vpop.f32.mrb[0].mxu0
  %v1287 = vadd.f32 %v220, %v1286
  %v1288 = vpop.f32.mrb[0].mxu0
  %1289 = vmatprep.mubr.bf16.mxu0 0
  %1290 = vmatmul.mubr.bf16.gmra.mrb[0].mxu0 %v812
  %v1291 = vpop.f32.mrb[0].mxu0
  %v1292 = vadd.f32 %v220, %v1291
  %v1293 = vpop.f32.mrb[0].mxu0
  %v1294 = vpop.f32.mrb[0].mxu0
  %v1295 = vadd.f32 %v220, %v1294
  %v1296 = vpop.f32.mrb[0].mxu0
  %1297 = vmatprep.mubr.bf16.mxu0 0
  %1298 = vmatmul.mubr.bf16.gmra.mrb[0].mxu0 %v815
  %v1299 = vpop.f32.mrb[0].mxu0
  %v1300 = vadd.f32 %v220, %v1299
  %v1301 = vpop.f32.mrb[0].mxu0
  %v1302 = vpop.f32.mrb[0].mxu0
  %v1303 = vadd.f32 %v220, %v1302
  %v1304 = vpop.f32.mrb[0].mxu0
  %1305 = vmatprep.mubr.bf16.mxu0 0
  %1306 = vmatmul.mubr.bf16.gmra.mrb[0].mxu0 %v818
  %v1307 = vpop.f32.mrb[0].mxu0
  %v1308 = vadd.f32 %v220, %v1307
  %v1309 = vpop.f32.mrb[0].mxu0
  %v1310 = vpop.f32.mrb[0].mxu0
  %v1311 = vadd.f32 %v220, %v1310
  %v1312 = vpop.f32.mrb[0].mxu0
  %1313 = vmatprep.mubr.bf16.mxu0 0
  %1314 = vmatmul.mubr.bf16.gmra.mrb[0].mxu0 %v821
  %v1315 = vpop.f32.mrb[0].mxu0
  %v1316 = vadd.f32 %v220, %v1315
  %v1317 = vpop.f32.mrb[0].mxu0
  %v1318 = vpop.f32.mrb[0].mxu0
  %v1319 = vadd.f32 %v220, %v1318
  %v1320 = vpop.f32.mrb[0].mxu0
  %1321 = vmatprep.mubr.bf16.mxu0 0
  %1322 = vmatmul.mubr.bf16.gmra.mrb[0].mxu0 %v824
  %v1323 = vpop.f32.mrb[0].mxu0
  %v1324 = vadd.f32 %v220, %v1323
  %v1325 = vpop.f32.mrb[0].mxu0
  %v1326 = vpop.f32.mrb[0].mxu0
  %v1327 = vadd.f32 %v220, %v1326
  %v1328 = vpop.f32.mrb[0].mxu0
  %1329 = vmatprep.mubr.bf16.mxu0 0
  %1330 = vmatmul.mubr.bf16.gmra.mrb[0].mxu0 %v827
  %v1331 = vpop.f32.mrb[0].mxu0
  %v1332 = vadd.f32 %v220, %v1331
  %v1333 = vpop.f32.mrb[0].mxu0
  %v1334 = vpop.f32.mrb[0].mxu0
  %v1335 = vadd.f32 %v220, %v1334
  %v1336 = vpop.f32.mrb[0].mxu0
  %1337 = vmatprep.mubr.bf16.mxu0 0
  %1338 = vmatmul.mubr.bf16.gmra.mrb[0].mxu0 %v830
  %v1339 = vpop.f32.mrb[0].mxu0
  %v1340 = vadd.f32 %v220, %v1339
  %v1341 = vpop.f32.mrb[0].mxu0
  %v1342 = vpop.f32.mrb[0].mxu0
  %v1343 = vadd.f32 %v220, %v1342
  %v1344 = vpop.f32.mrb[0].mxu0
  %1345 = vmatprep.mubr.bf16.mxu0 0
  %1346 = vmatmul.mubr.bf16.gmra.mrb[0].mxu0 %v833
  %v1347 = vpop.f32.mrb[0].mxu0
  %v1348 = vadd.f32 %v220, %v1347
  %v1349 = vpop.f32.mrb[0].mxu0
  %v1350 = vpop.f32.mrb[0].mxu0
  %v1351 = vadd.f32 %v220, %v1350
  %v1352 = vpop.f32.mrb[0].mxu0
  %1353 = vmatprep.mubr.bf16.mxu0 0
  %1354 = vmatmul.mubr.bf16.gmra.mrb[0].mxu0 %v836
  %v1355 = vpop.f32.mrb[0].mxu0
  %v1356 = vadd.f32 %v220, %v1355
  %v1357 = vpop.f32.mrb[0].mxu0
  %v1358 = vpop.f32.mrb[0].mxu0
  %v1359 = vadd.f32 %v220, %v1358
  %v1360 = vpop.f32.mrb[0].mxu0
  %1361 = vmatprep.mubr.bf16.mxu0 0
  %1362 = vmatmul.mubr.bf16.gmra.mrb[0].mxu0 %v839
  %v1363 = vpop.f32.mrb[0].mxu0
  %v1364 = vadd.f32 %v220, %v1363
  %v1365 = vpop.f32.mrb[0].mxu0
  %v1366 = vpop.f32.mrb[0].mxu0
  %v1367 = vadd.f32 %v220, %v1366
  %v1368 = vpop.f32.mrb[0].mxu0
  %1369 = vmatprep.mubr.bf16.mxu0 0
  %1370 = vmatmul.mubr.bf16.gmra.mrb[0].mxu0 %v842
  %v1371 = vpop.f32.mrb[0].mxu0
  %v1372 = vadd.f32 %v220, %v1371
  %v1373 = vpop.f32.mrb[0].mxu0
  %v1374 = vpop.f32.mrb[0].mxu0
  %v1375 = vadd.f32 %v220, %v1374
  %v1376 = vpop.f32.mrb[0].mxu0
  %1377 = vmatprep.mubr.bf16.mxu0 0
  %1378 = vmatmul.mubr.bf16.gmra.mrb[0].mxu0 %v845
  %v1379 = vpop.f32.mrb[0].mxu0
  %v1380 = vadd.f32 %v220, %v1379
  %v1381 = vpop.f32.mrb[0].mxu0
  %v1382 = vpop.f32.mrb[0].mxu0
  %v1383 = vadd.f32 %v220, %v1382
  %v1384 = vpop.f32.mrb[0].mxu0
  %1385 = vmatprep.mubr.bf16.mxu0 0
  %1386 = vmatmul.mubr.bf16.gmra.mrb[0].mxu0 %v848
  %v1387 = vpop.f32.mrb[0].mxu0
  %v1388 = vadd.f32 %v220, %v1387
  %v1389 = vpop.f32.mrb[0].mxu0
  %v1390 = vpop.f32.mrb[0].mxu0
  %v1391 = vadd.f32 %v220, %v1390
  %v1392 = vpop.f32.mrb[0].mxu0
  %1393 = vmatprep.mubr.bf16.mxu0 0
  %1394 = vmatmul.mubr.bf16.gmra.mrb[0].mxu0 %v851
  %v1395 = vpop.f32.mrb[0].mxu0
  %v1396 = vadd.f32 %v220, %v1395
  %v1397 = vpop.f32.mrb[0].mxu0
  %v1398 = vpop.f32.mrb[0].mxu0
  %v1399 = vadd.f32 %v220, %v1398
  %v1400 = vpop.f32.mrb[0].mxu0
  %1401 = vmatprep.mubr.bf16.mxu0 0
  %1402 = vmatmul.mubr.bf16.gmra.mrb[0].mxu0 %v854
  %v1403 = vpop.f32.mrb[0].mxu0
  %v1404 = vadd.f32 %v220, %v1403
  %v1405 = vpop.f32.mrb[0].mxu0
  %v1406 = vpop.f32.mrb[0].mxu0
  %v1407 = vadd.f32 %v220, %v1406
  %v1408 = vpop.f32.mrb[0].mxu0
  %1409 = vmatprep.mubr.bf16.mxu0 0
  %1410 = vmatmul.mubr.bf16.gmra.mrb[0].mxu0 %v857
  %v1411 = vpop.f32.mrb[0].mxu0
  %v1412 = vadd.f32 %v220, %v1411
  %v1413 = vpop.f32.mrb[0].mxu0
  %v1414 = vpop.f32.mrb[0].mxu0
  %v1415 = vadd.f32 %v220, %v1414
  %v1416 = vpop.f32.mrb[0].mxu0
  %1417 = vmatprep.mubr.bf16.mxu0 0
  %1418 = vmatmul.mubr.bf16.gmra.mrb[0].mxu0 %v860
  %v1419 = vpop.f32.mrb[0].mxu0
  %v1420 = vadd.f32 %v220, %v1419
  %v1421 = vpop.f32.mrb[0].mxu0
  %v1422 = vpop.f32.mrb[0].mxu0
  %v1423 = vadd.f32 %v220, %v1422
  %v1424 = vpop.f32.mrb[0].mxu0
  %1425 = vmatprep.mubr.bf16.mxu0 0
  %1426 = vmatmul.mubr.bf16.gmra.mrb[0].mxu0 %v863
  %v1427 = vpop.f32.mrb[0].mxu0
  %v1428 = vadd.f32 %v220, %v1427
  %v1429 = vpop.f32.mrb[0].mxu0
  %v1430 = vpop.f32.mrb[0].mxu0
  %v1431 = vadd.f32 %v220, %v1430
  %v1432 = vpop.f32.mrb[0].mxu0
  %1433 = vmatprep.mubr.bf16.mxu0 0
  %1434 = vmatmul.mubr.bf16.gmra.mrb[0].mxu0 %v866
  %v1435 = vpop.f32.mrb[0].mxu0
  %v1436 = vadd.f32 %v220, %v1435
  %v1437 = vpop.f32.mrb[0].mxu0
  %v1438 = vpop.f32.mrb[0].mxu0
  %v1439 = vadd.f32 %v220, %v1438
  %v1440 = vpop.f32.mrb[0].mxu0
  %1441 = vmatprep.mubr.bf16.mxu0 0
  %1442 = vmatmul.mubr.bf16.gmra.mrb[0].mxu0 %v869
  %v1443 = vpop.f32.mrb[0].mxu0
  %v1444 = vadd.f32 %v220, %v1443
  %v1445 = vpop.f32.mrb[0].mxu0
  %v1446 = vpop.f32.mrb[0].mxu0
  %v1447 = vadd.f32 %v220, %v1446
  %v1448 = vpop.f32.mrb[0].mxu0
  %1449 = vmatprep.mubr.bf16.mxu0 0
  %1450 = vmatmul.mubr.bf16.gmra.mrb[0].mxu0 %v872
  %v1451 = vpop.f32.mrb[0].mxu0
  %v1452 = vadd.f32 %v220, %v1451
  %v1453 = vpop.f32.mrb[0].mxu0
  %v1454 = vpop.f32.mrb[0].mxu0
  %v1455 = vadd.f32 %v220, %v1454
  %v1456 = vpop.f32.mrb[0].mxu0
  %1457 = vmatprep.mubr.bf16.mxu0 0
  %1458 = vmatmul.mubr.bf16.gmra.mrb[0].mxu0 %v875
  %v1459 = vpop.f32.mrb[0].mxu0
  %v1460 = vadd.f32 %v220, %v1459
  %v1461 = vpop.f32.mrb[0].mxu0
  %v1462 = vpop.f32.mrb[0].mxu0
  %v1463 = vadd.f32 %v220, %v1462
  %v1464 = vpop.f32.mrb[0].mxu0
  %1465 = vmatprep.mubr.bf16.mxu0 0
  %1466 = vmatmul.mubr.bf16.gmra.mrb[0].mxu0 %v878
  %v1467 = vpop.f32.mrb[0].mxu0
  %v1468 = vadd.f32 %v220, %v1467
  %v1469 = vpop.f32.mrb[0].mxu0
  %v1470 = vpop.f32.mrb[0].mxu0
  %v1471 = vadd.f32 %v220, %v1470
  %v1472 = vpop.f32.mrb[0].mxu0
  %1473 = vmatprep.mubr.bf16.mxu0 0
  %1474 = vmatmul.mubr.bf16.gmra.mrb[0].mxu0 %v881
  %v1475 = vpop.f32.mrb[0].mxu0
  %v1476 = vadd.f32 %v220, %v1475
  %v1477 = vpop.f32.mrb[0].mxu0
  %v1478 = vpop.f32.mrb[0].mxu0
  %v1479 = vadd.f32 %v220, %v1478
  %v1480 = vpop.f32.mrb[0].mxu0
  %1481 = vmatprep.mubr.bf16.mxu0 0
  %1482 = vmatmul.mubr.bf16.gmra.mrb[0].mxu0 %v884
  %v1483 = vpop.f32.mrb[0].mxu0
  %v1484 = vadd.f32 %v220, %v1483
  %v1485 = vpop.f32.mrb[0].mxu0
  %v1486 = vpop.f32.mrb[0].mxu0
  %v1487 = vadd.f32 %v220, %v1486
  %v1488 = vpop.f32.mrb[0].mxu0
  %1489 = vmatprep.mubr.bf16.mxu0 0
  %1490 = vmatmul.mubr.bf16.gmra.mrb[0].mxu0 %v887
  %v1491 = vpop.f32.mrb[0].mxu0
  %v1492 = vadd.f32 %v220, %v1491
  %v1493 = vpop.f32.mrb[0].mxu0
  %v1494 = vpop.f32.mrb[0].mxu0
  %v1495 = vadd.f32 %v220, %v1494
  %v1496 = vpop.f32.mrb[0].mxu0
  %1497 = vmatprep.mubr.bf16.mxu0 0
  %1498 = vmatmul.mubr.bf16.gmra.mrb[0].mxu0 %v890
  %v1499 = vpop.f32.mrb[0].mxu0
  %v1500 = vadd.f32 %v220, %v1499
  %v1501 = vpop.f32.mrb[0].mxu0
  %v1502 = vpop.f32.mrb[0].mxu0
  %v1503 = vadd.f32 %v220, %v1502
  %v1504 = vpop.f32.mrb[0].mxu0
  %1505 = vmatprep.mubr.bf16.mxu0 0
  %1506 = vmatmul.mubr.bf16.gmra.mrb[0].mxu0 %v893
  %v1507 = vpop.f32.mrb[0].mxu0
  %v1508 = vadd.f32 %v220, %v1507
  %v1509 = vpop.f32.mrb[0].mxu0
  %v1510 = vpop.f32.mrb[0].mxu0
  %v1511 = vadd.f32 %v220, %v1510
  %v1512 = vpop.f32.mrb[0].mxu0
  %1513 = vmatprep.mubr.bf16.mxu0 0
  %1514 = vmatmul.mubr.bf16.gmra.mrb[0].mxu0 %v896
  %v1515 = vpop.f32.mrb[0].mxu0
  %v1516 = vadd.f32 %v220, %v1515
  %v1517 = vpop.f32.mrb[0].mxu0
  %v1518 = vpop.f32.mrb[0].mxu0
  %v1519 = vadd.f32 %v220, %v1518
  %v1520 = vpop.f32.mrb[0].mxu0
  %1521 = vmatprep.mubr.bf16.mxu0 0
  %1522 = vmatmul.mubr.bf16.gmra.mrb[0].mxu0 %v899
  %v1523 = vpop.f32.mrb[0].mxu0
  %v1524 = vadd.f32 %v220, %v1523
  %v1525 = vpop.f32.mrb[0].mxu0
  %v1526 = vpop.f32.mrb[0].mxu0
  %v1527 = vadd.f32 %v220, %v1526
  %v1528 = vpop.f32.mrb[0].mxu0
  %1529 = vmatprep.mubr.bf16.mxu0 0
  %1530 = vmatmul.mubr.bf16.gmra.mrb[0].mxu0 %v902
  %v1531 = vpop.f32.mrb[0].mxu0
  %v1532 = vadd.f32 %v220, %v1531
  %v1533 = vpop.f32.mrb[0].mxu0
  %v1534 = vpop.f32.mrb[0].mxu0
  %v1535 = vadd.f32 %v220, %v1534
  %v1536 = vpop.f32.mrb[0].mxu0
  %1537 = vmatprep.mubr.bf16.mxu0 0
  %1538 = vmatmul.mubr.bf16.gmra.mrb[0].mxu0 %v905
  %v1539 = vpop.f32.mrb[0].mxu0
  %v1540 = vadd.f32 %v220, %v1539
  %v1541 = vpop.f32.mrb[0].mxu0
  %v1542 = vpop.f32.mrb[0].mxu0
  %v1543 = vadd.f32 %v220, %v1542
  %v1544 = vpop.f32.mrb[0].mxu0
  %1545 = vmatprep.mubr.bf16.mxu0 0
  %1546 = vmatmul.mubr.bf16.gmra.mrb[0].mxu0 %v908
  %v1547 = vpop.f32.mrb[0].mxu0
  %v1548 = vadd.f32 %v220, %v1547
  %v1549 = vpop.f32.mrb[0].mxu0
  %v1550 = vpop.f32.mrb[0].mxu0
  %v1551 = vadd.f32 %v220, %v1550
  %v1552 = vpop.f32.mrb[0].mxu0
  %1553 = vmatprep.mubr.bf16.mxu0 0
  %1554 = vmatmul.mubr.bf16.gmra.mrb[0].mxu0 %v911
  %v1555 = vpop.f32.mrb[0].mxu0
  %v1556 = vadd.f32 %v220, %v1555
  %v1557 = vpop.f32.mrb[0].mxu0
  %v1558 = vpop.f32.mrb[0].mxu0
  %v1559 = vadd.f32 %v220, %v1558
  %v1560 = vpop.f32.mrb[0].mxu0
  %1561 = vmatprep.mubr.bf16.mxu0 0
  %1562 = vmatmul.mubr.bf16.gmra.mrb[0].mxu0 %v914
  %v1563 = vpop.f32.mrb[0].mxu0
  %v1564 = vadd.f32 %v220, %v1563
  %v1565 = vpop.f32.mrb[0].mxu0
  %v1566 = vpop.f32.mrb[0].mxu0
  %v1567 = vadd.f32 %v220, %v1566
  %v1568 = vpop.f32.mrb[0].mxu0
  %1569 = vmatprep.mubr.bf16.mxu0 0
  %1570 = vmatmul.mubr.bf16.gmra.mrb[0].mxu0 %v917
  %v1571 = vpop.f32.mrb[0].mxu0
  %v1572 = vadd.f32 %v220, %v1571
  %v1573 = vpop.f32.mrb[0].mxu0
  %v1574 = vpop.f32.mrb[0].mxu0
  %v1575 = vadd.f32 %v220, %v1574
  %v1576 = vpop.f32.mrb[0].mxu0
  %1577 = vmatprep.mubr.bf16.mxu0 0
  %1578 = vmatmul.mubr.bf16.gmra.mrb[0].mxu0 %v920
  %v1579 = vpop.f32.mrb[0].mxu0
  %v1580 = vadd.f32 %v220, %v1579
  %v1581 = vpop.f32.mrb[0].mxu0
  %v1582 = vpop.f32.mrb[0].mxu0
  %v1583 = vadd.f32 %v220, %v1582
  %v1584 = vpop.f32.mrb[0].mxu0
  %1585 = vmatprep.mubr.bf16.mxu0 0
  %1586 = vmatmul.mubr.bf16.gmra.mrb[0].mxu0 %v923
  %v1587 = vpop.f32.mrb[0].mxu0
  %v1588 = vadd.f32 %v220, %v1587
  %v1589 = vpop.f32.mrb[0].mxu0
  %v1590 = vpop.f32.mrb[0].mxu0
  %v1591 = vadd.f32 %v220, %v1590
  %v1592 = vpop.f32.mrb[0].mxu0
  %1593 = vmatprep.mubr.bf16.mxu0 0
  %1594 = vmatmul.mubr.bf16.gmra.mrb[0].mxu0 %v926
  %v1595 = vpop.f32.mrb[0].mxu0
  %v1596 = vadd.f32 %v220, %v1595
  %v1597 = vpop.f32.mrb[0].mxu0
  %v1598 = vpop.f32.mrb[0].mxu0
  %v1599 = vadd.f32 %v220, %v1598
  %v1600 = vpop.f32.mrb[0].mxu0
  %1601 = vmatprep.mubr.bf16.mxu0 0
  %1602 = vmatmul.mubr.bf16.gmra.mrb[0].mxu0 %v929
  %v1603 = vpop.f32.mrb[0].mxu0
  %v1604 = vadd.f32 %v220, %v1603
  %v1605 = vpop.f32.mrb[0].mxu0
  %v1606 = vpop.f32.mrb[0].mxu0
  %v1607 = vadd.f32 %v220, %v1606
  %v1608 = vpop.f32.mrb[0].mxu0
  %1609 = vmatprep.mubr.bf16.mxu0 0
  %1610 = vmatmul.mubr.bf16.gmra.mrb[0].mxu0 %v932
  %v1611 = vpop.f32.mrb[0].mxu0
  %v1612 = vadd.f32 %v220, %v1611
  %v1613 = vpop.f32.mrb[0].mxu0
  %v1614 = vpop.f32.mrb[0].mxu0
  %v1615 = vadd.f32 %v220, %v1614
  %v1616 = vpop.f32.mrb[0].mxu0
  %1617 = vmatprep.mubr.bf16.mxu0 0
  %1618 = vmatmul.mubr.bf16.gmra.mrb[0].mxu0 %v935
  %v1619 = vpop.f32.mrb[0].mxu0
  %v1620 = vadd.f32 %v220, %v1619
  %v1621 = vpop.f32.mrb[0].mxu0
  %v1622 = vpop.f32.mrb[0].mxu0
  %v1623 = vadd.f32 %v220, %v1622
  %v1624 = vpop.f32.mrb[0].mxu0
  %1625 = vmatprep.mubr.bf16.mxu0 0
  %1626 = vmatmul.mubr.bf16.gmra.mrb[0].mxu0 %v938
  %v1627 = vpop.f32.mrb[0].mxu0
  %v1628 = vadd.f32 %v220, %v1627
  %v1629 = vpop.f32.mrb[0].mxu0
  %v1630 = vpop.f32.mrb[0].mxu0
  %v1631 = vadd.f32 %v220, %v1630
  %v1632 = vpop.f32.mrb[0].mxu0
  %1633 = vmatprep.mubr.bf16.mxu0 0
  %1634 = vmatmul.mubr.bf16.gmra.mrb[0].mxu0 %v941
  %v1635 = vpop.f32.mrb[0].mxu0
  %v1636 = vadd.f32 %v220, %v1635
  %v1637 = vpop.f32.mrb[0].mxu0
  %v1638 = vpop.f32.mrb[0].mxu0
  %v1639 = vadd.f32 %v220, %v1638
  %v1640 = vpop.f32.mrb[0].mxu0
  %1641 = vmatprep.mubr.bf16.mxu0 0
  %1642 = vmatmul.mubr.bf16.gmra.mrb[0].mxu0 %v944
  %v1643 = vpop.f32.mrb[0].mxu0
  %v1644 = vadd.f32 %v220, %v1643
  %v1645 = vpop.f32.mrb[0].mxu0
  %v1646 = vpop.f32.mrb[0].mxu0
  %v1647 = vadd.f32 %v220, %v1646
  %v1648 = vpop.f32.mrb[0].mxu0
  %1649 = vmatprep.mubr.bf16.mxu0 0
  %1650 = vmatmul.mubr.bf16.gmra.mrb[0].mxu0 %v947
  %v1651 = vpop.f32.mrb[0].mxu0
  %v1652 = vadd.f32 %v220, %v1651
  %v1653 = vpop.f32.mrb[0].mxu0
  %v1654 = vpop.f32.mrb[0].mxu0
  %v1655 = vadd.f32 %v220, %v1654
  %v1656 = vpop.f32.mrb[0].mxu0
  %1657 = vmatprep.mubr.bf16.mxu0 0
  %1658 = vmatmul.mubr.bf16.gmra.mrb[0].mxu0 %v950
  %v1659 = vpop.f32.mrb[0].mxu0
  %v1660 = vadd.f32 %v220, %v1659
  %v1661 = vpop.f32.mrb[0].mxu0
  %v1662 = vpop.f32.mrb[0].mxu0
  %v1663 = vadd.f32 %v220, %v1662
  %v1664 = vpop.f32.mrb[0].mxu0
  %1665 = vmatprep.mubr.bf16.mxu0 0
  %1666 = vmatmul.mubr.bf16.gmra.mrb[0].mxu0 %v953
  %v1667 = vpop.f32.mrb[0].mxu0
  %v1668 = vadd.f32 %v220, %v1667
  %v1669 = vpop.f32.mrb[0].mxu0
  %v1670 = vpop.f32.mrb[0].mxu0
  %v1671 = vadd.f32 %v220, %v1670
  %v1672 = vpop.f32.mrb[0].mxu0
  %1673 = vmatprep.mubr.bf16.mxu0 0
  %1674 = vmatmul.mubr.bf16.gmra.mrb[0].mxu0 %v956
  %v1675 = vpop.f32.mrb[0].mxu0
  %v1676 = vadd.f32 %v220, %v1675
  %v1677 = vpop.f32.mrb[0].mxu0
  %v1678 = vpop.f32.mrb[0].mxu0
  %v1679 = vadd.f32 %v220, %v1678
  %v1680 = vpop.f32.mrb[0].mxu0
  %1681 = vmatprep.mubr.bf16.mxu0 0
  %1682 = vmatmul.mubr.bf16.gmra.mrb[0].mxu0 %v959
  %v1683 = vpop.f32.mrb[0].mxu0
  %v1684 = vadd.f32 %v220, %v1683
  %v1685 = vpop.f32.mrb[0].mxu0
  %v1686 = vpop.f32.mrb[0].mxu0
  %v1687 = vadd.f32 %v220, %v1686
  %v1688 = vpop.f32.mrb[0].mxu0
  %1689 = vmatprep.mubr.bf16.mxu0 0
  %1690 = vmatmul.mubr.bf16.gmra.mrb[0].mxu0 %v962
  %v1691 = vpop.f32.mrb[0].mxu0
  %v1692 = vadd.f32 %v220, %v1691
  %v1693 = vpop.f32.mrb[0].mxu0
  %v1694 = vpop.f32.mrb[0].mxu0
  %v1695 = vadd.f32 %v220, %v1694
  %v1696 = vpop.f32.mrb[0].mxu0
  %1697 = vmatprep.mubr.bf16.mxu0 0
  %1698 = vmatmul.mubr.bf16.gmra.mrb[0].mxu0 %v965
  %v1699 = vpop.f32.mrb[0].mxu0
  %v1700 = vadd.f32 %v220, %v1699
  %v1701 = vpop.f32.mrb[0].mxu0
  %v1702 = vpop.f32.mrb[0].mxu0
  %v1703 = vadd.f32 %v220, %v1702
  %v1704 = vpop.f32.mrb[0].mxu0
  %1705 = vmatprep.mubr.bf16.mxu0 0
  %1706 = vmatmul.mubr.bf16.gmra.mrb[0].mxu0 %v968
  %v1707 = vpop.f32.mrb[0].mxu0
  %v1708 = vadd.f32 %v220, %v1707
  %v1709 = vpop.f32.mrb[0].mxu0
  %v1710 = vpop.f32.mrb[0].mxu0
  %v1711 = vadd.f32 %v220, %v1710
  %v1712 = vpop.f32.mrb[0].mxu0
  %1713 = vmatprep.mubr.bf16.mxu0 0
  %1714 = vmatmul.mubr.bf16.gmra.mrb[0].mxu0 %v971
  %v1715 = vpop.f32.mrb[0].mxu0
  %v1716 = vadd.f32 %v220, %v1715
  %v1717 = vpop.f32.mrb[0].mxu0
  %v1718 = vpop.f32.mrb[0].mxu0
  %v1719 = vadd.f32 %v220, %v1718
  %v1720 = vpop.f32.mrb[0].mxu0
  %1721 = vmatprep.mubr.bf16.mxu0 0
  %1722 = vmatmul.mubr.bf16.gmra.mrb[0].mxu0 %v974
  %v1723 = vpop.f32.mrb[0].mxu0
  %v1724 = vadd.f32 %v220, %v1723
  %v1725 = vpop.f32.mrb[0].mxu0
  %v1726 = vpop.f32.mrb[0].mxu0
  %v1727 = vadd.f32 %v220, %v1726
  %v1728 = vpop.f32.mrb[0].mxu0
  %1729 = vmatprep.mubr.bf16.mxu0 0
  %1730 = vmatmul.mubr.bf16.gmra.mrb[0].mxu0 %v977
  %v1731 = vpop.f32.mrb[0].mxu0
  %v1732 = vadd.f32 %v220, %v1731
  %v1733 = vpop.f32.mrb[0].mxu0
  %v1734 = vpop.f32.mrb[0].mxu0
  %v1735 = vadd.f32 %v220, %v1734
  %v1736 = vpop.f32.mrb[0].mxu0
  %1737 = vmatprep.mubr.bf16.mxu0 0
  %1738 = vmatmul.mubr.bf16.gmra.mrb[0].mxu0 %v980
  %v1739 = vpop.f32.mrb[0].mxu0
  %v1740 = vadd.f32 %v220, %v1739
  %v1741 = vpop.f32.mrb[0].mxu0
  %v1742 = vpop.f32.mrb[0].mxu0
  %v1743 = vadd.f32 %v220, %v1742
  %v1744 = vpop.f32.mrb[0].mxu0
  %1745 = vmatprep.mubr.bf16.mxu0 0
  %1746 = vmatmul.mubr.bf16.gmra.mrb[0].mxu0 %v983
  %v1747 = vpop.f32.mrb[0].mxu0
  %v1748 = vadd.f32 %v220, %v1747
  %v1749 = vpop.f32.mrb[0].mxu0
  %v1750 = vpop.f32.mrb[0].mxu0
  %v1751 = vadd.f32 %v220, %v1750
  %v1752 = vpop.f32.mrb[0].mxu0
  %1753 = vmatprep.mubr.bf16.mxu0 0
  %1754 = vmatmul.mubr.bf16.gmra.mrb[0].mxu0 %v986
  %v1755 = vpop.f32.mrb[0].mxu0
  %v1756 = vadd.f32 %v220, %v1755
  %v1757 = vpop.f32.mrb[0].mxu0
  %v1758 = vpop.f32.mrb[0].mxu0
  %v1759 = vadd.f32 %v220, %v1758
  %v1760 = vpop.f32.mrb[0].mxu0
  %1761 = vmatprep.mubr.bf16.mxu0 0
  %1762 = vmatmul.mubr.bf16.gmra.mrb[0].mxu0 %v989
  %v1763 = vpop.f32.mrb[0].mxu0
  %v1764 = vadd.f32 %v220, %v1763
  %v1765 = vpop.f32.mrb[0].mxu0
  %v1766 = vpop.f32.mrb[0].mxu0
  %v1767 = vadd.f32 %v220, %v1766
  %v1768 = vpop.f32.mrb[0].mxu0
  %1769 = vmatprep.mubr.bf16.mxu0 0
  %1770 = vmatmul.mubr.bf16.gmra.mrb[0].mxu0 %v992
  %v1771 = vpop.f32.mrb[0].mxu0
  %v1772 = vadd.f32 %v220, %v1771
  %v1773 = vpop.f32.mrb[0].mxu0
  %v1774 = vpop.f32.mrb[0].mxu0
  %v1775 = vadd.f32 %v220, %v1774
  %v1776 = vpop.f32.mrb[0].mxu0
  %1777 = vmatprep.mubr.bf16.mxu0 0
  %1778 = vmatmul.mubr.bf16.gmra.mrb[0].mxu0 %v995
  %v1779 = vpop.f32.mrb[0].mxu0
  %v1780 = vadd.f32 %v220, %v1779
  %v1781 = vpop.f32.mrb[0].mxu0
  %v1782 = vpop.f32.mrb[0].mxu0
  %v1783 = vadd.f32 %v220, %v1782
  %v1784 = vpop.f32.mrb[0].mxu0
  %1785 = vmatprep.mubr.bf16.mxu0 0
  %1786 = vmatmul.mubr.bf16.gmra.mrb[0].mxu0 %v998
  %v1787 = vpop.f32.mrb[0].mxu0
  %v1788 = vadd.f32 %v220, %v1787
  %v1789 = vpop.f32.mrb[0].mxu0
  %v1790 = vpop.f32.mrb[0].mxu0
  %v1791 = vadd.f32 %v220, %v1790
  %v1792 = vpop.f32.mrb[0].mxu0
  %1793 = vmatprep.mubr.bf16.mxu0 0
  %1794 = vmatmul.mubr.bf16.gmra.mrb[0].mxu0 %v1001
  %v1795 = vpop.f32.mrb[0].mxu0
  %v1796 = vadd.f32 %v220, %v1795
  %v1797 = vpop.f32.mrb[0].mxu0
  %v1798 = vpop.f32.mrb[0].mxu0
  %v1799 = vadd.f32 %v220, %v1798
  %v1800 = vpop.f32.mrb[0].mxu0
  %1801 = vmatprep.mubr.bf16.mxu0 0
  %1802 = vmatmul.mubr.bf16.gmra.mrb[0].mxu0 %v1004
  %v1803 = vpop.f32.mrb[0].mxu0
  %v1804 = vadd.f32 %v220, %v1803
  %v1805 = vpop.f32.mrb[0].mxu0
  %v1806 = vpop.f32.mrb[0].mxu0
  %v1807 = vadd.f32 %v220, %v1806
  %v1808 = vpop.f32.mrb[0].mxu0
  %1809 = vmatprep.mubr.bf16.mxu0 0
  %1810 = vmatmul.mubr.bf16.gmra.mrb[0].mxu0 %v1007
  %v1811 = vpop.f32.mrb[0].mxu0
  %v1812 = vadd.f32 %v220, %v1811
  %v1813 = vpop.f32.mrb[0].mxu0
  %v1814 = vpop.f32.mrb[0].mxu0
  %v1815 = vadd.f32 %v220, %v1814
  %v1816 = vpop.f32.mrb[0].mxu0
  %1817 = vmatprep.mubr.bf16.mxu0 0
  %1818 = vmatmul.mubr.bf16.gmra.mrb[0].mxu0 %v1010
  %v1819 = vpop.f32.mrb[0].mxu0
  %v1820 = vadd.f32 %v220, %v1819
  %v1821 = vpop.f32.mrb[0].mxu0
  %v1822 = vpop.f32.mrb[0].mxu0
  %v1823 = vadd.f32 %v220, %v1822
  %v1824 = vpop.f32.mrb[0].mxu0
  %1825 = vmatprep.mubr.bf16.mxu0 0
  %1826 = vmatmul.mubr.bf16.gmra.mrb[0].mxu0 %v1013
  %v1827 = vpop.f32.mrb[0].mxu0
  %v1828 = vadd.f32 %v220, %v1827
  %v1829 = vpop.f32.mrb[0].mxu0
  %v1830 = vpop.f32.mrb[0].mxu0
  %v1831 = vadd.f32 %v220, %v1830
  %v1832 = vpop.f32.mrb[0].mxu0
  %1833 = vmatprep.mubr.bf16.mxu0 0
  %1834 = vmatmul.mubr.bf16.gmra.mrb[0].mxu0 %v1016
  %v1835 = vpop.f32.mrb[0].mxu0
  %v1836 = vadd.f32 %v220, %v1835
  %v1837 = vpop.f32.mrb[0].mxu0
  %v1838 = vpop.f32.mrb[0].mxu0
  %v1839 = vadd.f32 %v220, %v1838
  %v1840 = vpop.f32.mrb[0].mxu0
  %1841 = vdwg.mxu0
  %v1842 = vmax.f32 %v1060, 0.0
  %v1843 = vmax.f32 %v1063, 0.0
  %v1844 = vmax.f32 %v1068, 0.0
  %v1845 = vmax.f32 %v1071, 0.0
  %v1846 = vmax.f32 %v1076, 0.0
  %v1847 = vmax.f32 %v1079, 0.0
  %v1848 = vmax.f32 %v1084, 0.0
  %v1849 = vmax.f32 %v1087, 0.0
  %v1850 = vmax.f32 %v1092, 0.0
  %v1851 = vmax.f32 %v1095, 0.0
  %v1852 = vmax.f32 %v1100, 0.0
  %v1853 = vmax.f32 %v1103, 0.0
  %v1854 = vmax.f32 %v1108, 0.0
  %v1855 = vmax.f32 %v1111, 0.0
  %v1856 = vmax.f32 %v1116, 0.0
  %v1857 = vmax.f32 %v1119, 0.0
  %v1858 = vmax.f32 %v1124, 0.0
  %v1859 = vmax.f32 %v1127, 0.0
  %v1860 = vmax.f32 %v1132, 0.0
  %v1861 = vmax.f32 %v1135, 0.0
  %v1862 = vmax.f32 %v1140, 0.0
  %v1863 = vmax.f32 %v1143, 0.0
  %v1864 = vmax.f32 %v1148, 0.0
  %v1865 = vmax.f32 %v1151, 0.0
  %v1866 = vmax.f32 %v1156, 0.0
  %v1867 = vmax.f32 %v1159, 0.0
  %v1868 = vmax.f32 %v1164, 0.0
  %v1869 = vmax.f32 %v1167, 0.0
  %v1870 = vmax.f32 %v1172, 0.0
  %v1871 = vmax.f32 %v1175, 0.0
  %v1872 = vmax.f32 %v1180, 0.0
  %v1873 = vmax.f32 %v1183, 0.0
  %v1874 = vmax.f32 %v1188, 0.0
  %v1875 = vmax.f32 %v1191, 0.0
  %v1876 = vmax.f32 %v1196, 0.0
  %v1877 = vmax.f32 %v1199, 0.0
  %v1878 = vmax.f32 %v1204, 0.0
  %v1879 = vmax.f32 %v1207, 0.0
  %v1880 = vmax.f32 %v1212, 0.0
  %v1881 = vmax.f32 %v1215, 0.0
  %v1882 = vmax.f32 %v1220, 0.0
  %v1883 = vmax.f32 %v1223, 0.0
  %v1884 = vmax.f32 %v1228, 0.0
  %v1885 = vmax.f32 %v1231, 0.0
  %v1886 = vmax.f32 %v1236, 0.0
  %v1887 = vmax.f32 %v1239, 0.0
  %v1888 = vmax.f32 %v1244, 0.0
  %v1889 = vmax.f32 %v1247, 0.0
  %v1890 = vmax.f32 %v1252, 0.0
  %v1891 = vmax.f32 %v1255, 0.0
  %v1892 = vmax.f32 %v1260, 0.0
  %v1893 = vmax.f32 %v1263, 0.0
  %v1894 = vmax.f32 %v1268, 0.0
  %v1895 = vmax.f32 %v1271, 0.0
  %v1896 = vmax.f32 %v1276, 0.0
  %v1897 = vmax.f32 %v1279, 0.0
  %v1898 = vmax.f32 %v1284, 0.0
  %v1899 = vmax.f32 %v1287, 0.0
  %v1900 = vmax.f32 %v1292, 0.0
  %v1901 = vmax.f32 %v1295, 0.0
  %v1902 = vmax.f32 %v1300, 0.0
  %v1903 = vmax.f32 %v1303, 0.0
  %v1904 = vmax.f32 %v1308, 0.0
  %v1905 = vmax.f32 %v1311, 0.0
  %v1906 = vmax.f32 %v1316, 0.0
  %v1907 = vmax.f32 %v1319, 0.0
  %v1908 = vmax.f32 %v1324, 0.0
  %v1909 = vmax.f32 %v1327, 0.0
  %v1910 = vmax.f32 %v1332, 0.0
  %v1911 = vmax.f32 %v1335, 0.0
  %v1912 = vmax.f32 %v1340, 0.0
  %v1913 = vmax.f32 %v1343, 0.0
  %v1914 = vmax.f32 %v1348, 0.0
  %v1915 = vmax.f32 %v1351, 0.0
  %v1916 = vmax.f32 %v1356, 0.0
  %v1917 = vmax.f32 %v1359, 0.0
  %v1918 = vmax.f32 %v1364, 0.0
  %v1919 = vmax.f32 %v1367, 0.0
  %v1920 = vmax.f32 %v1372, 0.0
  %v1921 = vmax.f32 %v1375, 0.0
  %v1922 = vmax.f32 %v1380, 0.0
  %v1923 = vmax.f32 %v1383, 0.0
  %v1924 = vmax.f32 %v1388, 0.0
  %v1925 = vmax.f32 %v1391, 0.0
  %v1926 = vmax.f32 %v1396, 0.0
  %v1927 = vmax.f32 %v1399, 0.0
  %v1928 = vmax.f32 %v1404, 0.0
  %v1929 = vmax.f32 %v1407, 0.0
  %v1930 = vmax.f32 %v1412, 0.0
  %v1931 = vmax.f32 %v1415, 0.0
  %v1932 = vmax.f32 %v1420, 0.0
  %v1933 = vmax.f32 %v1423, 0.0
  %v1934 = vmax.f32 %v1428, 0.0
  %v1935 = vmax.f32 %v1431, 0.0
  %v1936 = vmax.f32 %v1436, 0.0
  %v1937 = vmax.f32 %v1439, 0.0
  %v1938 = vmax.f32 %v1444, 0.0
  %v1939 = vmax.f32 %v1447, 0.0
  %v1940 = vmax.f32 %v1452, 0.0
  %v1941 = vmax.f32 %v1455, 0.0
  %v1942 = vmax.f32 %v1460, 0.0
  %v1943 = vmax.f32 %v1463, 0.0
  %v1944 = vmax.f32 %v1468, 0.0
  %v1945 = vmax.f32 %v1471, 0.0
  %v1946 = vmax.f32 %v1476, 0.0
  %v1947 = vmax.f32 %v1479, 0.0
  %v1948 = vmax.f32 %v1484, 0.0
  %v1949 = vmax.f32 %v1487, 0.0
  %v1950 = vmax.f32 %v1492, 0.0
  %v1951 = vmax.f32 %v1495, 0.0
  %v1952 = vmax.f32 %v1500, 0.0
  %v1953 = vmax.f32 %v1503, 0.0
  %v1954 = vmax.f32 %v1508, 0.0
  %v1955 = vmax.f32 %v1511, 0.0
  %v1956 = vmax.f32 %v1516, 0.0
  %v1957 = vmax.f32 %v1519, 0.0
  %v1958 = vmax.f32 %v1524, 0.0
  %v1959 = vmax.f32 %v1527, 0.0
  %v1960 = vmax.f32 %v1532, 0.0
  %v1961 = vmax.f32 %v1535, 0.0
  %v1962 = vmax.f32 %v1540, 0.0
  %v1963 = vmax.f32 %v1543, 0.0
  %v1964 = vmax.f32 %v1548, 0.0
  %v1965 = vmax.f32 %v1551, 0.0
  %v1966 = vmax.f32 %v1556, 0.0
  %v1967 = vmax.f32 %v1559, 0.0
  %v1968 = vmax.f32 %v1564, 0.0
  %v1969 = vmax.f32 %v1567, 0.0
  %v1970 = vmax.f32 %v1572, 0.0
  %v1971 = vmax.f32 %v1575, 0.0
  %v1972 = vmax.f32 %v1580, 0.0
  %v1973 = vmax.f32 %v1583, 0.0
  %v1974 = vmax.f32 %v1588, 0.0
  %v1975 = vmax.f32 %v1591, 0.0
  %v1976 = vmax.f32 %v1596, 0.0
  %v1977 = vmax.f32 %v1599, 0.0
  %v1978 = vmax.f32 %v1604, 0.0
  %v1979 = vmax.f32 %v1607, 0.0
  %v1980 = vmax.f32 %v1612, 0.0
  %v1981 = vmax.f32 %v1615, 0.0
  %v1982 = vmax.f32 %v1620, 0.0
  %v1983 = vmax.f32 %v1623, 0.0
  %v1984 = vmax.f32 %v1628, 0.0
  %v1985 = vmax.f32 %v1631, 0.0
  %v1986 = vmax.f32 %v1636, 0.0
  %v1987 = vmax.f32 %v1639, 0.0
  %v1988 = vmax.f32 %v1644, 0.0
  %v1989 = vmax.f32 %v1647, 0.0
  %v1990 = vmax.f32 %v1652, 0.0
  %v1991 = vmax.f32 %v1655, 0.0
  %v1992 = vmax.f32 %v1660, 0.0
  %v1993 = vmax.f32 %v1663, 0.0
  %v1994 = vmax.f32 %v1668, 0.0
  %v1995 = vmax.f32 %v1671, 0.0
  %v1996 = vmax.f32 %v1676, 0.0
  %v1997 = vmax.f32 %v1679, 0.0
  %v1998 = vmax.f32 %v1684, 0.0
  %v1999 = vmax.f32 %v1687, 0.0
  %v2000 = vmax.f32 %v1692, 0.0
  %v2001 = vmax.f32 %v1695, 0.0
  %v2002 = vmax.f32 %v1700, 0.0
  %v2003 = vmax.f32 %v1703, 0.0
  %v2004 = vmax.f32 %v1708, 0.0
  %v2005 = vmax.f32 %v1711, 0.0
  %v2006 = vmax.f32 %v1716, 0.0
  %v2007 = vmax.f32 %v1719, 0.0
  %v2008 = vmax.f32 %v1724, 0.0
  %v2009 = vmax.f32 %v1727, 0.0
  %v2010 = vmax.f32 %v1732, 0.0
  %v2011 = vmax.f32 %v1735, 0.0
  %v2012 = vmax.f32 %v1740, 0.0
  %v2013 = vmax.f32 %v1743, 0.0
  %v2014 = vmax.f32 %v1748, 0.0
  %v2015 = vmax.f32 %v1751, 0.0
  %v2016 = vmax.f32 %v1756, 0.0
  %v2017 = vmax.f32 %v1759, 0.0
  %v2018 = vmax.f32 %v1764, 0.0
  %v2019 = vmax.f32 %v1767, 0.0
  %v2020 = vmax.f32 %v1772, 0.0
  %v2021 = vmax.f32 %v1775, 0.0
  %v2022 = vmax.f32 %v1780, 0.0
  %v2023 = vmax.f32 %v1783, 0.0
  %v2024 = vmax.f32 %v1788, 0.0
  %v2025 = vmax.f32 %v1791, 0.0
  %v2026 = vmax.f32 %v1796, 0.0
  %v2027 = vmax.f32 %v1799, 0.0
  %v2028 = vmax.f32 %v1804, 0.0
  %v2029 = vmax.f32 %v1807, 0.0
  %v2030 = vmax.f32 %v1812, 0.0
  %v2031 = vmax.f32 %v1815, 0.0
  %v2032 = vmax.f32 %v1820, 0.0
  %v2033 = vmax.f32 %v1823, 0.0
  %v2034 = vmax.f32 %v1828, 0.0
  %v2035 = vmax.f32 %v1831, 0.0
  %v2036 = vmax.f32 %v1836, 0.0
  %v2037 = vmax.f32 %v1839, 0.0
  %v2038 = vadd.f32 %v1842, %v1891
  %v2039 = vadd.f32 %v1843, %v1892
  %v2040 = vadd.f32 %v1844, %v1893
  %v2041 = vadd.f32 %v1845, %v1894
  %v2042 = vadd.f32 %v1846, %v1895
  %v2043 = vadd.f32 %v1847, %v1896
  %v2044 = vadd.f32 %v1848, %v1897
  %v2045 = vadd.f32 %v1849, %v1898
  %v2046 = vadd.f32 %v1850, %v1899
  %v2047 = vadd.f32 %v1851, %v1900
  %v2048 = vadd.f32 %v1852, %v1901
  %v2049 = vadd.f32 %v1853, %v1902
  %v2050 = vadd.f32 %v1854, %v1903
  %v2051 = vadd.f32 %v1855, %v1904
  %v2052 = vadd.f32 %v1856, %v1905
  %v2053 = vadd.f32 %v1857, %v1906
  %v2054 = vadd.f32 %v1858, %v1907
  %v2055 = vadd.f32 %v1859, %v1908
  %v2056 = vadd.f32 %v1860, %v1909
  %v2057 = vadd.f32 %v1861, %v1910
  %v2058 = vadd.f32 %v1862, %v1911
  %v2059 = vadd.f32 %v1863, %v1912
  %v2060 = vadd.f32 %v1864, %v1913
  %v2061 = vadd.f32 %v1865, %v1914
  %v2062 = vadd.f32 %v1866, %v1915
  %v2063 = vadd.f32 %v1867, %v1916
  %v2064 = vadd.f32 %v1868, %v1917
  %v2065 = vadd.f32 %v1869, %v1918
  %v2066 = vadd.f32 %v1870, %v1919
  %v2067 = vadd.f32 %v1871, %v1920
  %v2068 = vadd.f32 %v1872, %v1921
  %v2069 = vadd.f32 %v1873, %v1922
  %v2070 = vadd.f32 %v1874, %v1923
  %v2071 = vadd.f32 %v1875, %v1924
  %v2072 = vadd.f32 %v1876, %v1925
  %v2073 = vadd.f32 %v1877, %v1926
  %v2074 = vadd.f32 %v1878, %v1927
  %v2075 = vadd.f32 %v1879, %v1928
  %v2076 = vadd.f32 %v1880, %v1929
  %v2077 = vadd.f32 %v1881, %v1930
  %v2078 = vadd.f32 %v1882, %v1931
  %v2079 = vadd.f32 %v1883, %v1932
  %v2080 = vadd.f32 %v1884, %v1933
  %v2081 = vadd.f32 %v1885, %v1934
  %v2082 = vadd.f32 %v1886, %v1935
  %v2083 = vadd.f32 %v1887, %v1936
  %v2084 = vadd.f32 %v1888, %v1937
  %v2085 = vadd.f32 %v1889, %v1938
  %v2086 = vadd.f32 %v1890, %v1939
  %v2087 = vadd.f32 %v2038, %v1940
  %v2088 = vadd.f32 %v2039, %v1941
  %v2089 = vadd.f32 %v2040, %v1942
  %v2090 = vadd.f32 %v2041, %v1943
  %v2091 = vadd.f32 %v2042, %v1944
  %v2092 = vadd.f32 %v2043, %v1945
  %v2093 = vadd.f32 %v2044, %v1946
  %v2094 = vadd.f32 %v2045, %v1947
  %v2095 = vadd.f32 %v2046, %v1948
  %v2096 = vadd.f32 %v2047, %v1949
  %v2097 = vadd.f32 %v2048, %v1950
  %v2098 = vadd.f32 %v2049, %v1951
  %v2099 = vadd.f32 %v2050, %v1952
  %v2100 = vadd.f32 %v2051, %v1953
  %v2101 = vadd.f32 %v2052, %v1954
  %v2102 = vadd.f32 %v2053, %v1955
  %v2103 = vadd.f32 %v2054, %v1956
  %v2104 = vadd.f32 %v2055, %v1957
  %v2105 = vadd.f32 %v2056, %v1958
  %v2106 = vadd.f32 %v2057, %v1959
  %v2107 = vadd.f32 %v2058, %v1960
  %v2108 = vadd.f32 %v2059, %v1961
  %v2109 = vadd.f32 %v2060, %v1962
  %v2110 = vadd.f32 %v2061, %v1963
  %v2111 = vadd.f32 %v2062, %v1964
  %v2112 = vadd.f32 %v2063, %v1965
  %v2113 = vadd.f32 %v2064, %v1966
  %v2114 = vadd.f32 %v2065, %v1967
  %v2115 = vadd.f32 %v2066, %v1968
  %v2116 = vadd.f32 %v2067, %v1969
  %v2117 = vadd.f32 %v2068, %v1970
  %v2118 = vadd.f32 %v2069, %v1971
  %v2119 = vadd.f32 %v2070, %v1972
  %v2120 = vadd.f32 %v2071, %v1973
  %v2121 = vadd.f32 %v2072, %v1974
  %v2122 = vadd.f32 %v2073, %v1975
  %v2123 = vadd.f32 %v2074, %v1976
  %v2124 = vadd.f32 %v2075, %v1977
  %v2125 = vadd.f32 %v2076, %v1978
  %v2126 = vadd.f32 %v2077, %v1979
  %v2127 = vadd.f32 %v2078, %v1980
  %v2128 = vadd.f32 %v2079, %v1981
  %v2129 = vadd.f32 %v2080, %v1982
  %v2130 = vadd.f32 %v2081, %v1983
  %v2131 = vadd.f32 %v2082, %v1984
  %v2132 = vadd.f32 %v2083, %v1985
  %v2133 = vadd.f32 %v2084, %v1986
  %v2134 = vadd.f32 %v2085, %v1987
  %v2135 = vadd.f32 %v2086, %v1988
  %v2136 = vadd.f32 %v2087, %v1989
  %v2137 = vadd.f32 %v2088, %v1990
  %v2138 = vadd.f32 %v2089, %v1991
  %v2139 = vadd.f32 %v2090, %v1992
  %v2140 = vadd.f32 %v2091, %v1993
  %v2141 = vadd.f32 %v2092, %v1994
  %v2142 = vadd.f32 %v2093, %v1995
  %v2143 = vadd.f32 %v2094, %v1996
  %v2144 = vadd.f32 %v2095, %v1997
  %v2145 = vadd.f32 %v2096, %v1998
  %v2146 = vadd.f32 %v2097, %v1999
  %v2147 = vadd.f32 %v2098, %v2000
  %v2148 = vadd.f32 %v2099, %v2001
  %v2149 = vadd.f32 %v2100, %v2002
  %v2150 = vadd.f32 %v2101, %v2003
  %v2151 = vadd.f32 %v2102, %v2004
  %v2152 = vadd.f32 %v2103, %v2005
  %v2153 = vadd.f32 %v2104, %v2006
  %v2154 = vadd.f32 %v2105, %v2007
  %v2155 = vadd.f32 %v2106, %v2008
  %v2156 = vadd.f32 %v2107, %v2009
  %v2157 = vadd.f32 %v2108, %v2010
  %v2158 = vadd.f32 %v2109, %v2011
  %v2159 = vadd.f32 %v2110, %v2012
  %v2160 = vadd.f32 %v2111, %v2013
  %v2161 = vadd.f32 %v2112, %v2014
  %v2162 = vadd.f32 %v2113, %v2015
  %v2163 = vadd.f32 %v2114, %v2016
  %v2164 = vadd.f32 %v2115, %v2017
  %v2165 = vadd.f32 %v2116, %v2018
  %v2166 = vadd.f32 %v2117, %v2019
  %v2167 = vadd.f32 %v2118, %v2020
  %v2168 = vadd.f32 %v2119, %v2021
  %v2169 = vadd.f32 %v2120, %v2022
  %v2170 = vadd.f32 %v2121, %v2023
  %v2171 = vadd.f32 %v2122, %v2024
  %v2172 = vadd.f32 %v2123, %v2025
  %v2173 = vadd.f32 %v2124, %v2026
  %v2174 = vadd.f32 %v2125, %v2027
  %v2175 = vadd.f32 %v2126, %v2028
  %v2176 = vadd.f32 %v2127, %v2029
  %v2177 = vadd.f32 %v2128, %v2030
  %v2178 = vadd.f32 %v2129, %v2031
  %v2179 = vadd.f32 %v2130, %v2032
  %v2180 = vadd.f32 %v2131, %v2033
  %v2181 = vadd.f32 %v2132, %v2034
  %v2182 = vadd.f32 %v2133, %v2035
  %v2183 = vadd.f32 %v2134, %v2036
  %v2184 = vadd.f32 %v2135, %v2037
  %v2185 = vpack.c.bf16 %v2137, %v2136
  %v2186 = vpack.c.bf16 %v2139, %v2138
  %v2187 = vpack.c.bf16 %v2141, %v2140
  %v2188 = vpack.c.bf16 %v2143, %v2142
  %v2189 = vpack.c.bf16 %v2145, %v2144
  %v2190 = vpack.c.bf16 %v2147, %v2146
  %v2191 = vpack.c.bf16 %v2149, %v2148
  %v2192 = vpack.c.bf16 %v2151, %v2150
  %v2193 = vpack.c.bf16 %v2153, %v2152
  %v2194 = vpack.c.bf16 %v2155, %v2154
  %v2195 = vpack.c.bf16 %v2157, %v2156
  %v2196 = vpack.c.bf16 %v2159, %v2158
  %v2197 = vpack.c.bf16 %v2161, %v2160
  %v2198 = vpack.c.bf16 %v2163, %v2162
  %v2199 = vpack.c.bf16 %v2165, %v2164
  %v2200 = vpack.c.bf16 %v2167, %v2166
  %v2201 = vpack.c.bf16 %v2169, %v2168
  %v2202 = vpack.c.bf16 %v2171, %v2170
  %v2203 = vpack.c.bf16 %v2173, %v2172
  %v2204 = vpack.c.bf16 %v2175, %v2174
  %v2205 = vpack.c.bf16 %v2177, %v2176
  %v2206 = vpack.c.bf16 %v2179, %v2178
  %v2207 = vpack.c.bf16 %v2181, %v2180
  %v2208 = vpack.c.bf16 %v2183, %v2182
  %v2209 = vpack.c.bf16 %v2184, %v2184
  %v2235 = vunpack.c.l.b16 %v2185
  %v2236 = vunpack.c.h.b16 %v2185
  %v2237 = vunpack.c.l.b16 %v2186
  %v2238 = vunpack.c.h.b16 %v2186
  %v2239 = vunpack.c.l.b16 %v2187
  %v2240 = vunpack.c.h.b16 %v2187
  %v2241 = vunpack.c.l.b16 %v2188
  %v2242 = vunpack.c.h.b16 %v2188
  %v2243 = vunpack.c.l.b16 %v2189
  %v2244 = vunpack.c.h.b16 %v2189
  %v2245 = vunpack.c.l.b16 %v2190
  %v2246 = vunpack.c.h.b16 %v2190
  %v2247 = vunpack.c.l.b16 %v2191
  %v2248 = vunpack.c.h.b16 %v2191
  %v2249 = vunpack.c.l.b16 %v2192
  %v2250 = vunpack.c.h.b16 %v2192
  %v2251 = vunpack.c.l.b16 %v2193
  %v2252 = vunpack.c.h.b16 %v2193
  %v2253 = vunpack.c.l.b16 %v2194
  %v2254 = vunpack.c.h.b16 %v2194
  %v2255 = vunpack.c.l.b16 %v2195
  %v2256 = vunpack.c.h.b16 %v2195
  %v2257 = vunpack.c.l.b16 %v2196
  %v2258 = vunpack.c.h.b16 %v2196
  %v2259 = vunpack.c.l.b16 %v2197
  %v2260 = vunpack.c.h.b16 %v2197
  %v2261 = vunpack.c.l.b16 %v2198
  %v2262 = vunpack.c.h.b16 %v2198
  %v2263 = vunpack.c.l.b16 %v2199
  %v2264 = vunpack.c.h.b16 %v2199
  %v2265 = vunpack.c.l.b16 %v2200
  %v2266 = vunpack.c.h.b16 %v2200
  %v2267 = vunpack.c.l.b16 %v2201
  %v2268 = vunpack.c.h.b16 %v2201
  %v2269 = vunpack.c.l.b16 %v2202
  %v2270 = vunpack.c.h.b16 %v2202
  %v2271 = vunpack.c.l.b16 %v2203
  %v2272 = vunpack.c.h.b16 %v2203
  %v2273 = vunpack.c.l.b16 %v2204
  %v2274 = vunpack.c.h.b16 %v2204
  %v2275 = vunpack.c.l.b16 %v2205
  %v2276 = vunpack.c.h.b16 %v2205
  %v2277 = vunpack.c.l.b16 %v2206
  %v2278 = vunpack.c.h.b16 %v2206
  %v2279 = vunpack.c.l.b16 %v2207
  %v2280 = vunpack.c.h.b16 %v2207
  %v2281 = vunpack.c.l.b16 %v2208
  %v2282 = vunpack.c.h.b16 %v2208
  %v2283 = vunpack.c.l.b16 %v2209
  %v2284 = vpack.c.b16 %v2235, %v2235
  %v2285 = vpack.c.b16 %v2236, %v2236
  %v2286 = vpack.c.b16 %v2237, %v2237
  %v2287 = vpack.c.b16 %v2238, %v2238
  %v2288 = vpack.c.b16 %v2239, %v2239
  %v2289 = vpack.c.b16 %v2240, %v2240
  %v2290 = vpack.c.b16 %v2241, %v2241
  %v2291 = vpack.c.b16 %v2242, %v2242
  %v2292 = vpack.c.b16 %v2243, %v2243
  %v2293 = vpack.c.b16 %v2244, %v2244
  %v2294 = vpack.c.b16 %v2245, %v2245
  %v2295 = vpack.c.b16 %v2246, %v2246
  %v2296 = vpack.c.b16 %v2247, %v2247
  %v2297 = vpack.c.b16 %v2248, %v2248
  %v2298 = vpack.c.b16 %v2249, %v2249
  %v2299 = vpack.c.b16 %v2250, %v2250
  %v2300 = vpack.c.b16 %v2251, %v2251
  %v2301 = vpack.c.b16 %v2252, %v2252
  %v2302 = vpack.c.b16 %v2253, %v2253
  %v2303 = vpack.c.b16 %v2254, %v2254
  %v2304 = vpack.c.b16 %v2255, %v2255
  %v2305 = vpack.c.b16 %v2256, %v2256
  %v2306 = vpack.c.b16 %v2257, %v2257
  %v2307 = vpack.c.b16 %v2258, %v2258
  %v2308 = vpack.c.b16 %v2259, %v2259
  %v2309 = vpack.c.b16 %v2260, %v2260
  %v2310 = vpack.c.b16 %v2261, %v2261
  %v2311 = vpack.c.b16 %v2262, %v2262
  %v2312 = vpack.c.b16 %v2263, %v2263
  %v2313 = vpack.c.b16 %v2264, %v2264
  %v2314 = vpack.c.b16 %v2265, %v2265
  %v2315 = vpack.c.b16 %v2266, %v2266
  %v2316 = vpack.c.b16 %v2267, %v2267
  %v2317 = vpack.c.b16 %v2268, %v2268
  %v2318 = vpack.c.b16 %v2269, %v2269
  %v2319 = vpack.c.b16 %v2270, %v2270
  %v2320 = vpack.c.b16 %v2271, %v2271
  %v2321 = vpack.c.b16 %v2272, %v2272
  %v2322 = vpack.c.b16 %v2273, %v2273
  %v2323 = vpack.c.b16 %v2274, %v2274
  %v2324 = vpack.c.b16 %v2275, %v2275
  %v2325 = vpack.c.b16 %v2276, %v2276
  %v2326 = vpack.c.b16 %v2277, %v2277
  %v2327 = vpack.c.b16 %v2278, %v2278
  %v2328 = vpack.c.b16 %v2279, %v2279
  %v2329 = vpack.c.b16 %v2280, %v2280
  %v2330 = vpack.c.b16 %v2281, %v2281
  %v2331 = vpack.c.b16 %v2282, %v2282
  %v2332 = vpack.c.b16 %v2283, %v2283
  %vm2382 = vcmask 44032
  %2383 = vst.msk [vmem:[%s3] sm:$0xf] %vm2382, %v2284
  %2384 = vst.msk [vmem:[%s3 + $0x4] sm:$0xf] %vm2382, %v2285
  %2385 = vst.msk [vmem:[%s3 + $0x8] sm:$0xf] %vm2382, %v2286
  %2386 = vst.msk [vmem:[%s3 + $0xc] sm:$0xf] %vm2382, %v2287
  %2387 = vst.msk [vmem:[%s3 + $0x10] sm:$0xf] %vm2382, %v2288
  %2388 = vst.msk [vmem:[%s3 + $0x14] sm:$0xf] %vm2382, %v2289
  %2389 = vst.msk [vmem:[%s3 + $0x18] sm:$0xf] %vm2382, %v2290
  %2390 = vst.msk [vmem:[%s3 + $0x1c] sm:$0xf] %vm2382, %v2291
  %2391 = vst.msk [vmem:[%s3 + $0x20] sm:$0xf] %vm2382, %v2292
  %2392 = vst.msk [vmem:[%s3 + $0x24] sm:$0xf] %vm2382, %v2293
  %2393 = vst.msk [vmem:[%s3 + $0x28] sm:$0xf] %vm2382, %v2294
  %2394 = vst.msk [vmem:[%s3 + $0x2c] sm:$0xf] %vm2382, %v2295
  %2395 = vst.msk [vmem:[%s3 + $0x30] sm:$0xf] %vm2382, %v2296
  %2396 = vst.msk [vmem:[%s3 + $0x34] sm:$0xf] %vm2382, %v2297
  %2397 = vst.msk [vmem:[%s3 + $0x38] sm:$0xf] %vm2382, %v2298
  %2398 = vst.msk [vmem:[%s3 + $0x3c] sm:$0xf] %vm2382, %v2299
  %2399 = vst.msk [vmem:[%s3 + $0x40] sm:$0xf] %vm2382, %v2300
  %2400 = vst.msk [vmem:[%s3 + $0x44] sm:$0xf] %vm2382, %v2301
  %2401 = vst.msk [vmem:[%s3 + $0x48] sm:$0xf] %vm2382, %v2302
  %2402 = vst.msk [vmem:[%s3 + $0x4c] sm:$0xf] %vm2382, %v2303
  %2403 = vst.msk [vmem:[%s3 + $0x50] sm:$0xf] %vm2382, %v2304
  %2404 = vst.msk [vmem:[%s3 + $0x54] sm:$0xf] %vm2382, %v2305
  %2405 = vst.msk [vmem:[%s3 + $0x58] sm:$0xf] %vm2382, %v2306
  %2406 = vst.msk [vmem:[%s3 + $0x5c] sm:$0xf] %vm2382, %v2307
  %2407 = vst.msk [vmem:[%s3 + $0x60] sm:$0xf] %vm2382, %v2308
  %2408 = vst.msk [vmem:[%s3 + $0x64] sm:$0xf] %vm2382, %v2309
  %2409 = vst.msk [vmem:[%s3 + $0x68] sm:$0xf] %vm2382, %v2310
  %2410 = vst.msk [vmem:[%s3 + $0x6c] sm:$0xf] %vm2382, %v2311
  %2411 = vst.msk [vmem:[%s3 + $0x70] sm:$0xf] %vm2382, %v2312
  %2412 = vst.msk [vmem:[%s3 + $0x74] sm:$0xf] %vm2382, %v2313
  %2413 = vst.msk [vmem:[%s3 + $0x78] sm:$0xf] %vm2382, %v2314
  %2414 = vst.msk [vmem:[%s3 + $0x7c] sm:$0xf] %vm2382, %v2315
  %2415 = vst.msk [vmem:[%s3 + $0x80] sm:$0xf] %vm2382, %v2316
  %2416 = vst.msk [vmem:[%s3 + $0x84] sm:$0xf] %vm2382, %v2317
  %2417 = vst.msk [vmem:[%s3 + $0x88] sm:$0xf] %vm2382, %v2318
  %2418 = vst.msk [vmem:[%s3 + $0x8c] sm:$0xf] %vm2382, %v2319
  %2419 = vst.msk [vmem:[%s3 + $0x90] sm:$0xf] %vm2382, %v2320
  %2420 = vst.msk [vmem:[%s3 + $0x94] sm:$0xf] %vm2382, %v2321
  %2421 = vst.msk [vmem:[%s3 + $0x98] sm:$0xf] %vm2382, %v2322
  %2422 = vst.msk [vmem:[%s3 + $0x9c] sm:$0xf] %vm2382, %v2323
  %2423 = vst.msk [vmem:[%s3 + $0xa0] sm:$0xf] %vm2382, %v2324
  %2424 = vst.msk [vmem:[%s3 + $0xa4] sm:$0xf] %vm2382, %v2325
  %2425 = vst.msk [vmem:[%s3 + $0xa8] sm:$0xf] %vm2382, %v2326
  %2426 = vst.msk [vmem:[%s3 + $0xac] sm:$0xf] %vm2382, %v2327
  %2427 = vst.msk [vmem:[%s3 + $0xb0] sm:$0xf] %vm2382, %v2328
  %2428 = vst.msk [vmem:[%s3 + $0xb4] sm:$0xf] %vm2382, %v2329
  %2429 = vst.msk [vmem:[%s3 + $0xb8] sm:$0xf] %vm2382, %v2330
  %2430 = vst.msk [vmem:[%s3 + $0xbc] sm:$0xf] %vm2382, %v2331
  %2431 = vst.msk [vmem:[%s3 + $0xc0] sm:$0xf] %vm2382, %v2332
  // Predicated region
  $region14: #{lenet5_forward.2} parent=0 // pred_check
    _
  $region15: #{lenet5_forward.2} parent=0 // pred_check_branch
    %2433 = sbr.rel (0) target = $region17
  $region16: #{lenet5_forward.2} parent=0 // pred_region
    _
  $region17: #{lenet5_forward.2} parent=0 // pred_fallthru
    _
  // Predicated region
  $region18: #{lenet5_forward.2} parent=0 // pred_check
    _
  $region19: #{lenet5_forward.2} parent=0 // pred_check_branch
    %2435 = sbr.rel (0) target = $region21
  $region20: #{lenet5_forward.2} parent=0 // pred_region
    _
  $region21: #{lenet5_forward.2} parent=0 // pred_fallthru
    _

// kernel: lenet5_forward.3
$region0: #{lenet5_forward.3}
  #allocation0 [shape = 'u32[]', space=smem, size = 0x4, offset = 0x4, fixed_abs, tag = 'smem constant byte address 0x4 - core index']
  #allocation1 [shape = 'u32[144,128]{1,0:T(1,128)}', space=vmem, size = 0x12000, scoped, tag = 'internal scratch']
  %s0 = inlined_call_operand.vmem [shape: bf16[800,150], index: 0, kind: input, shape index: {}]
  %s1 = inlined_call_operand.vmem [shape: bf16[150,16], index: 1, kind: input, shape index: {}]
  %s2 = inlined_call_operand.vmem [shape: f32[1,16], index: 2, kind: input, shape index: {}]
  %s3 = inlined_call_operand.vmem [shape: bf16[400,128], index: 3, kind: input, shape index: {}]
  %s4 = inlined_call_operand.vmem [shape: f32[1,128], index: 4, kind: input, shape index: {}]
  %s5 = inlined_call_operand.vmem [shape: bf16[128,128], index: 5, kind: input, shape index: {}]
  %s6 = inlined_call_operand.vmem [shape: f32[1,128], index: 6, kind: input, shape index: {}]
  %s7 = inlined_call_operand.vmem [shape: bf16[128,10], index: 7, kind: input, shape index: {}]
  %s8 = inlined_call_operand.vmem [shape: f32[1,10], index: 8, kind: input, shape index: {}]
  %s9 = inlined_call_operand.hbm [shape: f32[2,10], index: 9, kind: output, shape index: {}]
  %s10 = sld [smem:[#allocation0]]
  $region46: #{lenet5_forward.3} parent=0
    _
  %s12 = ssub.s32 1, %s10
  %s13 = scalar_select 0, %s12, %s10
  $region1: #{lenet5_forward.3} parent=0
    #allocation2 [shape = 'u8[1024]{0}', space=vmem, size = 0x400, scoped, tag = 'output window, operand 0, single buffered']
    #allocation3 [shape = 's32[1]{0}', space=sflag, size = 0x4, scoped, tag = 'scoped memory for lenet5_forward.3']
    %14 = vsyncpa [#allocation3], 0
    // Predicated region
    $region2: #{lenet5_forward.3} parent=1 // pred_check
      _
    $region3: #{lenet5_forward.3} parent=1 // pred_check_branch
      %16 = sbr.rel (0) target = $region5
    $region4: #{lenet5_forward.3} parent=1 // pred_region
      _
    $region5: #{lenet5_forward.3} parent=1 // pred_fallthru
      _
    // Predicated region
    $region6: #{lenet5_forward.3} parent=1 // pred_check
      _
    $region7: #{lenet5_forward.3} parent=1 // pred_check_branch
      %18 = sbr.rel (0) target = $region9
    $region8: #{lenet5_forward.3} parent=1 // pred_region
      _
    $region9: #{lenet5_forward.3} parent=1 // pred_fallthru
      _
    // Predicated region
    $region10: #{lenet5_forward.3} parent=1 // pred_check
      _
    $region11: #{lenet5_forward.3} parent=1 // pred_check_branch
      %20 = sbr.rel (0) target = $region13
    $region12: #{lenet5_forward.3} parent=1 // pred_region
      _
    $region13: #{lenet5_forward.3} parent=1 // pred_fallthru
      _
    // Predicated region
    $region14: #{lenet5_forward.3} parent=1 // pred_check
      _
    $region15: #{lenet5_forward.3} parent=1 // pred_check_branch
      %22 = sbr.rel (0) target = $region17
    $region16: #{lenet5_forward.3} parent=1 // pred_region
      _
    $region17: #{lenet5_forward.3} parent=1 // pred_fallthru
      _
    // Predicated region
    $region18: #{lenet5_forward.3} parent=1 // pred_check
      _
    $region19: #{lenet5_forward.3} parent=1 // pred_check_branch
      %24 = sbr.rel (0) target = $region21
    $region20: #{lenet5_forward.3} parent=1 // pred_region
      _
    $region21: #{lenet5_forward.3} parent=1 // pred_fallthru
      _
    // Predicated region
    $region22: #{lenet5_forward.3} parent=1 // pred_check
      _
    $region23: #{lenet5_forward.3} parent=1 // pred_check_branch
      %26 = sbr.rel (0) target = $region25
    $region24: #{lenet5_forward.3} parent=1 // pred_region
      _
    $region25: #{lenet5_forward.3} parent=1 // pred_fallthru
      _
    // Predicated region
    $region26: #{lenet5_forward.3} parent=1 // pred_check
      _
    $region27: #{lenet5_forward.3} parent=1 // pred_check_branch
      %28 = sbr.rel (0) target = $region29
    $region28: #{lenet5_forward.3} parent=1 // pred_region
      _
    $region29: #{lenet5_forward.3} parent=1 // pred_fallthru
      _
    // Predicated region
    $region30: #{lenet5_forward.3} parent=1 // pred_check
      _
    $region31: #{lenet5_forward.3} parent=1 // pred_check_branch
      %30 = sbr.rel (0) target = $region33
    $region32: #{lenet5_forward.3} parent=1 // pred_region
      _
    $region33: #{lenet5_forward.3} parent=1 // pred_fallthru
      _
    // Predicated region
    $region34: #{lenet5_forward.3} parent=1 // pred_check
      _
    $region35: #{lenet5_forward.3} parent=1 // pred_check_branch
      %32 = sbr.rel (0) target = $region37
    $region36: #{lenet5_forward.3} parent=1 // pred_region
      _
    $region37: #{lenet5_forward.3} parent=1 // pred_fallthru
      _
    %v34 = vld [vmem:[%s0] sm:$0xff]
    %v35 = vld [vmem:[%s0 + $0x8] sm:$0xff]
    %v36 = vld [vmem:[%s0 + $0x10] sm:$0xff]
    %v37 = vld [vmem:[%s0 + $0x18] sm:$0xff]
    %v38 = vld [vmem:[%s0 + $0x20] sm:$0xff]
    %v39 = vld [vmem:[%s0 + $0x28] sm:$0xff]
    %v40 = vld [vmem:[%s0 + $0x30] sm:$0xff]
    %v41 = vld [vmem:[%s0 + $0x38] sm:$0xff]
    %v42 = vld [vmem:[%s0 + $0x40] sm:$0xff]
    %v43 = vld [vmem:[%s0 + $0x48] sm:$0xff]
    %v44 = vld [vmem:[%s0 + $0x50] sm:$0xff]
    %v45 = vld [vmem:[%s0 + $0x58] sm:$0xff]
    %v46 = vld [vmem:[%s0 + $0x60] sm:$0xff]
    %v47 = vld [vmem:[%s0 + $0x68] sm:$0xff]
    %v48 = vld [vmem:[%s0 + $0x70] sm:$0xff]
    %v49 = vld [vmem:[%s0 + $0x78] sm:$0xff]
    %v50 = vld [vmem:[%s0 + $0x80] sm:$0xff]
    %v51 = vld [vmem:[%s0 + $0x88] sm:$0xff]
    %v52 = vld [vmem:[%s0 + $0x90] sm:$0xff]
    %v53 = vld [vmem:[%s0 + $0x98] sm:$0xff]
    %v54 = vld [vmem:[%s0 + $0xa0] sm:$0xff]
    %v55 = vld [vmem:[%s0 + $0xa8] sm:$0xff]
    %v56 = vld [vmem:[%s0 + $0xb0] sm:$0xff]
    %v57 = vld [vmem:[%s0 + $0xb8] sm:$0xff]
    %v58 = vld [vmem:[%s0 + $0xc0] sm:$0xff]
    %v59 = vld [vmem:[%s0 + $0xc8] sm:$0xff]
    %v60 = vld [vmem:[%s0 + $0xd0] sm:$0xff]
    %v61 = vld [vmem:[%s0 + $0xd8] sm:$0xff]
    %v62 = vld [vmem:[%s0 + $0xe0] sm:$0xff]
    %v63 = vld [vmem:[%s0 + $0xe8] sm:$0xff]
    %v64 = vld [vmem:[%s0 + $0xf0] sm:$0xff]
    %v65 = vld [vmem:[%s0 + $0xf8] sm:$0xff]
    %v66 = vld [vmem:[%s0 + $0x100] sm:$0xff]
    %v67 = vld [vmem:[%s0 + $0x108] sm:$0xff]
    %v68 = vld [vmem:[%s0 + $0x110] sm:$0xff]
    %v69 = vld [vmem:[%s0 + $0x118] sm:$0xff]
    %v70 = vld [vmem:[%s0 + $0x120] sm:$0xff]
    %v71 = vld [vmem:[%s0 + $0x128] sm:$0xff]
    %v72 = vld [vmem:[%s0 + $0x130] sm:$0xff]
    %v73 = vld [vmem:[%s0 + $0x138] sm:$0xff]
    %v74 = vld [vmem:[%s0 + $0x140] sm:$0xff]
    %v75 = vld [vmem:[%s0 + $0x148] sm:$0xff]
    %v76 = vld [vmem:[%s0 + $0x150] sm:$0xff]
    %v77 = vld [vmem:[%s0 + $0x158] sm:$0xff]
    %v78 = vld [vmem:[%s0 + $0x160] sm:$0xff]
    %v79 = vld [vmem:[%s0 + $0x168] sm:$0xff]
    %v80 = vld [vmem:[%s0 + $0x170] sm:$0xff]
    %v81 = vld [vmem:[%s0 + $0x178] sm:$0xff]
    %v82 = vld [vmem:[%s0 + $0x180] sm:$0xff]
    %v83 = vld [vmem:[%s0 + $0x188] sm:$0xff]
    %v84 = vld [vmem:[%s0 + $0x190] sm:$0xff]
    %v85 = vld [vmem:[%s0 + $0x198] sm:$0xff]
    %v86 = vld [vmem:[%s0 + $0x1a0] sm:$0xff]
    %v87 = vld [vmem:[%s0 + $0x1a8] sm:$0xff]
    %v88 = vld [vmem:[%s0 + $0x1b0] sm:$0xff]
    %v89 = vld [vmem:[%s0 + $0x1b8] sm:$0xff]
    %v90 = vld [vmem:[%s0 + $0x1c0] sm:$0xff]
    %v91 = vld [vmem:[%s0 + $0x1c8] sm:$0xff]
    %v92 = vld [vmem:[%s0 + $0x1d0] sm:$0xff]
    %v93 = vld [vmem:[%s0 + $0x1d8] sm:$0xff]
    %v94 = vld [vmem:[%s0 + $0x1e0] sm:$0xff]
    %v95 = vld [vmem:[%s0 + $0x1e8] sm:$0xff]
    %v96 = vld [vmem:[%s0 + $0x1f0] sm:$0xff]
    %v97 = vld [vmem:[%s0 + $0x1f8] sm:$0xff]
    %v98 = vld [vmem:[%s0 + $0x200] sm:$0xff]
    %v99 = vld [vmem:[%s0 + $0x208] sm:$0xff]
    %v100 = vld [vmem:[%s0 + $0x210] sm:$0xff]
    %v101 = vld [vmem:[%s0 + $0x218] sm:$0xff]
    %v102 = vld [vmem:[%s0 + $0x220] sm:$0xff]
    %v103 = vld [vmem:[%s0 + $0x228] sm:$0xff]
    %v104 = vld [vmem:[%s0 + $0x230] sm:$0xff]
    %v105 = vld [vmem:[%s0 + $0x238] sm:$0xff]
    %v106 = vld [vmem:[%s0 + $0x240] sm:$0xff]
    %v107 = vld [vmem:[%s0 + $0x248] sm:$0xff]
    %v108 = vld [vmem:[%s0 + $0x250] sm:$0xff]
    %v109 = vld [vmem:[%s0 + $0x258] sm:$0xff]
    %v110 = vld [vmem:[%s0 + $0x260] sm:$0xff]
    %v111 = vld [vmem:[%s0 + $0x268] sm:$0xff]
    %v112 = vld [vmem:[%s0 + $0x270] sm:$0xff]
    %v113 = vld [vmem:[%s0 + $0x278] sm:$0xff]
    %v114 = vld [vmem:[%s0 + $0x280] sm:$0xff]
    %v115 = vld [vmem:[%s0 + $0x288] sm:$0xff]
    %v116 = vld [vmem:[%s0 + $0x290] sm:$0xff]
    %v117 = vld [vmem:[%s0 + $0x298] sm:$0xff]
    %v118 = vld [vmem:[%s0 + $0x2a0] sm:$0xff]
    %v119 = vld [vmem:[%s0 + $0x2a8] sm:$0xff]
    %v120 = vld [vmem:[%s0 + $0x2b0] sm:$0xff]
    %v121 = vld [vmem:[%s0 + $0x2b8] sm:$0xff]
    %v122 = vld [vmem:[%s0 + $0x2c0] sm:$0xff]
    %v123 = vld [vmem:[%s0 + $0x2c8] sm:$0xff]
    %v124 = vld [vmem:[%s0 + $0x2d0] sm:$0xff]
    %v125 = vld [vmem:[%s0 + $0x2d8] sm:$0xff]
    %v126 = vld [vmem:[%s0 + $0x2e0] sm:$0xff]
    %v127 = vld [vmem:[%s0 + $0x2e8] sm:$0xff]
    %v128 = vld [vmem:[%s0 + $0x2f0] sm:$0xff]
    %v129 = vld [vmem:[%s0 + $0x2f8] sm:$0xff]
    %v130 = vld [vmem:[%s0 + $0x300] sm:$0xff]
    %v131 = vld [vmem:[%s0 + $0x308] sm:$0xff]
    %v132 = vld [vmem:[%s0 + $0x310] sm:$0xff]
    %v133 = vld [vmem:[%s0 + $0x318] sm:$0xff]
    %v134 = vld [vmem:[%s1] sm:$0xf]
    %v135 = vld [vmem:[%s1 + $0x4] sm:$0xf]
    %v136 = vld [vmem:[%s1 + $0x8] sm:$0xf]
    %v137 = vld [vmem:[%s1 + $0xc] sm:$0xf]
    %v138 = vld [vmem:[%s1 + $0x10] sm:$0xf]
    %v139 = vld [vmem:[%s1 + $0x14] sm:$0xf]
    %v140 = vld [vmem:[%s1 + $0x18] sm:$0xf]
    %v141 = vld [vmem:[%s1 + $0x1c] sm:$0xf]
    %v142 = vld [vmem:[%s1 + $0x20] sm:$0xf]
    %v143 = vld [vmem:[%s1 + $0x24] sm:$0xf]
    %v144 = vld [vmem:[%s1 + $0x28] sm:$0xf]
    %v145 = vld [vmem:[%s1 + $0x2c] sm:$0xf]
    %v146 = vld [vmem:[%s1 + $0x30] sm:$0xf]
    %v147 = vld [vmem:[%s1 + $0x34] sm:$0xf]
    %v148 = vld [vmem:[%s1 + $0x38] sm:$0xf]
    %v149 = vld [vmem:[%s1 + $0x3c] sm:$0xf]
    %v150 = vld [vmem:[%s1 + $0x40] sm:$0xf]
    %v151 = vld [vmem:[%s1 + $0x44] sm:$0xf]
    %v152 = vld [vmem:[%s1 + $0x48] sm:$0x7]
    %v153 = vld [vmem:[%s2] sm:$0x1]
    %v155 = vlaneseq
    %v156 = vshrl.u32 %v155, 7
    %v157 = vsub.s32 0, %v156
    %v158 = vrot.slane %v153, %v157
    %v260 = vunpack.c.l.b16 %v34
    %v261 = vunpack.c.h.b16 %v34
    %v262 = vunpack.c.l.b16 %v35
    %v263 = vunpack.c.h.b16 %v35
    %v264 = vunpack.c.l.b16 %v36
    %v265 = vunpack.c.h.b16 %v36
    %v266 = vunpack.c.l.b16 %v37
    %v267 = vunpack.c.h.b16 %v37
    %v268 = vunpack.c.l.b16 %v38
    %v269 = vunpack.c.h.b16 %v38
    %v270 = vunpack.c.l.b16 %v39
    %v271 = vunpack.c.h.b16 %v39
    %v272 = vunpack.c.l.b16 %v40
    %v273 = vunpack.c.h.b16 %v40
    %v274 = vunpack.c.l.b16 %v41
    %v275 = vunpack.c.h.b16 %v41
    %v276 = vunpack.c.l.b16 %v42
    %v277 = vunpack.c.h.b16 %v42
    %v278 = vunpack.c.l.b16 %v43
    %v279 = vunpack.c.h.b16 %v43
    %v280 = vunpack.c.l.b16 %v44
    %v281 = vunpack.c.h.b16 %v44
    %v282 = vunpack.c.l.b16 %v45
    %v283 = vunpack.c.h.b16 %v45
    %v284 = vunpack.c.l.b16 %v46
    %v285 = vunpack.c.h.b16 %v46
    %v286 = vunpack.c.l.b16 %v47
    %v287 = vunpack.c.h.b16 %v47
    %v288 = vunpack.c.l.b16 %v48
    %v289 = vunpack.c.h.b16 %v48
    %v290 = vunpack.c.l.b16 %v49
    %v291 = vunpack.c.h.b16 %v49
    %v292 = vunpack.c.l.b16 %v50
    %v293 = vunpack.c.h.b16 %v50
    %v294 = vunpack.c.l.b16 %v51
    %v295 = vunpack.c.h.b16 %v51
    %v296 = vunpack.c.l.b16 %v52
    %v297 = vunpack.c.h.b16 %v52
    %v298 = vunpack.c.l.b16 %v53
    %v299 = vunpack.c.h.b16 %v53
    %v300 = vunpack.c.l.b16 %v54
    %v301 = vunpack.c.h.b16 %v54
    %v302 = vunpack.c.l.b16 %v55
    %v303 = vunpack.c.h.b16 %v55
    %v304 = vunpack.c.l.b16 %v56
    %v305 = vunpack.c.h.b16 %v56
    %v306 = vunpack.c.l.b16 %v57
    %v307 = vunpack.c.h.b16 %v57
    %v308 = vunpack.c.l.b16 %v58
    %v309 = vunpack.c.h.b16 %v58
    %v310 = vunpack.c.l.b16 %v59
    %v311 = vunpack.c.h.b16 %v59
    %v312 = vunpack.c.l.b16 %v60
    %v313 = vunpack.c.h.b16 %v60
    %v314 = vunpack.c.l.b16 %v61
    %v315 = vunpack.c.h.b16 %v61
    %v316 = vunpack.c.l.b16 %v62
    %v317 = vunpack.c.h.b16 %v62
    %v318 = vunpack.c.l.b16 %v63
    %v319 = vunpack.c.h.b16 %v63
    %v320 = vunpack.c.l.b16 %v64
    %v321 = vunpack.c.h.b16 %v64
    %v322 = vunpack.c.l.b16 %v65
    %v323 = vunpack.c.h.b16 %v65
    %v324 = vunpack.c.l.b16 %v66
    %v325 = vunpack.c.h.b16 %v66
    %v326 = vunpack.c.l.b16 %v67
    %v327 = vunpack.c.h.b16 %v67
    %v328 = vunpack.c.l.b16 %v68
    %v329 = vunpack.c.h.b16 %v68
    %v330 = vunpack.c.l.b16 %v69
    %v331 = vunpack.c.h.b16 %v69
    %v332 = vunpack.c.l.b16 %v70
    %v333 = vunpack.c.h.b16 %v70
    %v334 = vunpack.c.l.b16 %v71
    %v335 = vunpack.c.h.b16 %v71
    %v336 = vunpack.c.l.b16 %v72
    %v337 = vunpack.c.h.b16 %v72
    %v338 = vunpack.c.l.b16 %v73
    %v339 = vunpack.c.h.b16 %v73
    %v340 = vunpack.c.l.b16 %v74
    %v341 = vunpack.c.h.b16 %v74
    %v342 = vunpack.c.l.b16 %v75
    %v343 = vunpack.c.h.b16 %v75
    %v344 = vunpack.c.l.b16 %v76
    %v345 = vunpack.c.h.b16 %v76
    %v346 = vunpack.c.l.b16 %v77
    %v347 = vunpack.c.h.b16 %v77
    %v348 = vunpack.c.l.b16 %v78
    %v349 = vunpack.c.h.b16 %v78
    %v350 = vunpack.c.l.b16 %v79
    %v351 = vunpack.c.h.b16 %v79
    %v352 = vunpack.c.l.b16 %v80
    %v353 = vunpack.c.h.b16 %v80
    %v354 = vunpack.c.l.b16 %v81
    %v355 = vunpack.c.h.b16 %v81
    %v356 = vunpack.c.l.b16 %v82
    %v357 = vunpack.c.h.b16 %v82
    %v358 = vunpack.c.l.b16 %v83
    %v359 = vunpack.c.h.b16 %v83
    %v360 = vunpack.c.l.b16 %v84
    %v361 = vunpack.c.h.b16 %v84
    %v362 = vunpack.c.l.b16 %v85
    %v363 = vunpack.c.h.b16 %v85
    %v364 = vunpack.c.l.b16 %v86
    %v365 = vunpack.c.h.b16 %v86
    %v366 = vunpack.c.l.b16 %v87
    %v367 = vunpack.c.h.b16 %v87
    %v368 = vunpack.c.l.b16 %v88
    %v369 = vunpack.c.h.b16 %v88
    %v370 = vunpack.c.l.b16 %v89
    %v371 = vunpack.c.h.b16 %v89
    %v372 = vunpack.c.l.b16 %v90
    %v373 = vunpack.c.h.b16 %v90
    %v374 = vunpack.c.l.b16 %v91
    %v375 = vunpack.c.h.b16 %v91
    %v376 = vunpack.c.l.b16 %v92
    %v377 = vunpack.c.h.b16 %v92
    %v378 = vunpack.c.l.b16 %v93
    %v379 = vunpack.c.h.b16 %v93
    %v380 = vunpack.c.l.b16 %v94
    %v381 = vunpack.c.h.b16 %v94
    %v382 = vunpack.c.l.b16 %v95
    %v383 = vunpack.c.h.b16 %v95
    %v384 = vunpack.c.l.b16 %v96
    %v385 = vunpack.c.h.b16 %v96
    %v386 = vunpack.c.l.b16 %v97
    %v387 = vunpack.c.h.b16 %v97
    %v388 = vunpack.c.l.b16 %v98
    %v389 = vunpack.c.h.b16 %v98
    %v390 = vunpack.c.l.b16 %v99
    %v391 = vunpack.c.h.b16 %v99
    %v392 = vunpack.c.l.b16 %v100
    %v393 = vunpack.c.h.b16 %v100
    %v394 = vunpack.c.l.b16 %v101
    %v395 = vunpack.c.h.b16 %v101
    %v396 = vunpack.c.l.b16 %v102
    %v397 = vunpack.c.h.b16 %v102
    %v398 = vunpack.c.l.b16 %v103
    %v399 = vunpack.c.h.b16 %v103
    %v400 = vunpack.c.l.b16 %v104
    %v401 = vunpack.c.h.b16 %v104
    %v402 = vunpack.c.l.b16 %v105
    %v403 = vunpack.c.h.b16 %v105
    %v404 = vunpack.c.l.b16 %v106
    %v405 = vunpack.c.h.b16 %v106
    %v406 = vunpack.c.l.b16 %v107
    %v407 = vunpack.c.h.b16 %v107
    %v408 = vunpack.c.l.b16 %v108
    %v409 = vunpack.c.h.b16 %v108
    %v410 = vunpack.c.l.b16 %v109
    %v411 = vunpack.c.h.b16 %v109
    %v412 = vunpack.c.l.b16 %v110
    %v413 = vunpack.c.h.b16 %v110
    %v414 = vunpack.c.l.b16 %v111
    %v415 = vunpack.c.h.b16 %v111
    %v416 = vunpack.c.l.b16 %v112
    %v417 = vunpack.c.h.b16 %v112
    %v418 = vunpack.c.l.b16 %v113
    %v419 = vunpack.c.h.b16 %v113
    %v420 = vunpack.c.l.b16 %v114
    %v421 = vunpack.c.h.b16 %v114
    %v422 = vunpack.c.l.b16 %v115
    %v423 = vunpack.c.h.b16 %v115
    %v424 = vunpack.c.l.b16 %v116
    %v425 = vunpack.c.h.b16 %v116
    %v426 = vunpack.c.l.b16 %v117
    %v427 = vunpack.c.h.b16 %v117
    %v428 = vunpack.c.l.b16 %v118
    %v429 = vunpack.c.h.b16 %v118
    %v430 = vunpack.c.l.b16 %v119
    %v431 = vunpack.c.h.b16 %v119
    %v432 = vunpack.c.l.b16 %v120
    %v433 = vunpack.c.h.b16 %v120
    %v434 = vunpack.c.l.b16 %v121
    %v435 = vunpack.c.h.b16 %v121
    %v436 = vunpack.c.l.b16 %v122
    %v437 = vunpack.c.h.b16 %v122
    %v438 = vunpack.c.l.b16 %v123
    %v439 = vunpack.c.h.b16 %v123
    %v440 = vunpack.c.l.b16 %v124
    %v441 = vunpack.c.h.b16 %v124
    %v442 = vunpack.c.l.b16 %v125
    %v443 = vunpack.c.h.b16 %v125
    %v444 = vunpack.c.l.b16 %v126
    %v445 = vunpack.c.h.b16 %v126
    %v446 = vunpack.c.l.b16 %v127
    %v447 = vunpack.c.h.b16 %v127
    %v448 = vunpack.c.l.b16 %v128
    %v449 = vunpack.c.h.b16 %v128
    %v450 = vunpack.c.l.b16 %v129
    %v451 = vunpack.c.h.b16 %v129
    %v452 = vunpack.c.l.b16 %v130
    %v453 = vunpack.c.h.b16 %v130
    %v454 = vunpack.c.l.b16 %v131
    %v455 = vunpack.c.h.b16 %v131
    %v456 = vunpack.c.l.b16 %v132
    %v457 = vunpack.c.h.b16 %v132
    %v458 = vunpack.c.l.b16 %v133
    %v459 = vunpack.c.h.b16 %v133
    %v460 = vpack.c.b16 %v262, %v260
    %v461 = vpack.c.b16 %v263, %v261
    %v462 = vpack.c.b16 %v266, %v264
    %v463 = vpack.c.b16 %v267, %v265
    %v464 = vpack.c.b16 %v270, %v268
    %v465 = vpack.c.b16 %v271, %v269
    %v466 = vpack.c.b16 %v274, %v272
    %v467 = vpack.c.b16 %v275, %v273
    %v468 = vpack.c.b16 %v278, %v276
    %v469 = vpack.c.b16 %v279, %v277
    %v470 = vpack.c.b16 %v282, %v280
    %v471 = vpack.c.b16 %v283, %v281
    %v472 = vpack.c.b16 %v286, %v284
    %v473 = vpack.c.b16 %v287, %v285
    %v474 = vpack.c.b16 %v290, %v288
    %v475 = vpack.c.b16 %v291, %v289
    %v476 = vpack.c.b16 %v294, %v292
    %v477 = vpack.c.b16 %v295, %v293
    %v478 = vpack.c.b16 %v298, %v296
    %v479 = vpack.c.b16 %v299, %v297
    %v480 = vpack.c.b16 %v302, %v300
    %v481 = vpack.c.b16 %v303, %v301
    %v482 = vpack.c.b16 %v306, %v304
    %v483 = vpack.c.b16 %v307, %v305
    %v484 = vpack.c.b16 %v310, %v308
    %v485 = vpack.c.b16 %v311, %v309
    %v486 = vpack.c.b16 %v314, %v312
    %v487 = vpack.c.b16 %v315, %v313
    %v488 = vpack.c.b16 %v318, %v316
    %v489 = vpack.c.b16 %v319, %v317
    %v490 = vpack.c.b16 %v322, %v320
    %v491 = vpack.c.b16 %v323, %v321
    %v492 = vpack.c.b16 %v326, %v324
    %v493 = vpack.c.b16 %v327, %v325
    %v494 = vpack.c.b16 %v330, %v328
    %v495 = vpack.c.b16 %v331, %v329
    %v496 = vpack.c.b16 %v334, %v332
    %v497 = vpack.c.b16 %v335, %v333
    %v498 = vpack.c.b16 %v338, %v336
    %v499 = vpack.c.b16 %v339, %v337
    %v500 = vpack.c.b16 %v342, %v340
    %v501 = vpack.c.b16 %v343, %v341
    %v502 = vpack.c.b16 %v346, %v344
    %v503 = vpack.c.b16 %v347, %v345
    %v504 = vpack.c.b16 %v350, %v348
    %v505 = vpack.c.b16 %v351, %v349
    %v506 = vpack.c.b16 %v354, %v352
    %v507 = vpack.c.b16 %v355, %v353
    %v508 = vpack.c.b16 %v358, %v356
    %v509 = vpack.c.b16 %v359, %v357
    %v510 = vpack.c.b16 %v362, %v360
    %v511 = vpack.c.b16 %v363, %v361
    %v512 = vpack.c.b16 %v366, %v364
    %v513 = vpack.c.b16 %v367, %v365
    %v514 = vpack.c.b16 %v370, %v368
    %v515 = vpack.c.b16 %v371, %v369
    %v516 = vpack.c.b16 %v374, %v372
    %v517 = vpack.c.b16 %v375, %v373
    %v518 = vpack.c.b16 %v378, %v376
    %v519 = vpack.c.b16 %v379, %v377
    %v520 = vpack.c.b16 %v382, %v380
    %v521 = vpack.c.b16 %v383, %v381
    %v522 = vpack.c.b16 %v386, %v384
    %v523 = vpack.c.b16 %v387, %v385
    %v524 = vpack.c.b16 %v390, %v388
    %v525 = vpack.c.b16 %v391, %v389
    %v526 = vpack.c.b16 %v394, %v392
    %v527 = vpack.c.b16 %v395, %v393
    %v528 = vpack.c.b16 %v398, %v396
    %v529 = vpack.c.b16 %v399, %v397
    %v530 = vpack.c.b16 %v402, %v400
    %v531 = vpack.c.b16 %v403, %v401
    %v532 = vpack.c.b16 %v406, %v404
    %v533 = vpack.c.b16 %v407, %v405
    %v534 = vpack.c.b16 %v410, %v408
    %v535 = vpack.c.b16 %v411, %v409
    %v536 = vpack.c.b16 %v414, %v412
    %v537 = vpack.c.b16 %v415, %v413
    %v538 = vpack.c.b16 %v418, %v416
    %v539 = vpack.c.b16 %v419, %v417
    %v540 = vpack.c.b16 %v422, %v420
    %v541 = vpack.c.b16 %v423, %v421
    %v542 = vpack.c.b16 %v426, %v424
    %v543 = vpack.c.b16 %v427, %v425
    %v544 = vpack.c.b16 %v430, %v428
    %v545 = vpack.c.b16 %v431, %v429
    %v546 = vpack.c.b16 %v434, %v432
    %v547 = vpack.c.b16 %v435, %v433
    %v548 = vpack.c.b16 %v438, %v436
    %v549 = vpack.c.b16 %v439, %v437
    %v550 = vpack.c.b16 %v442, %v440
    %v551 = vpack.c.b16 %v443, %v441
    %v552 = vpack.c.b16 %v446, %v444
    %v553 = vpack.c.b16 %v447, %v445
    %v554 = vpack.c.b16 %v450, %v448
    %v555 = vpack.c.b16 %v451, %v449
    %v556 = vpack.c.b16 %v454, %v452
    %v557 = vpack.c.b16 %v455, %v453
    %v558 = vpack.c.b16 %v458, %v456
    %v559 = vpack.c.b16 %v459, %v457
    %v629 = vunpack.c.l.b16 %v134
    %v630 = vunpack.c.l.b16 %v135
    %v631 = vunpack.c.l.b16 %v136
    %v632 = vunpack.c.l.b16 %v137
    %v633 = vunpack.c.l.b16 %v138
    %v634 = vunpack.c.l.b16 %v139
    %v635 = vunpack.c.l.b16 %v140
    %v636 = vunpack.c.l.b16 %v141
    %v637 = vunpack.c.l.b16 %v142
    %v638 = vunpack.c.l.b16 %v143
    %v639 = vunpack.c.l.b16 %v144
    %v640 = vunpack.c.l.b16 %v145
    %v641 = vunpack.c.l.b16 %v146
    %v642 = vunpack.c.l.b16 %v147
    %v643 = vunpack.c.l.b16 %v148
    %v644 = vunpack.c.l.b16 %v149
    %v645 = vunpack.c.l.b16 %v150
    %v646 = vunpack.c.l.b16 %v151
    %v647 = vunpack.c.l.b16 %v152
    %v648 = vpack.c.b16 %v630, %v629
    %v649 = vpack.c.b16 %v632, %v631
    %v650 = vpack.c.b16 %v634, %v633
    %v651 = vpack.c.b16 %v636, %v635
    %v652 = vpack.c.b16 %v638, %v637
    %v653 = vpack.c.b16 %v640, %v639
    %v654 = vpack.c.b16 %v642, %v641
    %v655 = vpack.c.b16 %v644, %v643
    %v656 = vpack.c.b16 %v646, %v645
    %v657 = vpack.c.b16 %v647, %v647
    %vm667 = vcmask 179200
    %v669 = vsel %vm667, %v461, 0
    %v672 = vsel %vm667, %v463, 0
    %v675 = vsel %vm667, %v465, 0
    %v678 = vsel %vm667, %v467, 0
    %v681 = vsel %vm667, %v469, 0
    %v684 = vsel %vm667, %v471, 0
    %v687 = vsel %vm667, %v473, 0
    %v690 = vsel %vm667, %v475, 0
    %v693 = vsel %vm667, %v477, 0
    %v696 = vsel %vm667, %v479, 0
    %v699 = vsel %vm667, %v481, 0
    %v702 = vsel %vm667, %v483, 0
    %v705 = vsel %vm667, %v485, 0
    %v708 = vsel %vm667, %v487, 0
    %v711 = vsel %vm667, %v489, 0
    %v714 = vsel %vm667, %v491, 0
    %v717 = vsel %vm667, %v493, 0
    %v720 = vsel %vm667, %v495, 0
    %v723 = vsel %vm667, %v497, 0
    %v726 = vsel %vm667, %v499, 0
    %v729 = vsel %vm667, %v501, 0
    %v732 = vsel %vm667, %v503, 0
    %v735 = vsel %vm667, %v505, 0
    %v738 = vsel %vm667, %v507, 0
    %v741 = vsel %vm667, %v509, 0
    %v744 = vsel %vm667, %v511, 0
    %v747 = vsel %vm667, %v513, 0
    %v750 = vsel %vm667, %v515, 0
    %v753 = vsel %vm667, %v517, 0
    %v756 = vsel %vm667, %v519, 0
    %v759 = vsel %vm667, %v521, 0
    %v762 = vsel %vm667, %v523, 0
    %v765 = vsel %vm667, %v525, 0
    %v768 = vsel %vm667, %v527, 0
    %v771 = vsel %vm667, %v529, 0
    %v774 = vsel %vm667, %v531, 0
    %v777 = vsel %vm667, %v533, 0
    %v780 = vsel %vm667, %v535, 0
    %v783 = vsel %vm667, %v537, 0
    %v786 = vsel %vm667, %v539, 0
    %v789 = vsel %vm667, %v541, 0
    %v792 = vsel %vm667, %v543, 0
    %v795 = vsel %vm667, %v545, 0
    %v798 = vsel %vm667, %v547, 0
    %v801 = vsel %vm667, %v549, 0
    %v804 = vsel %vm667, %v551, 0
    %v807 = vsel %vm667, %v553, 0
    %v810 = vsel %vm667, %v555, 0
    %v813 = vsel %vm667, %v557, 0
    %v816 = vsel %vm667, %v559, 0
    %vm818 = vcmask 1042432
    %v820 = vsel %vm818, %v657, 0
    %822 = vmatprep.subr.bf16.mxu0 0
    %823 = vmatpush1.bf16.msra.mxu0 %v648
    %824 = vmatprep.subr.bf16.mxu0 0
    %825 = vmatpush1.bf16.msra.mxu0 %v649
    %826 = vmatprep.subr.bf16.mxu0 0
    %827 = vmatpush1.bf16.msra.mxu0 %v650
    %828 = vmatprep.subr.bf16.mxu0 0
    %829 = vmatpush1.bf16.msra.mxu0 %v651
    %830 = vmatprep.subr.bf16.mxu0 0
    %831 = vmatpush1.bf16.msra.mxu0 %v652
    %832 = vmatprep.subr.bf16.mxu0 0
    %833 = vmatpush1.bf16.msra.mxu0 %v653
    %834 = vmatprep.subr.bf16.mxu0 0
    %835 = vmatpush1.bf16.msra.mxu0 %v654
    %836 = vmatprep.subr.bf16.mxu0 0
    %837 = vmatpush1.bf16.msra.mxu0 %v655
    %838 = vmatprep.subr.bf16.mxu0 0
    %839 = vmatpush1.bf16.msra.mxu0 %v656
    %840 = vmatprep.subr.bf16.mxu0 0
    %841 = vmatpush1.bf16.msra.mxu0 %v820
    %842 = vmatprep.subr.bf16.mxu0 0
    %843 = vmatpush1.bf16.msra.mxu0 0
    %844 = vmatprep.subr.bf16.mxu0 0
    %845 = vmatpush1.bf16.msra.mxu0 0
    %846 = vmatprep.subr.bf16.mxu0 0
    %847 = vmatpush1.bf16.msra.mxu0 0
    %848 = vmatprep.subr.bf16.mxu0 0
    %849 = vmatpush1.bf16.msra.mxu0 0
    %850 = vmatprep.subr.bf16.mxu0 0
    %851 = vmatpush1.bf16.msra.mxu0 0
    %852 = vmatprep.subr.bf16.mxu0 0
    %853 = vmatpush1.bf16.msra.mxu0 0
    %854 = vmatprep.mubr.bf16.mxu0 %v669
    %855 = vmatmul.mubr.bf16.gmra.mrb[0].mxu0 %v460
    %v856 = vpop.f32.mrb[0].mxu0
    %v857 = vadd.f32 %v158, %v856
    %v858 = vpop.f32.mrb[0].mxu0
    %v859 = vpop.f32.mrb[0].mxu0
    %v860 = vadd.f32 %v158, %v859
    %v861 = vpop.f32.mrb[0].mxu0
    %862 = vmatprep.mubr.bf16.mxu0 %v672
    %863 = vmatmul.mubr.bf16.gmra.mrb[0].mxu0 %v462
    %v864 = vpop.f32.mrb[0].mxu0
    %v865 = vadd.f32 %v158, %v864
    %v866 = vpop.f32.mrb[0].mxu0
    %v867 = vpop.f32.mrb[0].mxu0
    %v868 = vadd.f32 %v158, %v867
    %v869 = vpop.f32.mrb[0].mxu0
    %870 = vmatprep.mubr.bf16.mxu0 %v675
    %871 = vmatmul.mubr.bf16.gmra.mrb[0].mxu0 %v464
    %v872 = vpop.f32.mrb[0].mxu0
    %v873 = vadd.f32 %v158, %v872
    %v874 = vpop.f32.mrb[0].mxu0
    %v875 = vpop.f32.mrb[0].mxu0
    %v876 = vadd.f32 %v158, %v875
    %v877 = vpop.f32.mrb[0].mxu0
    %878 = vmatprep.mubr.bf16.mxu0 %v678
    %879 = vmatmul.mubr.bf16.gmra.mrb[0].mxu0 %v466
    %v880 = vpop.f32.mrb[0].mxu0
    %v881 = vadd.f32 %v158, %v880
    %v882 = vpop.f32.mrb[0].mxu0
    %v883 = vpop.f32.mrb[0].mxu0
    %v884 = vadd.f32 %v158, %v883
    %v885 = vpop.f32.mrb[0].mxu0
    %886 = vmatprep.mubr.bf16.mxu0 %v681
    %887 = vmatmul.mubr.bf16.gmra.mrb[0].mxu0 %v468
    %v888 = vpop.f32.mrb[0].mxu0
    %v889 = vadd.f32 %v158, %v888
    %v890 = vpop.f32.mrb[0].mxu0
    %v891 = vpop.f32.mrb[0].mxu0
    %v892 = vadd.f32 %v158, %v891
    %v893 = vpop.f32.mrb[0].mxu0
    %894 = vmatprep.mubr.bf16.mxu0 %v684
    %895 = vmatmul.mubr.bf16.gmra.mrb[0].mxu0 %v470
    %v896 = vpop.f32.mrb[0].mxu0
    %v897 = vadd.f32 %v158, %v896
    %v898 = vpop.f32.mrb[0].mxu0
    %v899 = vpop.f32.mrb[0].mxu0
    %v900 = vadd.f32 %v158, %v899
    %v901 = vpop.f32.mrb[0].mxu0
    %902 = vmatprep.mubr.bf16.mxu0 %v687
    %903 = vmatmul.mubr.bf16.gmra.mrb[0].mxu0 %v472
    %v904 = vpop.f32.mrb[0].mxu0
    %v905 = vadd.f32 %v158, %v904
    %v906 = vpop.f32.mrb[0].mxu0
    %v907 = vpop.f32.mrb[0].mxu0
    %v908 = vadd.f32 %v158, %v907
    %v909 = vpop.f32.mrb[0].mxu0
    %910 = vmatprep.mubr.bf16.mxu0 %v690
    %911 = vmatmul.mubr.bf16.gmra.mrb[0].mxu0 %v474
    %v912 = vpop.f32.mrb[0].mxu0
    %v913 = vadd.f32 %v158, %v912
    %v914 = vpop.f32.mrb[0].mxu0
    %v915 = vpop.f32.mrb[0].mxu0
    %v916 = vadd.f32 %v158, %v915
    %v917 = vpop.f32.mrb[0].mxu0
    %918 = vmatprep.mubr.bf16.mxu0 %v693
    %919 = vmatmul.mubr.bf16.gmra.mrb[0].mxu0 %v476
    %v920 = vpop.f32.mrb[0].mxu0
    %v921 = vadd.f32 %v158, %v920
    %v922 = vpop.f32.mrb[0].mxu0
    %v923 = vpop.f32.mrb[0].mxu0
    %v924 = vadd.f32 %v158, %v923
    %v925 = vpop.f32.mrb[0].mxu0
    %926 = vmatprep.mubr.bf16.mxu0 %v696
    %927 = vmatmul.mubr.bf16.gmra.mrb[0].mxu0 %v478
    %v928 = vpop.f32.mrb[0].mxu0
    %v929 = vadd.f32 %v158, %v928
    %v930 = vpop.f32.mrb[0].mxu0
    %v931 = vpop.f32.mrb[0].mxu0
    %v932 = vadd.f32 %v158, %v931
    %v933 = vpop.f32.mrb[0].mxu0
    %934 = vmatprep.mubr.bf16.mxu0 %v699
    %935 = vmatmul.mubr.bf16.gmra.mrb[0].mxu0 %v480
    %v936 = vpop.f32.mrb[0].mxu0
    %v937 = vadd.f32 %v158, %v936
    %v938 = vpop.f32.mrb[0].mxu0
    %v939 = vpop.f32.mrb[0].mxu0
    %v940 = vadd.f32 %v158, %v939
    %v941 = vpop.f32.mrb[0].mxu0
    %942 = vmatprep.mubr.bf16.mxu0 %v702
    %943 = vmatmul.mubr.bf16.gmra.mrb[0].mxu0 %v482
    %v944 = vpop.f32.mrb[0].mxu0
    %v945 = vadd.f32 %v158, %v944
    %v946 = vpop.f32.mrb[0].mxu0
    %v947 = vpop.f32.mrb[0].mxu0
    %v948 = vadd.f32 %v158, %v947
    %v949 = vpop.f32.mrb[0].mxu0
    %950 = vmatprep.mubr.bf16.mxu0 %v705
    %951 = vmatmul.mubr.bf16.gmra.mrb[0].mxu0 %v484
    %v952 = vpop.f32.mrb[0].mxu0
    %v953 = vadd.f32 %v158, %v952
    %v954 = vpop.f32.mrb[0].mxu0
    %v955 = vpop.f32.mrb[0].mxu0
    %v956 = vadd.f32 %v158, %v955
    %v957 = vpop.f32.mrb[0].mxu0
    %958 = vmatprep.mubr.bf16.mxu0 %v708
    %959 = vmatmul.mubr.bf16.gmra.mrb[0].mxu0 %v486
    %v960 = vpop.f32.mrb[0].mxu0
    %v961 = vadd.f32 %v158, %v960
    %v962 = vpop.f32.mrb[0].mxu0
    %v963 = vpop.f32.mrb[0].mxu0
    %v964 = vadd.f32 %v158, %v963
    %v965 = vpop.f32.mrb[0].mxu0
    %966 = vmatprep.mubr.bf16.mxu0 %v711
    %967 = vmatmul.mubr.bf16.gmra.mrb[0].mxu0 %v488
    %v968 = vpop.f32.mrb[0].mxu0
    %v969 = vadd.f32 %v158, %v968
    %v970 = vpop.f32.mrb[0].mxu0
    %v971 = vpop.f32.mrb[0].mxu0
    %v972 = vadd.f32 %v158, %v971
    %v973 = vpop.f32.mrb[0].mxu0
    %974 = vmatprep.mubr.bf16.mxu0 %v714
    %975 = vmatmul.mubr.bf16.gmra.mrb[0].mxu0 %v490
    %v976 = vpop.f32.mrb[0].mxu0
    %v977 = vadd.f32 %v158, %v976
    %v978 = vpop.f32.mrb[0].mxu0
    %v979 = vpop.f32.mrb[0].mxu0
    %v980 = vadd.f32 %v158, %v979
    %v981 = vpop.f32.mrb[0].mxu0
    %982 = vmatprep.mubr.bf16.mxu0 %v717
    %983 = vmatmul.mubr.bf16.gmra.mrb[0].mxu0 %v492
    %v984 = vpop.f32.mrb[0].mxu0
    %v985 = vadd.f32 %v158, %v984
    %v986 = vpop.f32.mrb[0].mxu0
    %v987 = vpop.f32.mrb[0].mxu0
    %v988 = vadd.f32 %v158, %v987
    %v989 = vpop.f32.mrb[0].mxu0
    %990 = vmatprep.mubr.bf16.mxu0 %v720
    %991 = vmatmul.mubr.bf16.gmra.mrb[0].mxu0 %v494
    %v992 = vpop.f32.mrb[0].mxu0
    %v993 = vadd.f32 %v158, %v992
    %v994 = vpop.f32.mrb[0].mxu0
    %v995 = vpop.f32.mrb[0].mxu0
    %v996 = vadd.f32 %v158, %v995
    %v997 = vpop.f32.mrb[0].mxu0
    %998 = vmatprep.mubr.bf16.mxu0 %v723
    %999 = vmatmul.mubr.bf16.gmra.mrb[0].mxu0 %v496
    %v1000 = vpop.f32.mrb[0].mxu0
    %v1001 = vadd.f32 %v158, %v1000
    %v1002 = vpop.f32.mrb[0].mxu0
    %v1003 = vpop.f32.mrb[0].mxu0
    %v1004 = vadd.f32 %v158, %v1003
    %v1005 = vpop.f32.mrb[0].mxu0
    %1006 = vmatprep.mubr.bf16.mxu0 %v726
    %1007 = vmatmul.mubr.bf16.gmra.mrb[0].mxu0 %v498
    %v1008 = vpop.f32.mrb[0].mxu0
    %v1009 = vadd.f32 %v158, %v1008
    %v1010 = vpop.f32.mrb[0].mxu0
    %v1011 = vpop.f32.mrb[0].mxu0
    %v1012 = vadd.f32 %v158, %v1011
    %v1013 = vpop.f32.mrb[0].mxu0
    %1014 = vmatprep.mubr.bf16.mxu0 %v729
    %1015 = vmatmul.mubr.bf16.gmra.mrb[0].mxu0 %v500
    %v1016 = vpop.f32.mrb[0].mxu0
    %v1017 = vadd.f32 %v158, %v1016
    %v1018 = vpop.f32.mrb[0].mxu0
    %v1019 = vpop.f32.mrb[0].mxu0
    %v1020 = vadd.f32 %v158, %v1019
    %v1021 = vpop.f32.mrb[0].mxu0
    %1022 = vmatprep.mubr.bf16.mxu0 %v732
    %1023 = vmatmul.mubr.bf16.gmra.mrb[0].mxu0 %v502
    %v1024 = vpop.f32.mrb[0].mxu0
    %v1025 = vadd.f32 %v158, %v1024
    %v1026 = vpop.f32.mrb[0].mxu0
    %v1027 = vpop.f32.mrb[0].mxu0
    %v1028 = vadd.f32 %v158, %v1027
    %v1029 = vpop.f32.mrb[0].mxu0
    %1030 = vmatprep.mubr.bf16.mxu0 %v735
    %1031 = vmatmul.mubr.bf16.gmra.mrb[0].mxu0 %v504
    %v1032 = vpop.f32.mrb[0].mxu0
    %v1033 = vadd.f32 %v158, %v1032
    %v1034 = vpop.f32.mrb[0].mxu0
    %v1035 = vpop.f32.mrb[0].mxu0
    %v1036 = vadd.f32 %v158, %v1035
    %v1037 = vpop.f32.mrb[0].mxu0
    %1038 = vmatprep.mubr.bf16.mxu0 %v738
    %1039 = vmatmul.mubr.bf16.gmra.mrb[0].mxu0 %v506
    %v1040 = vpop.f32.mrb[0].mxu0
    %v1041 = vadd.f32 %v158, %v1040
    %v1042 = vpop.f32.mrb[0].mxu0
    %v1043 = vpop.f32.mrb[0].mxu0
    %v1044 = vadd.f32 %v158, %v1043
    %v1045 = vpop.f32.mrb[0].mxu0
    %1046 = vmatprep.mubr.bf16.mxu0 %v741
    %1047 = vmatmul.mubr.bf16.gmra.mrb[0].mxu0 %v508
    %v1048 = vpop.f32.mrb[0].mxu0
    %v1049 = vadd.f32 %v158, %v1048
    %v1050 = vpop.f32.mrb[0].mxu0
    %v1051 = vpop.f32.mrb[0].mxu0
    %v1052 = vadd.f32 %v158, %v1051
    %v1053 = vpop.f32.mrb[0].mxu0
    %1054 = vmatprep.mubr.bf16.mxu0 %v744
    %1055 = vmatmul.mubr.bf16.gmra.mrb[0].mxu0 %v510
    %v1056 = vpop.f32.mrb[0].mxu0
    %v1057 = vadd.f32 %v158, %v1056
    %v1058 = vpop.f32.mrb[0].mxu0
    %v1059 = vpop.f32.mrb[0].mxu0
    %v1060 = vadd.f32 %v158, %v1059
    %v1061 = vpop.f32.mrb[0].mxu0
    %1062 = vmatprep.mubr.bf16.mxu0 %v747
    %1063 = vmatmul.mubr.bf16.gmra.mrb[0].mxu0 %v512
    %v1064 = vpop.f32.mrb[0].mxu0
    %v1065 = vadd.f32 %v158, %v1064
    %v1066 = vpop.f32.mrb[0].mxu0
    %v1067 = vpop.f32.mrb[0].mxu0
    %v1068 = vadd.f32 %v158, %v1067
    %v1069 = vpop.f32.mrb[0].mxu0
    %1070 = vmatprep.mubr.bf16.mxu0 %v750
    %1071 = vmatmul.mubr.bf16.gmra.mrb[0].mxu0 %v514
    %v1072 = vpop.f32.mrb[0].mxu0
    %v1073 = vadd.f32 %v158, %v1072
    %v1074 = vpop.f32.mrb[0].mxu0
    %v1075 = vpop.f32.mrb[0].mxu0
    %v1076 = vadd.f32 %v158, %v1075
    %v1077 = vpop.f32.mrb[0].mxu0
    %1078 = vmatprep.mubr.bf16.mxu0 %v753
    %1079 = vmatmul.mubr.bf16.gmra.mrb[0].mxu0 %v516
    %v1080 = vpop.f32.mrb[0].mxu0
    %v1081 = vadd.f32 %v158, %v1080
    %v1082 = vpop.f32.mrb[0].mxu0
    %v1083 = vpop.f32.mrb[0].mxu0
    %v1084 = vadd.f32 %v158, %v1083
    %v1085 = vpop.f32.mrb[0].mxu0
    %1086 = vmatprep.mubr.bf16.mxu0 %v756
    %1087 = vmatmul.mubr.bf16.gmra.mrb[0].mxu0 %v518
    %v1088 = vpop.f32.mrb[0].mxu0
    %v1089 = vadd.f32 %v158, %v1088
    %v1090 = vpop.f32.mrb[0].mxu0
    %v1091 = vpop.f32.mrb[0].mxu0
    %v1092 = vadd.f32 %v158, %v1091
    %v1093 = vpop.f32.mrb[0].mxu0
    %1094 = vmatprep.mubr.bf16.mxu0 %v759
    %1095 = vmatmul.mubr.bf16.gmra.mrb[0].mxu0 %v520
    %v1096 = vpop.f32.mrb[0].mxu0
    %v1097 = vadd.f32 %v158, %v1096
    %v1098 = vpop.f32.mrb[0].mxu0
    %v1099 = vpop.f32.mrb[0].mxu0
    %v1100 = vadd.f32 %v158, %v1099
    %v1101 = vpop.f32.mrb[0].mxu0
    %1102 = vmatprep.mubr.bf16.mxu0 %v762
    %1103 = vmatmul.mubr.bf16.gmra.mrb[0].mxu0 %v522
    %v1104 = vpop.f32.mrb[0].mxu0
    %v1105 = vadd.f32 %v158, %v1104
    %v1106 = vpop.f32.mrb[0].mxu0
    %v1107 = vpop.f32.mrb[0].mxu0
    %v1108 = vadd.f32 %v158, %v1107
    %v1109 = vpop.f32.mrb[0].mxu0
    %1110 = vmatprep.mubr.bf16.mxu0 %v765
    %1111 = vmatmul.mubr.bf16.gmra.mrb[0].mxu0 %v524
    %v1112 = vpop.f32.mrb[0].mxu0
    %v1113 = vadd.f32 %v158, %v1112
    %v1114 = vpop.f32.mrb[0].mxu0
    %v1115 = vpop.f32.mrb[0].mxu0
    %v1116 = vadd.f32 %v158, %v1115
    %v1117 = vpop.f32.mrb[0].mxu0
    %1118 = vmatprep.mubr.bf16.mxu0 %v768
    %1119 = vmatmul.mubr.bf16.gmra.mrb[0].mxu0 %v526
    %v1120 = vpop.f32.mrb[0].mxu0
    %v1121 = vadd.f32 %v158, %v1120
    %v1122 = vpop.f32.mrb[0].mxu0
    %v1123 = vpop.f32.mrb[0].mxu0
    %v1124 = vadd.f32 %v158, %v1123
    %v1125 = vpop.f32.mrb[0].mxu0
    %1126 = vmatprep.mubr.bf16.mxu0 %v771
    %1127 = vmatmul.mubr.bf16.gmra.mrb[0].mxu0 %v528
    %v1128 = vpop.f32.mrb[0].mxu0
    %v1129 = vadd.f32 %v158, %v1128
    %v1130 = vpop.f32.mrb[0].mxu0
    %v1131 = vpop.f32.mrb[0].mxu0
    %v1132 = vadd.f32 %v158, %v1131
    %v1133 = vpop.f32.mrb[0].mxu0
    %1134 = vmatprep.mubr.bf16.mxu0 %v774
    %1135 = vmatmul.mubr.bf16.gmra.mrb[0].mxu0 %v530
    %v1136 = vpop.f32.mrb[0].mxu0
    %v1137 = vadd.f32 %v158, %v1136
    %v1138 = vpop.f32.mrb[0].mxu0
    %v1139 = vpop.f32.mrb[0].mxu0
    %v1140 = vadd.f32 %v158, %v1139
    %v1141 = vpop.f32.mrb[0].mxu0
    %1142 = vmatprep.mubr.bf16.mxu0 %v777
    %1143 = vmatmul.mubr.bf16.gmra.mrb[0].mxu0 %v532
    %v1144 = vpop.f32.mrb[0].mxu0
    %v1145 = vadd.f32 %v158, %v1144
    %v1146 = vpop.f32.mrb[0].mxu0
    %v1147 = vpop.f32.mrb[0].mxu0
    %v1148 = vadd.f32 %v158, %v1147
    %v1149 = vpop.f32.mrb[0].mxu0
    %1150 = vmatprep.mubr.bf16.mxu0 %v780
    %1151 = vmatmul.mubr.bf16.gmra.mrb[0].mxu0 %v534
    %v1152 = vpop.f32.mrb[0].mxu0
    %v1153 = vadd.f32 %v158, %v1152
    %v1154 = vpop.f32.mrb[0].mxu0
    %v1155 = vpop.f32.mrb[0].mxu0
    %v1156 = vadd.f32 %v158, %v1155
    %v1157 = vpop.f32.mrb[0].mxu0
    %1158 = vmatprep.mubr.bf16.mxu0 %v783
    %1159 = vmatmul.mubr.bf16.gmra.mrb[0].mxu0 %v536
    %v1160 = vpop.f32.mrb[0].mxu0
    %v1161 = vadd.f32 %v158, %v1160
    %v1162 = vpop.f32.mrb[0].mxu0
    %v1163 = vpop.f32.mrb[0].mxu0
    %v1164 = vadd.f32 %v158, %v1163
    %v1165 = vpop.f32.mrb[0].mxu0
    %1166 = vmatprep.mubr.bf16.mxu0 %v786
    %1167 = vmatmul.mubr.bf16.gmra.mrb[0].mxu0 %v538
    %v1168 = vpop.f32.mrb[0].mxu0
    %v1169 = vadd.f32 %v158, %v1168
    %v1170 = vpop.f32.mrb[0].mxu0
    %v1171 = vpop.f32.mrb[0].mxu0
    %v1172 = vadd.f32 %v158, %v1171
    %v1173 = vpop.f32.mrb[0].mxu0
    %1174 = vmatprep.mubr.bf16.mxu0 %v789
    %1175 = vmatmul.mubr.bf16.gmra.mrb[0].mxu0 %v540
    %v1176 = vpop.f32.mrb[0].mxu0
    %v1177 = vadd.f32 %v158, %v1176
    %v1178 = vpop.f32.mrb[0].mxu0
    %v1179 = vpop.f32.mrb[0].mxu0
    %v1180 = vadd.f32 %v158, %v1179
    %v1181 = vpop.f32.mrb[0].mxu0
    %1182 = vmatprep.mubr.bf16.mxu0 %v792
    %1183 = vmatmul.mubr.bf16.gmra.mrb[0].mxu0 %v542
    %v1184 = vpop.f32.mrb[0].mxu0
    %v1185 = vadd.f32 %v158, %v1184
    %v1186 = vpop.f32.mrb[0].mxu0
    %v1187 = vpop.f32.mrb[0].mxu0
    %v1188 = vadd.f32 %v158, %v1187
    %v1189 = vpop.f32.mrb[0].mxu0
    %1190 = vmatprep.mubr.bf16.mxu0 %v795
    %1191 = vmatmul.mubr.bf16.gmra.mrb[0].mxu0 %v544
    %v1192 = vpop.f32.mrb[0].mxu0
    %v1193 = vadd.f32 %v158, %v1192
    %v1194 = vpop.f32.mrb[0].mxu0
    %v1195 = vpop.f32.mrb[0].mxu0
    %v1196 = vadd.f32 %v158, %v1195
    %v1197 = vpop.f32.mrb[0].mxu0
    %1198 = vmatprep.mubr.bf16.mxu0 %v798
    %1199 = vmatmul.mubr.bf16.gmra.mrb[0].mxu0 %v546
    %v1200 = vpop.f32.mrb[0].mxu0
    %v1201 = vadd.f32 %v158, %v1200
    %v1202 = vpop.f32.mrb[0].mxu0
    %v1203 = vpop.f32.mrb[0].mxu0
    %v1204 = vadd.f32 %v158, %v1203
    %v1205 = vpop.f32.mrb[0].mxu0
    %1206 = vmatprep.mubr.bf16.mxu0 %v801
    %1207 = vmatmul.mubr.bf16.gmra.mrb[0].mxu0 %v548
    %v1208 = vpop.f32.mrb[0].mxu0
    %v1209 = vadd.f32 %v158, %v1208
    %v1210 = vpop.f32.mrb[0].mxu0
    %v1211 = vpop.f32.mrb[0].mxu0
    %v1212 = vadd.f32 %v158, %v1211
    %v1213 = vpop.f32.mrb[0].mxu0
    %1214 = vmatprep.mubr.bf16.mxu0 %v804
    %1215 = vmatmul.mubr.bf16.gmra.mrb[0].mxu0 %v550
    %v1216 = vpop.f32.mrb[0].mxu0
    %v1217 = vadd.f32 %v158, %v1216
    %v1218 = vpop.f32.mrb[0].mxu0
    %v1219 = vpop.f32.mrb[0].mxu0
    %v1220 = vadd.f32 %v158, %v1219
    %v1221 = vpop.f32.mrb[0].mxu0
    %1222 = vmatprep.mubr.bf16.mxu0 %v807
    %1223 = vmatmul.mubr.bf16.gmra.mrb[0].mxu0 %v552
    %v1224 = vpop.f32.mrb[0].mxu0
    %v1225 = vadd.f32 %v158, %v1224
    %v1226 = vpop.f32.mrb[0].mxu0
    %v1227 = vpop.f32.mrb[0].mxu0
    %v1228 = vadd.f32 %v158, %v1227
    %v1229 = vpop.f32.mrb[0].mxu0
    %1230 = vmatprep.mubr.bf16.mxu0 %v810
    %1231 = vmatmul.mubr.bf16.gmra.mrb[0].mxu0 %v554
    %v1232 = vpop.f32.mrb[0].mxu0
    %v1233 = vadd.f32 %v158, %v1232
    %v1234 = vpop.f32.mrb[0].mxu0
    %v1235 = vpop.f32.mrb[0].mxu0
    %v1236 = vadd.f32 %v158, %v1235
    %v1237 = vpop.f32.mrb[0].mxu0
    %1238 = vmatprep.mubr.bf16.mxu0 %v813
    %1239 = vmatmul.mubr.bf16.gmra.mrb[0].mxu0 %v556
    %v1240 = vpop.f32.mrb[0].mxu0
    %v1241 = vadd.f32 %v158, %v1240
    %v1242 = vpop.f32.mrb[0].mxu0
    %v1243 = vpop.f32.mrb[0].mxu0
    %v1244 = vadd.f32 %v158, %v1243
    %v1245 = vpop.f32.mrb[0].mxu0
    %1246 = vmatprep.mubr.bf16.mxu0 %v816
    %1247 = vmatmul.mubr.bf16.gmra.mrb[0].mxu0 %v558
    %v1248 = vpop.f32.mrb[0].mxu0
    %v1249 = vadd.f32 %v158, %v1248
    %v1250 = vpop.f32.mrb[0].mxu0
    %v1251 = vpop.f32.mrb[0].mxu0
    %v1252 = vadd.f32 %v158, %v1251
    %v1253 = vpop.f32.mrb[0].mxu0
    %1254 = vdwg.mxu0
    %v1255 = vmax.f32 %v857, 0.0
    %v1256 = vmax.f32 %v860, 0.0
    %v1257 = vmax.f32 %v865, 0.0
    %v1258 = vmax.f32 %v868, 0.0
    %v1259 = vmax.f32 %v873, 0.0
    %v1260 = vmax.f32 %v876, 0.0
    %v1261 = vmax.f32 %v881, 0.0
    %v1262 = vmax.f32 %v884, 0.0
    %v1263 = vmax.f32 %v889, 0.0
    %v1264 = vmax.f32 %v892, 0.0
    %v1265 = vmax.f32 %v897, 0.0
    %v1266 = vmax.f32 %v900, 0.0
    %v1267 = vmax.f32 %v905, 0.0
    %v1268 = vmax.f32 %v908, 0.0
    %v1269 = vmax.f32 %v913, 0.0
    %v1270 = vmax.f32 %v916, 0.0
    %v1271 = vmax.f32 %v921, 0.0
    %v1272 = vmax.f32 %v924, 0.0
    %v1273 = vmax.f32 %v929, 0.0
    %v1274 = vmax.f32 %v932, 0.0
    %v1275 = vmax.f32 %v937, 0.0
    %v1276 = vmax.f32 %v940, 0.0
    %v1277 = vmax.f32 %v945, 0.0
    %v1278 = vmax.f32 %v948, 0.0
    %v1279 = vmax.f32 %v953, 0.0
    %v1280 = vmax.f32 %v956, 0.0
    %v1281 = vmax.f32 %v961, 0.0
    %v1282 = vmax.f32 %v964, 0.0
    %v1283 = vmax.f32 %v969, 0.0
    %v1284 = vmax.f32 %v972, 0.0
    %v1285 = vmax.f32 %v977, 0.0
    %v1286 = vmax.f32 %v980, 0.0
    %v1287 = vmax.f32 %v985, 0.0
    %v1288 = vmax.f32 %v988, 0.0
    %v1289 = vmax.f32 %v993, 0.0
    %v1290 = vmax.f32 %v996, 0.0
    %v1291 = vmax.f32 %v1001, 0.0
    %v1292 = vmax.f32 %v1004, 0.0
    %v1293 = vmax.f32 %v1009, 0.0
    %v1294 = vmax.f32 %v1012, 0.0
    %v1295 = vmax.f32 %v1017, 0.0
    %v1296 = vmax.f32 %v1020, 0.0
    %v1297 = vmax.f32 %v1025, 0.0
    %v1298 = vmax.f32 %v1028, 0.0
    %v1299 = vmax.f32 %v1033, 0.0
    %v1300 = vmax.f32 %v1036, 0.0
    %v1301 = vmax.f32 %v1041, 0.0
    %v1302 = vmax.f32 %v1044, 0.0
    %v1303 = vmax.f32 %v1049, 0.0
    %v1304 = vmax.f32 %v1052, 0.0
    %v1305 = vmax.f32 %v1057, 0.0
    %v1306 = vmax.f32 %v1060, 0.0
    %v1307 = vmax.f32 %v1065, 0.0
    %v1308 = vmax.f32 %v1068, 0.0
    %v1309 = vmax.f32 %v1073, 0.0
    %v1310 = vmax.f32 %v1076, 0.0
    %v1311 = vmax.f32 %v1081, 0.0
    %v1312 = vmax.f32 %v1084, 0.0
    %v1313 = vmax.f32 %v1089, 0.0
    %v1314 = vmax.f32 %v1092, 0.0
    %v1315 = vmax.f32 %v1097, 0.0
    %v1316 = vmax.f32 %v1100, 0.0
    %v1317 = vmax.f32 %v1105, 0.0
    %v1318 = vmax.f32 %v1108, 0.0
    %v1319 = vmax.f32 %v1113, 0.0
    %v1320 = vmax.f32 %v1116, 0.0
    %v1321 = vmax.f32 %v1121, 0.0
    %v1322 = vmax.f32 %v1124, 0.0
    %v1323 = vmax.f32 %v1129, 0.0
    %v1324 = vmax.f32 %v1132, 0.0
    %v1325 = vmax.f32 %v1137, 0.0
    %v1326 = vmax.f32 %v1140, 0.0
    %v1327 = vmax.f32 %v1145, 0.0
    %v1328 = vmax.f32 %v1148, 0.0
    %v1329 = vmax.f32 %v1153, 0.0
    %v1330 = vmax.f32 %v1156, 0.0
    %v1331 = vmax.f32 %v1161, 0.0
    %v1332 = vmax.f32 %v1164, 0.0
    %v1333 = vmax.f32 %v1169, 0.0
    %v1334 = vmax.f32 %v1172, 0.0
    %v1335 = vmax.f32 %v1177, 0.0
    %v1336 = vmax.f32 %v1180, 0.0
    %v1337 = vmax.f32 %v1185, 0.0
    %v1338 = vmax.f32 %v1188, 0.0
    %v1339 = vmax.f32 %v1193, 0.0
    %v1340 = vmax.f32 %v1196, 0.0
    %v1341 = vmax.f32 %v1201, 0.0
    %v1342 = vmax.f32 %v1204, 0.0
    %v1343 = vmax.f32 %v1209, 0.0
    %v1344 = vmax.f32 %v1212, 0.0
    %v1345 = vmax.f32 %v1217, 0.0
    %v1346 = vmax.f32 %v1220, 0.0
    %v1347 = vmax.f32 %v1225, 0.0
    %v1348 = vmax.f32 %v1228, 0.0
    %v1349 = vmax.f32 %v1233, 0.0
    %v1350 = vmax.f32 %v1236, 0.0
    %v1351 = vmax.f32 %v1241, 0.0
    %v1352 = vmax.f32 %v1244, 0.0
    %v1353 = vmax.f32 %v1249, 0.0
    %v1354 = vmax.f32 %v1252, 0.0
    %v1355 = vadd.f32 %v1255, %v1280
    %v1356 = vadd.f32 %v1256, %v1281
    %v1357 = vadd.f32 %v1257, %v1282
    %v1358 = vadd.f32 %v1258, %v1283
    %v1359 = vadd.f32 %v1259, %v1284
    %v1360 = vadd.f32 %v1260, %v1285
    %v1361 = vadd.f32 %v1261, %v1286
    %v1362 = vadd.f32 %v1262, %v1287
    %v1363 = vadd.f32 %v1263, %v1288
    %v1364 = vadd.f32 %v1264, %v1289
    %v1365 = vadd.f32 %v1265, %v1290
    %v1366 = vadd.f32 %v1266, %v1291
    %v1367 = vadd.f32 %v1267, %v1292
    %v1368 = vadd.f32 %v1268, %v1293
    %v1369 = vadd.f32 %v1269, %v1294
    %v1370 = vadd.f32 %v1270, %v1295
    %v1371 = vadd.f32 %v1271, %v1296
    %v1372 = vadd.f32 %v1272, %v1297
    %v1373 = vadd.f32 %v1273, %v1298
    %v1374 = vadd.f32 %v1274, %v1299
    %v1375 = vadd.f32 %v1275, %v1300
    %v1376 = vadd.f32 %v1276, %v1301
    %v1377 = vadd.f32 %v1277, %v1302
    %v1378 = vadd.f32 %v1278, %v1303
    %v1379 = vadd.f32 %v1279, %v1304
    %v1380 = vadd.f32 %v1355, %v1305
    %v1381 = vadd.f32 %v1356, %v1306
    %v1382 = vadd.f32 %v1357, %v1307
    %v1383 = vadd.f32 %v1358, %v1308
    %v1384 = vadd.f32 %v1359, %v1309
    %v1385 = vadd.f32 %v1360, %v1310
    %v1386 = vadd.f32 %v1361, %v1311
    %v1387 = vadd.f32 %v1362, %v1312
    %v1388 = vadd.f32 %v1363, %v1313
    %v1389 = vadd.f32 %v1364, %v1314
    %v1390 = vadd.f32 %v1365, %v1315
    %v1391 = vadd.f32 %v1366, %v1316
    %v1392 = vadd.f32 %v1367, %v1317
    %v1393 = vadd.f32 %v1368, %v1318
    %v1394 = vadd.f32 %v1369, %v1319
    %v1395 = vadd.f32 %v1370, %v1320
    %v1396 = vadd.f32 %v1371, %v1321
    %v1397 = vadd.f32 %v1372, %v1322
    %v1398 = vadd.f32 %v1373, %v1323
    %v1399 = vadd.f32 %v1374, %v1324
    %v1400 = vadd.f32 %v1375, %v1325
    %v1401 = vadd.f32 %v1376, %v1326
    %v1402 = vadd.f32 %v1377, %v1327
    %v1403 = vadd.f32 %v1378, %v1328
    %v1404 = vadd.f32 %v1379, %v1329
    %v1405 = vadd.f32 %v1380, %v1330
    %v1406 = vadd.f32 %v1381, %v1331
    %v1407 = vadd.f32 %v1382, %v1332
    %v1408 = vadd.f32 %v1383, %v1333
    %v1409 = vadd.f32 %v1384, %v1334
    %v1410 = vadd.f32 %v1385, %v1335
    %v1411 = vadd.f32 %v1386, %v1336
    %v1412 = vadd.f32 %v1387, %v1337
    %v1413 = vadd.f32 %v1388, %v1338
    %v1414 = vadd.f32 %v1389, %v1339
    %v1415 = vadd.f32 %v1390, %v1340
    %v1416 = vadd.f32 %v1391, %v1341
    %v1417 = vadd.f32 %v1392, %v1342
    %v1418 = vadd.f32 %v1393, %v1343
    %v1419 = vadd.f32 %v1394, %v1344
    %v1420 = vadd.f32 %v1395, %v1345
    %v1421 = vadd.f32 %v1396, %v1346
    %v1422 = vadd.f32 %v1397, %v1347
    %v1423 = vadd.f32 %v1398, %v1348
    %v1424 = vadd.f32 %v1399, %v1349
    %v1425 = vadd.f32 %v1400, %v1350
    %v1426 = vadd.f32 %v1401, %v1351
    %v1427 = vadd.f32 %v1402, %v1352
    %v1428 = vadd.f32 %v1403, %v1353
    %v1429 = vadd.f32 %v1404, %v1354
    %v1430 = vld [vmem:[%s3] sm:$0xf]
    %v1431 = vld [vmem:[%s3 + $0x4] sm:$0xf]
    %v1432 = vld [vmem:[%s3 + $0x8] sm:$0xf]
    %v1433 = vld [vmem:[%s3 + $0xc] sm:$0xf]
    %v1434 = vld [vmem:[%s3 + $0x10] sm:$0xf]
    %v1435 = vld [vmem:[%s3 + $0x14] sm:$0xf]
    %v1436 = vld [vmem:[%s3 + $0x18] sm:$0xf]
    %v1437 = vld [vmem:[%s3 + $0x1c] sm:$0xf]
    %v1438 = vld [vmem:[%s3 + $0x20] sm:$0xf]
    %v1439 = vld [vmem:[%s3 + $0x24] sm:$0xf]
    %v1440 = vld [vmem:[%s3 + $0x28] sm:$0xf]
    %v1441 = vld [vmem:[%s3 + $0x2c] sm:$0xf]
    %v1442 = vld [vmem:[%s3 + $0x30] sm:$0xf]
    %v1443 = vld [vmem:[%s3 + $0x34] sm:$0xf]
    %v1444 = vld [vmem:[%s3 + $0x38] sm:$0xf]
    %v1445 = vld [vmem:[%s3 + $0x3c] sm:$0xf]
    %v1446 = vld [vmem:[%s3 + $0x40] sm:$0xf]
    %v1447 = vld [vmem:[%s3 + $0x44] sm:$0xf]
    %v1448 = vld [vmem:[%s3 + $0x48] sm:$0xf]
    %v1449 = vld [vmem:[%s3 + $0x4c] sm:$0xf]
    %v1450 = vld [vmem:[%s3 + $0x50] sm:$0xf]
    %v1451 = vld [vmem:[%s3 + $0x54] sm:$0xf]
    %v1452 = vld [vmem:[%s3 + $0x58] sm:$0xf]
    %v1453 = vld [vmem:[%s3 + $0x5c] sm:$0xf]
    %v1454 = vld [vmem:[%s3 + $0x60] sm:$0xf]
    %v1455 = vld [vmem:[%s3 + $0x64] sm:$0xf]
    %v1456 = vld [vmem:[%s3 + $0x68] sm:$0xf]
    %v1457 = vld [vmem:[%s3 + $0x6c] sm:$0xf]
    %v1458 = vld [vmem:[%s3 + $0x70] sm:$0xf]
    %v1459 = vld [vmem:[%s3 + $0x74] sm:$0xf]
    %v1460 = vld [vmem:[%s3 + $0x78] sm:$0xf]
    %v1461 = vld [vmem:[%s3 + $0x7c] sm:$0xf]
    %v1462 = vld [vmem:[%s3 + $0x80] sm:$0xf]
    %v1463 = vld [vmem:[%s3 + $0x84] sm:$0xf]
    %v1464 = vld [vmem:[%s3 + $0x88] sm:$0xf]
    %v1465 = vld [vmem:[%s3 + $0x8c] sm:$0xf]
    %v1466 = vld [vmem:[%s3 + $0x90] sm:$0xf]
    %v1467 = vld [vmem:[%s3 + $0x94] sm:$0xf]
    %v1468 = vld [vmem:[%s3 + $0x98] sm:$0xf]
    %v1469 = vld [vmem:[%s3 + $0x9c] sm:$0xf]
    %v1470 = vld [vmem:[%s3 + $0xa0] sm:$0xf]
    %v1471 = vld [vmem:[%s3 + $0xa4] sm:$0xf]
    %v1472 = vld [vmem:[%s3 + $0xa8] sm:$0xf]
    %v1473 = vld [vmem:[%s3 + $0xac] sm:$0xf]
    %v1474 = vld [vmem:[%s3 + $0xb0] sm:$0xf]
    %v1475 = vld [vmem:[%s3 + $0xb4] sm:$0xf]
    %v1476 = vld [vmem:[%s3 + $0xb8] sm:$0xf]
    %v1477 = vld [vmem:[%s3 + $0xbc] sm:$0xf]
    %v1478 = vld [vmem:[%s3 + $0xc0] sm:$0xf]
    %v1479 = vld [vmem:[%s3 + $0xc4] sm:$0xf]
    %v1480 = vpack.c.bf16 %v1405, %v1405
    %v1481 = vpack.c.bf16 %v1406, %v1406
    %v1484 = vunpack.c.l.b16 %v1432
    %v1485 = vunpack.c.l.b16 %v1433
    %v1486 = vpack.c.b16 %v1485, %v1484
    %vm1488 = vcmask 130048
    %v1490 = vsel %vm1488, %v1481, 0
    %1492 = vmatprep.subr.bf16.mxu0 0
    %1493 = vmatpush1.bf16.msra.mxu0 %v1486
    %1494 = vmatprep.subr.bf16.mxu0 0
    %1495 = vmatpush1.bf16.msra.mxu0 0
    %1496 = vmatprep.subr.bf16.mxu0 0
    %1497 = vmatpush1.bf16.msra.mxu0 0
    %1498 = vmatprep.subr.bf16.mxu0 0
    %1499 = vmatpush1.bf16.msra.mxu0 0
    %1500 = vmatprep.subr.bf16.mxu0 0
    %1501 = vmatpush1.bf16.msra.mxu0 0
    %1502 = vmatprep.subr.bf16.mxu0 0
    %1503 = vmatpush1.bf16.msra.mxu0 0
    %1504 = vmatprep.subr.bf16.mxu0 0
    %1505 = vmatpush1.bf16.msra.mxu0 0
    %1506 = vmatprep.subr.bf16.mxu0 0
    %1507 = vmatpush1.bf16.msra.mxu0 0
    %1508 = vmatprep.subr.bf16.mxu0 0
    %1509 = vmatpush1.bf16.msra.mxu0 0
    %1510 = vmatprep.subr.bf16.mxu0 0
    %1511 = vmatpush1.bf16.msra.mxu0 0
    %1512 = vmatprep.subr.bf16.mxu0 0
    %1513 = vmatpush1.bf16.msra.mxu0 0
    %1514 = vmatprep.subr.bf16.mxu0 0
    %1515 = vmatpush1.bf16.msra.mxu0 0
    %1516 = vmatprep.subr.bf16.mxu0 0
    %1517 = vmatpush1.bf16.msra.mxu0 0
    %1518 = vmatprep.subr.bf16.mxu0 0
    %1519 = vmatpush1.bf16.msra.mxu0 0
    %1520 = vmatprep.subr.bf16.mxu0 0
    %1521 = vmatpush1.bf16.msra.mxu0 0
    %1522 = vmatprep.subr.bf16.mxu0 0
    %1523 = vmatpush1.bf16.msra.mxu0 0
    %1524 = vmatprep.mubr.bf16.mxu0 0
    %1525 = vmatmul.mubr.bf16.gmra.mrb[0].mxu0 %v1490
    %v1526 = vpop.f32.mrb[0].mxu0
    %v1527 = vadd.f32 0.0, %v1526
    %v1528 = vpop.f32.mrb[0].mxu0
    %v1529 = vpop.f32.mrb[0].mxu0
    %v1530 = vpop.f32.mrb[0].mxu0
    %1531 = vdwg.mxu0
    %v1532 = vpack.c.bf16 %v1407, %v1407
    %v1533 = vpack.c.bf16 %v1408, %v1408
    %v1536 = vunpack.c.l.b16 %v1436
    %v1537 = vunpack.c.l.b16 %v1437
    %v1538 = vpack.c.b16 %v1537, %v1536
    %v1541 = vsel %vm1488, %v1533, 0
    %1543 = vmatprep.subr.bf16.mxu0 0
    %1544 = vmatpush1.bf16.msra.mxu0 %v1538
    %1545 = vmatprep.subr.bf16.mxu0 0
    %1546 = vmatpush1.bf16.msra.mxu0 0
    %1547 = vmatprep.subr.bf16.mxu0 0
    %1548 = vmatpush1.bf16.msra.mxu0 0
    %1549 = vmatprep.subr.bf16.mxu0 0
    %1550 = vmatpush1.bf16.msra.mxu0 0
    %1551 = vmatprep.subr.bf16.mxu0 0
    %1552 = vmatpush1.bf16.msra.mxu0 0
    %1553 = vmatprep.subr.bf16.mxu0 0
    %1554 = vmatpush1.bf16.msra.mxu0 0
    %1555 = vmatprep.subr.bf16.mxu0 0
    %1556 = vmatpush1.bf16.msra.mxu0 0
    %1557 = vmatprep.subr.bf16.mxu0 0
    %1558 = vmatpush1.bf16.msra.mxu0 0
    %1559 = vmatprep.subr.bf16.mxu0 0
    %1560 = vmatpush1.bf16.msra.mxu0 0
    %1561 = vmatprep.subr.bf16.mxu0 0
    %1562 = vmatpush1.bf16.msra.mxu0 0
    %1563 = vmatprep.subr.bf16.mxu0 0
    %1564 = vmatpush1.bf16.msra.mxu0 0
    %1565 = vmatprep.subr.bf16.mxu0 0
    %1566 = vmatpush1.bf16.msra.mxu0 0
    %1567 = vmatprep.subr.bf16.mxu0 0
    %1568 = vmatpush1.bf16.msra.mxu0 0
    %1569 = vmatprep.subr.bf16.mxu0 0
    %1570 = vmatpush1.bf16.msra.mxu0 0
    %1571 = vmatprep.subr.bf16.mxu0 0
    %1572 = vmatpush1.bf16.msra.mxu0 0
    %1573 = vmatprep.subr.bf16.mxu0 0
    %1574 = vmatpush1.bf16.msra.mxu0 0
    %1575 = vmatprep.mubr.bf16.mxu0 0
    %1576 = vmatmul.mubr.bf16.gmra.mrb[0].mxu0 %v1541
    %v1577 = vpop.f32.mrb[0].mxu0
    %v1578 = vadd.f32 0.0, %v1577
    %v1579 = vpop.f32.mrb[0].mxu0
    %v1580 = vpop.f32.mrb[0].mxu0
    %v1581 = vpop.f32.mrb[0].mxu0
    %1582 = vdwg.mxu0
    %v1583 = vpack.c.bf16 %v1409, %v1409
    %v1584 = vpack.c.bf16 %v1410, %v1410
    %v1587 = vunpack.c.l.b16 %v1440
    %v1588 = vunpack.c.l.b16 %v1441
    %v1589 = vpack.c.b16 %v1588, %v1587
    %v1592 = vsel %vm1488, %v1584, 0
    %1594 = vmatprep.subr.bf16.mxu0 0
    %1595 = vmatpush1.bf16.msra.mxu0 %v1589
    %1596 = vmatprep.subr.bf16.mxu0 0
    %1597 = vmatpush1.bf16.msra.mxu0 0
    %1598 = vmatprep.subr.bf16.mxu0 0
    %1599 = vmatpush1.bf16.msra.mxu0 0
    %1600 = vmatprep.subr.bf16.mxu0 0
    %1601 = vmatpush1.bf16.msra.mxu0 0
    %1602 = vmatprep.subr.bf16.mxu0 0
    %1603 = vmatpush1.bf16.msra.mxu0 0
    %1604 = vmatprep.subr.bf16.mxu0 0
    %1605 = vmatpush1.bf16.msra.mxu0 0
    %1606 = vmatprep.subr.bf16.mxu0 0
    %1607 = vmatpush1.bf16.msra.mxu0 0
    %1608 = vmatprep.subr.bf16.mxu0 0
    %1609 = vmatpush1.bf16.msra.mxu0 0
    %1610 = vmatprep.subr.bf16.mxu0 0
    %1611 = vmatpush1.bf16.msra.mxu0 0
    %1612 = vmatprep.subr.bf16.mxu0 0
    %1613 = vmatpush1.bf16.msra.mxu0 0
    %1614 = vmatprep.subr.bf16.mxu0 0
    %1615 = vmatpush1.bf16.msra.mxu0 0
    %1616 = vmatprep.subr.bf16.mxu0 0
    %1617 = vmatpush1.bf16.msra.mxu0 0
    %1618 = vmatprep.subr.bf16.mxu0 0
    %1619 = vmatpush1.bf16.msra.mxu0 0
    %1620 = vmatprep.subr.bf16.mxu0 0
    %1621 = vmatpush1.bf16.msra.mxu0 0
    %1622 = vmatprep.subr.bf16.mxu0 0
    %1623 = vmatpush1.bf16.msra.mxu0 0
    %1624 = vmatprep.subr.bf16.mxu0 0
    %1625 = vmatpush1.bf16.msra.mxu0 0
    %1626 = vmatprep.mubr.bf16.mxu0 0
    %1627 = vmatmul.mubr.bf16.gmra.mrb[0].mxu0 %v1592
    %v1628 = vpop.f32.mrb[0].mxu0
    %v1629 = vadd.f32 0.0, %v1628
    %v1630 = vpop.f32.mrb[0].mxu0
    %v1631 = vpop.f32.mrb[0].mxu0
    %v1632 = vpop.f32.mrb[0].mxu0
    %1633 = vdwg.mxu0
    %v1634 = vpack.c.bf16 %v1411, %v1411
    %v1635 = vpack.c.bf16 %v1412, %v1412
    %v1638 = vunpack.c.l.b16 %v1444
    %v1639 = vunpack.c.l.b16 %v1445
    %v1640 = vpack.c.b16 %v1639, %v1638
    %v1643 = vsel %vm1488, %v1635, 0
    %1645 = vmatprep.subr.bf16.mxu0 0
    %1646 = vmatpush1.bf16.msra.mxu0 %v1640
    %1647 = vmatprep.subr.bf16.mxu0 0
    %1648 = vmatpush1.bf16.msra.mxu0 0
    %1649 = vmatprep.subr.bf16.mxu0 0
    %1650 = vmatpush1.bf16.msra.mxu0 0
    %1651 = vmatprep.subr.bf16.mxu0 0
    %1652 = vmatpush1.bf16.msra.mxu0 0
    %1653 = vmatprep.subr.bf16.mxu0 0
    %1654 = vmatpush1.bf16.msra.mxu0 0
    %1655 = vmatprep.subr.bf16.mxu0 0
    %1656 = vmatpush1.bf16.msra.mxu0 0
    %1657 = vmatprep.subr.bf16.mxu0 0
    %1658 = vmatpush1.bf16.msra.mxu0 0
    %1659 = vmatprep.subr.bf16.mxu0 0
    %1660 = vmatpush1.bf16.msra.mxu0 0
    %1661 = vmatprep.subr.bf16.mxu0 0
    %1662 = vmatpush1.bf16.msra.mxu0 0
    %1663 = vmatprep.subr.bf16.mxu0 0
    %1664 = vmatpush1.bf16.msra.mxu0 0
    %1665 = vmatprep.subr.bf16.mxu0 0
    %1666 = vmatpush1.bf16.msra.mxu0 0
    %1667 = vmatprep.subr.bf16.mxu0 0
    %1668 = vmatpush1.bf16.msra.mxu0 0
    %1669 = vmatprep.subr.bf16.mxu0 0
    %1670 = vmatpush1.bf16.msra.mxu0 0
    %1671 = vmatprep.subr.bf16.mxu0 0
    %1672 = vmatpush1.bf16.msra.mxu0 0
    %1673 = vmatprep.subr.bf16.mxu0 0
    %1674 = vmatpush1.bf16.msra.mxu0 0
    %1675 = vmatprep.subr.bf16.mxu0 0
    %1676 = vmatpush1.bf16.msra.mxu0 0
    %1677 = vmatprep.mubr.bf16.mxu0 0
    %1678 = vmatmul.mubr.bf16.gmra.mrb[0].mxu0 %v1643
    %v1679 = vpop.f32.mrb[0].mxu0
    %v1680 = vadd.f32 0.0, %v1679
    %v1681 = vpop.f32.mrb[0].mxu0
    %v1682 = vpop.f32.mrb[0].mxu0
    %v1683 = vpop.f32.mrb[0].mxu0
    %1684 = vdwg.mxu0
    %v1685 = vpack.c.bf16 %v1413, %v1413
    %v1686 = vpack.c.bf16 %v1414, %v1414
    %v1689 = vunpack.c.l.b16 %v1448
    %v1690 = vunpack.c.l.b16 %v1449
    %v1691 = vpack.c.b16 %v1690, %v1689
    %v1694 = vsel %vm1488, %v1686, 0
    %1696 = vmatprep.subr.bf16.mxu0 0
    %1697 = vmatpush1.bf16.msra.mxu0 %v1691
    %1698 = vmatprep.subr.bf16.mxu0 0
    %1699 = vmatpush1.bf16.msra.mxu0 0
    %1700 = vmatprep.subr.bf16.mxu0 0
    %1701 = vmatpush1.bf16.msra.mxu0 0
    %1702 = vmatprep.subr.bf16.mxu0 0
    %1703 = vmatpush1.bf16.msra.mxu0 0
    %1704 = vmatprep.subr.bf16.mxu0 0
    %1705 = vmatpush1.bf16.msra.mxu0 0
    %1706 = vmatprep.subr.bf16.mxu0 0
    %1707 = vmatpush1.bf16.msra.mxu0 0
    %1708 = vmatprep.subr.bf16.mxu0 0
    %1709 = vmatpush1.bf16.msra.mxu0 0
    %1710 = vmatprep.subr.bf16.mxu0 0
    %1711 = vmatpush1.bf16.msra.mxu0 0
    %1712 = vmatprep.subr.bf16.mxu0 0
    %1713 = vmatpush1.bf16.msra.mxu0 0
    %1714 = vmatprep.subr.bf16.mxu0 0
    %1715 = vmatpush1.bf16.msra.mxu0 0
    %1716 = vmatprep.subr.bf16.mxu0 0
    %1717 = vmatpush1.bf16.msra.mxu0 0
    %1718 = vmatprep.subr.bf16.mxu0 0
    %1719 = vmatpush1.bf16.msra.mxu0 0
    %1720 = vmatprep.subr.bf16.mxu0 0
    %1721 = vmatpush1.bf16.msra.mxu0 0
    %1722 = vmatprep.subr.bf16.mxu0 0
    %1723 = vmatpush1.bf16.msra.mxu0 0
    %1724 = vmatprep.subr.bf16.mxu0 0
    %1725 = vmatpush1.bf16.msra.mxu0 0
    %1726 = vmatprep.subr.bf16.mxu0 0
    %1727 = vmatpush1.bf16.msra.mxu0 0
    %1728 = vmatprep.mubr.bf16.mxu0 0
    %1729 = vmatmul.mubr.bf16.gmra.mrb[0].mxu0 %v1694
    %v1730 = vpop.f32.mrb[0].mxu0
    %v1731 = vadd.f32 0.0, %v1730
    %v1732 = vpop.f32.mrb[0].mxu0
    %v1733 = vpop.f32.mrb[0].mxu0
    %v1734 = vpop.f32.mrb[0].mxu0
    %1735 = vdwg.mxu0
    %v1736 = vpack.c.bf16 %v1415, %v1415
    %v1737 = vpack.c.bf16 %v1416, %v1416
    %v1740 = vunpack.c.l.b16 %v1452
    %v1741 = vunpack.c.l.b16 %v1453
    %v1742 = vpack.c.b16 %v1741, %v1740
    %v1745 = vsel %vm1488, %v1737, 0
    %1747 = vmatprep.subr.bf16.mxu0 0
    %1748 = vmatpush1.bf16.msra.mxu0 %v1742
    %1749 = vmatprep.subr.bf16.mxu0 0
    %1750 = vmatpush1.bf16.msra.mxu0 0
    %1751 = vmatprep.subr.bf16.mxu0 0
    %1752 = vmatpush1.bf16.msra.mxu0 0
    %1753 = vmatprep.subr.bf16.mxu0 0
    %1754 = vmatpush1.bf16.msra.mxu0 0
    %1755 = vmatprep.subr.bf16.mxu0 0
    %1756 = vmatpush1.bf16.msra.mxu0 0
    %1757 = vmatprep.subr.bf16.mxu0 0
    %1758 = vmatpush1.bf16.msra.mxu0 0
    %1759 = vmatprep.subr.bf16.mxu0 0
    %1760 = vmatpush1.bf16.msra.mxu0 0
    %1761 = vmatprep.subr.bf16.mxu0 0
    %1762 = vmatpush1.bf16.msra.mxu0 0
    %1763 = vmatprep.subr.bf16.mxu0 0
    %1764 = vmatpush1.bf16.msra.mxu0 0
    %1765 = vmatprep.subr.bf16.mxu0 0
    %1766 = vmatpush1.bf16.msra.mxu0 0
    %1767 = vmatprep.subr.bf16.mxu0 0
    %1768 = vmatpush1.bf16.msra.mxu0 0
    %1769 = vmatprep.subr.bf16.mxu0 0
    %1770 = vmatpush1.bf16.msra.mxu0 0
    %1771 = vmatprep.subr.bf16.mxu0 0
    %1772 = vmatpush1.bf16.msra.mxu0 0
    %1773 = vmatprep.subr.bf16.mxu0 0
    %1774 = vmatpush1.bf16.msra.mxu0 0
    %1775 = vmatprep.subr.bf16.mxu0 0
    %1776 = vmatpush1.bf16.msra.mxu0 0
    %1777 = vmatprep.subr.bf16.mxu0 0
    %1778 = vmatpush1.bf16.msra.mxu0 0
    %1779 = vmatprep.mubr.bf16.mxu0 0
    %1780 = vmatmul.mubr.bf16.gmra.mrb[0].mxu0 %v1745
    %v1781 = vpop.f32.mrb[0].mxu0
    %v1782 = vadd.f32 0.0, %v1781
    %v1783 = vpop.f32.mrb[0].mxu0
    %v1784 = vpop.f32.mrb[0].mxu0
    %v1785 = vpop.f32.mrb[0].mxu0
    %1786 = vdwg.mxu0
    %v1787 = vpack.c.bf16 %v1417, %v1417
    %v1788 = vpack.c.bf16 %v1418, %v1418
    %v1791 = vunpack.c.l.b16 %v1456
    %v1792 = vunpack.c.l.b16 %v1457
    %v1793 = vpack.c.b16 %v1792, %v1791
    %v1796 = vsel %vm1488, %v1788, 0
    %1798 = vmatprep.subr.bf16.mxu0 0
    %1799 = vmatpush1.bf16.msra.mxu0 %v1793
    %1800 = vmatprep.subr.bf16.mxu0 0
    %1801 = vmatpush1.bf16.msra.mxu0 0
    %1802 = vmatprep.subr.bf16.mxu0 0
    %1803 = vmatpush1.bf16.msra.mxu0 0
    %1804 = vmatprep.subr.bf16.mxu0 0
    %1805 = vmatpush1.bf16.msra.mxu0 0
    %1806 = vmatprep.subr.bf16.mxu0 0
    %1807 = vmatpush1.bf16.msra.mxu0 0
    %1808 = vmatprep.subr.bf16.mxu0 0
    %1809 = vmatpush1.bf16.msra.mxu0 0
    %1810 = vmatprep.subr.bf16.mxu0 0
    %1811 = vmatpush1.bf16.msra.mxu0 0
    %1812 = vmatprep.subr.bf16.mxu0 0
    %1813 = vmatpush1.bf16.msra.mxu0 0
    %1814 = vmatprep.subr.bf16.mxu0 0
    %1815 = vmatpush1.bf16.msra.mxu0 0
    %1816 = vmatprep.subr.bf16.mxu0 0
    %1817 = vmatpush1.bf16.msra.mxu0 0
    %1818 = vmatprep.subr.bf16.mxu0 0
    %1819 = vmatpush1.bf16.msra.mxu0 0
    %1820 = vmatprep.subr.bf16.mxu0 0
    %1821 = vmatpush1.bf16.msra.mxu0 0
    %1822 = vmatprep.subr.bf16.mxu0 0
    %1823 = vmatpush1.bf16.msra.mxu0 0
    %1824 = vmatprep.subr.bf16.mxu0 0
    %1825 = vmatpush1.bf16.msra.mxu0 0
    %1826 = vmatprep.subr.bf16.mxu0 0
    %1827 = vmatpush1.bf16.msra.mxu0 0
    %1828 = vmatprep.subr.bf16.mxu0 0
    %1829 = vmatpush1.bf16.msra.mxu0 0
    %1830 = vmatprep.mubr.bf16.mxu0 0
    %1831 = vmatmul.mubr.bf16.gmra.mrb[0].mxu0 %v1796
    %v1832 = vpop.f32.mrb[0].mxu0
    %v1833 = vadd.f32 0.0, %v1832
    %v1834 = vpop.f32.mrb[0].mxu0
    %v1835 = vpop.f32.mrb[0].mxu0
    %v1836 = vpop.f32.mrb[0].mxu0
    %1837 = vdwg.mxu0
    %v1838 = vpack.c.bf16 %v1419, %v1419
    %v1839 = vpack.c.bf16 %v1420, %v1420
    %v1842 = vunpack.c.l.b16 %v1460
    %v1843 = vunpack.c.l.b16 %v1461
    %v1844 = vpack.c.b16 %v1843, %v1842
    %v1847 = vsel %vm1488, %v1839, 0
    %1849 = vmatprep.subr.bf16.mxu0 0
    %1850 = vmatpush1.bf16.msra.mxu0 %v1844
    %1851 = vmatprep.subr.bf16.mxu0 0
    %1852 = vmatpush1.bf16.msra.mxu0 0
    %1853 = vmatprep.subr.bf16.mxu0 0
    %1854 = vmatpush1.bf16.msra.mxu0 0
    %1855 = vmatprep.subr.bf16.mxu0 0
    %1856 = vmatpush1.bf16.msra.mxu0 0
    %1857 = vmatprep.subr.bf16.mxu0 0
    %1858 = vmatpush1.bf16.msra.mxu0 0
    %1859 = vmatprep.subr.bf16.mxu0 0
    %1860 = vmatpush1.bf16.msra.mxu0 0
    %1861 = vmatprep.subr.bf16.mxu0 0
    %1862 = vmatpush1.bf16.msra.mxu0 0
    %1863 = vmatprep.subr.bf16.mxu0 0
    %1864 = vmatpush1.bf16.msra.mxu0 0
    %1865 = vmatprep.subr.bf16.mxu0 0
    %1866 = vmatpush1.bf16.msra.mxu0 0
    %1867 = vmatprep.subr.bf16.mxu0 0
    %1868 = vmatpush1.bf16.msra.mxu0 0
    %1869 = vmatprep.subr.bf16.mxu0 0
    %1870 = vmatpush1.bf16.msra.mxu0 0
    %1871 = vmatprep.subr.bf16.mxu0 0
    %1872 = vmatpush1.bf16.msra.mxu0 0
    %1873 = vmatprep.subr.bf16.mxu0 0
    %1874 = vmatpush1.bf16.msra.mxu0 0
    %1875 = vmatprep.subr.bf16.mxu0 0
    %1876 = vmatpush1.bf16.msra.mxu0 0
    %1877 = vmatprep.subr.bf16.mxu0 0
    %1878 = vmatpush1.bf16.msra.mxu0 0
    %1879 = vmatprep.subr.bf16.mxu0 0
    %1880 = vmatpush1.bf16.msra.mxu0 0
    %1881 = vmatprep.mubr.bf16.mxu0 0
    %1882 = vmatmul.mubr.bf16.gmra.mrb[0].mxu0 %v1847
    %v1883 = vpop.f32.mrb[0].mxu0
    %v1884 = vadd.f32 0.0, %v1883
    %v1885 = vpop.f32.mrb[0].mxu0
    %v1886 = vpop.f32.mrb[0].mxu0
    %v1887 = vpop.f32.mrb[0].mxu0
    %1888 = vdwg.mxu0
    %v1889 = vpack.c.bf16 %v1421, %v1421
    %v1890 = vpack.c.bf16 %v1422, %v1422
    %v1893 = vunpack.c.l.b16 %v1464
    %v1894 = vunpack.c.l.b16 %v1465
    %v1895 = vpack.c.b16 %v1894, %v1893
    %v1898 = vsel %vm1488, %v1890, 0
    %1900 = vmatprep.subr.bf16.mxu0 0
    %1901 = vmatpush1.bf16.msra.mxu0 %v1895
    %1902 = vmatprep.subr.bf16.mxu0 0
    %1903 = vmatpush1.bf16.msra.mxu0 0
    %1904 = vmatprep.subr.bf16.mxu0 0
    %1905 = vmatpush1.bf16.msra.mxu0 0
    %1906 = vmatprep.subr.bf16.mxu0 0
    %1907 = vmatpush1.bf16.msra.mxu0 0
    %1908 = vmatprep.subr.bf16.mxu0 0
    %1909 = vmatpush1.bf16.msra.mxu0 0
    %1910 = vmatprep.subr.bf16.mxu0 0
    %1911 = vmatpush1.bf16.msra.mxu0 0
    %1912 = vmatprep.subr.bf16.mxu0 0
    %1913 = vmatpush1.bf16.msra.mxu0 0
    %1914 = vmatprep.subr.bf16.mxu0 0
    %1915 = vmatpush1.bf16.msra.mxu0 0
    %1916 = vmatprep.subr.bf16.mxu0 0
    %1917 = vmatpush1.bf16.msra.mxu0 0
    %1918 = vmatprep.subr.bf16.mxu0 0
    %1919 = vmatpush1.bf16.msra.mxu0 0
    %1920 = vmatprep.subr.bf16.mxu0 0
    %1921 = vmatpush1.bf16.msra.mxu0 0
    %1922 = vmatprep.subr.bf16.mxu0 0
    %1923 = vmatpush1.bf16.msra.mxu0 0
    %1924 = vmatprep.subr.bf16.mxu0 0
    %1925 = vmatpush1.bf16.msra.mxu0 0
    %1926 = vmatprep.subr.bf16.mxu0 0
    %1927 = vmatpush1.bf16.msra.mxu0 0
    %1928 = vmatprep.subr.bf16.mxu0 0
    %1929 = vmatpush1.bf16.msra.mxu0 0
    %1930 = vmatprep.subr.bf16.mxu0 0
    %1931 = vmatpush1.bf16.msra.mxu0 0
    %1932 = vmatprep.mubr.bf16.mxu0 0
    %1933 = vmatmul.mubr.bf16.gmra.mrb[0].mxu0 %v1898
    %v1934 = vpop.f32.mrb[0].mxu0
    %v1935 = vadd.f32 0.0, %v1934
    %v1936 = vpop.f32.mrb[0].mxu0
    %v1937 = vpop.f32.mrb[0].mxu0
    %v1938 = vpop.f32.mrb[0].mxu0
    %1939 = vdwg.mxu0
    %v1940 = vpack.c.bf16 %v1423, %v1423
    %v1941 = vpack.c.bf16 %v1424, %v1424
    %v1944 = vunpack.c.l.b16 %v1468
    %v1945 = vunpack.c.l.b16 %v1469
    %v1946 = vpack.c.b16 %v1945, %v1944
    %v1949 = vsel %vm1488, %v1941, 0
    %1951 = vmatprep.subr.bf16.mxu0 0
    %1952 = vmatpush1.bf16.msra.mxu0 %v1946
    %1953 = vmatprep.subr.bf16.mxu0 0
    %1954 = vmatpush1.bf16.msra.mxu0 0
    %1955 = vmatprep.subr.bf16.mxu0 0
    %1956 = vmatpush1.bf16.msra.mxu0 0
    %1957 = vmatprep.subr.bf16.mxu0 0
    %1958 = vmatpush1.bf16.msra.mxu0 0
    %1959 = vmatprep.subr.bf16.mxu0 0
    %1960 = vmatpush1.bf16.msra.mxu0 0
    %1961 = vmatprep.subr.bf16.mxu0 0
    %1962 = vmatpush1.bf16.msra.mxu0 0
    %1963 = vmatprep.subr.bf16.mxu0 0
    %1964 = vmatpush1.bf16.msra.mxu0 0
    %1965 = vmatprep.subr.bf16.mxu0 0
    %1966 = vmatpush1.bf16.msra.mxu0 0
    %1967 = vmatprep.subr.bf16.mxu0 0
    %1968 = vmatpush1.bf16.msra.mxu0 0
    %1969 = vmatprep.subr.bf16.mxu0 0
    %1970 = vmatpush1.bf16.msra.mxu0 0
    %1971 = vmatprep.subr.bf16.mxu0 0
    %1972 = vmatpush1.bf16.msra.mxu0 0
    %1973 = vmatprep.subr.bf16.mxu0 0
    %1974 = vmatpush1.bf16.msra.mxu0 0
    %1975 = vmatprep.subr.bf16.mxu0 0
    %1976 = vmatpush1.bf16.msra.mxu0 0
    %1977 = vmatprep.subr.bf16.mxu0 0
    %1978 = vmatpush1.bf16.msra.mxu0 0
    %1979 = vmatprep.subr.bf16.mxu0 0
    %1980 = vmatpush1.bf16.msra.mxu0 0
    %1981 = vmatprep.subr.bf16.mxu0 0
    %1982 = vmatpush1.bf16.msra.mxu0 0
    %1983 = vmatprep.mubr.bf16.mxu0 0
    %1984 = vmatmul.mubr.bf16.gmra.mrb[0].mxu0 %v1949
    %v1985 = vpop.f32.mrb[0].mxu0
    %v1986 = vadd.f32 0.0, %v1985
    %v1987 = vpop.f32.mrb[0].mxu0
    %v1988 = vpop.f32.mrb[0].mxu0
    %v1989 = vpop.f32.mrb[0].mxu0
    %1990 = vdwg.mxu0
    %v1991 = vpack.c.bf16 %v1425, %v1425
    %v1992 = vpack.c.bf16 %v1426, %v1426
    %v1995 = vunpack.c.l.b16 %v1472
    %v1996 = vunpack.c.l.b16 %v1473
    %v1997 = vpack.c.b16 %v1996, %v1995
    %v2000 = vsel %vm1488, %v1992, 0
    %2002 = vmatprep.subr.bf16.mxu0 0
    %2003 = vmatpush1.bf16.msra.mxu0 %v1997
    %2004 = vmatprep.subr.bf16.mxu0 0
    %2005 = vmatpush1.bf16.msra.mxu0 0
    %2006 = vmatprep.subr.bf16.mxu0 0
    %2007 = vmatpush1.bf16.msra.mxu0 0
    %2008 = vmatprep.subr.bf16.mxu0 0
    %2009 = vmatpush1.bf16.msra.mxu0 0
    %2010 = vmatprep.subr.bf16.mxu0 0
    %2011 = vmatpush1.bf16.msra.mxu0 0
    %2012 = vmatprep.subr.bf16.mxu0 0
    %2013 = vmatpush1.bf16.msra.mxu0 0
    %2014 = vmatprep.subr.bf16.mxu0 0
    %2015 = vmatpush1.bf16.msra.mxu0 0
    %2016 = vmatprep.subr.bf16.mxu0 0
    %2017 = vmatpush1.bf16.msra.mxu0 0
    %2018 = vmatprep.subr.bf16.mxu0 0
    %2019 = vmatpush1.bf16.msra.mxu0 0
    %2020 = vmatprep.subr.bf16.mxu0 0
    %2021 = vmatpush1.bf16.msra.mxu0 0
    %2022 = vmatprep.subr.bf16.mxu0 0
    %2023 = vmatpush1.bf16.msra.mxu0 0
    %2024 = vmatprep.subr.bf16.mxu0 0
    %2025 = vmatpush1.bf16.msra.mxu0 0
    %2026 = vmatprep.subr.bf16.mxu0 0
    %2027 = vmatpush1.bf16.msra.mxu0 0
    %2028 = vmatprep.subr.bf16.mxu0 0
    %2029 = vmatpush1.bf16.msra.mxu0 0
    %2030 = vmatprep.subr.bf16.mxu0 0
    %2031 = vmatpush1.bf16.msra.mxu0 0
    %2032 = vmatprep.subr.bf16.mxu0 0
    %2033 = vmatpush1.bf16.msra.mxu0 0
    %2034 = vmatprep.mubr.bf16.mxu0 0
    %2035 = vmatmul.mubr.bf16.gmra.mrb[0].mxu0 %v2000
    %v2036 = vpop.f32.mrb[0].mxu0
    %v2037 = vadd.f32 0.0, %v2036
    %v2038 = vpop.f32.mrb[0].mxu0
    %v2039 = vpop.f32.mrb[0].mxu0
    %v2040 = vpop.f32.mrb[0].mxu0
    %2041 = vdwg.mxu0
    %v2042 = vpack.c.bf16 %v1427, %v1427
    %v2043 = vpack.c.bf16 %v1428, %v1428
    %v2046 = vunpack.c.l.b16 %v1476
    %v2047 = vunpack.c.l.b16 %v1477
    %v2048 = vpack.c.b16 %v2047, %v2046
    %v2051 = vsel %vm1488, %v2043, 0
    %2053 = vmatprep.subr.bf16.mxu0 0
    %2054 = vmatpush1.bf16.msra.mxu0 %v2048
    %2055 = vmatprep.subr.bf16.mxu0 0
    %2056 = vmatpush1.bf16.msra.mxu0 0
    %2057 = vmatprep.subr.bf16.mxu0 0
    %2058 = vmatpush1.bf16.msra.mxu0 0
    %2059 = vmatprep.subr.bf16.mxu0 0
    %2060 = vmatpush1.bf16.msra.mxu0 0
    %2061 = vmatprep.subr.bf16.mxu0 0
    %2062 = vmatpush1.bf16.msra.mxu0 0
    %2063 = vmatprep.subr.bf16.mxu0 0
    %2064 = vmatpush1.bf16.msra.mxu0 0
    %2065 = vmatprep.subr.bf16.mxu0 0
    %2066 = vmatpush1.bf16.msra.mxu0 0
    %2067 = vmatprep.subr.bf16.mxu0 0
    %2068 = vmatpush1.bf16.msra.mxu0 0
    %2069 = vmatprep.subr.bf16.mxu0 0
    %2070 = vmatpush1.bf16.msra.mxu0 0
    %2071 = vmatprep.subr.bf16.mxu0 0
    %2072 = vmatpush1.bf16.msra.mxu0 0
    %2073 = vmatprep.subr.bf16.mxu0 0
    %2074 = vmatpush1.bf16.msra.mxu0 0
    %2075 = vmatprep.subr.bf16.mxu0 0
    %2076 = vmatpush1.bf16.msra.mxu0 0
    %2077 = vmatprep.subr.bf16.mxu0 0
    %2078 = vmatpush1.bf16.msra.mxu0 0
    %2079 = vmatprep.subr.bf16.mxu0 0
    %2080 = vmatpush1.bf16.msra.mxu0 0
    %2081 = vmatprep.subr.bf16.mxu0 0
    %2082 = vmatpush1.bf16.msra.mxu0 0
    %2083 = vmatprep.subr.bf16.mxu0 0
    %2084 = vmatpush1.bf16.msra.mxu0 0
    %2085 = vmatprep.mubr.bf16.mxu0 0
    %2086 = vmatmul.mubr.bf16.gmra.mrb[0].mxu0 %v2051
    %v2087 = vpop.f32.mrb[0].mxu0
    %v2088 = vadd.f32 0.0, %v2087
    %v2089 = vpop.f32.mrb[0].mxu0
    %v2090 = vpop.f32.mrb[0].mxu0
    %v2091 = vpop.f32.mrb[0].mxu0
    %2092 = vdwg.mxu0
    %v2093 = vpack.c.bf16 %v1429, %v1429
    %v2096 = vunpack.c.l.b16 %v1478
    %v2097 = vunpack.c.l.b16 %v1479
    %v2098 = vpack.c.b16 %v2097, %v2096
    %v2101 = vsel %vm1488, %v2093, 0
    %2103 = vmatprep.subr.bf16.mxu0 0
    %2104 = vmatpush1.bf16.msra.mxu0 %v2098
    %2105 = vmatprep.subr.bf16.mxu0 0
    %2106 = vmatpush1.bf16.msra.mxu0 0
    %2107 = vmatprep.subr.bf16.mxu0 0
    %2108 = vmatpush1.bf16.msra.mxu0 0
    %2109 = vmatprep.subr.bf16.mxu0 0
    %2110 = vmatpush1.bf16.msra.mxu0 0
    %2111 = vmatprep.subr.bf16.mxu0 0
    %2112 = vmatpush1.bf16.msra.mxu0 0
    %2113 = vmatprep.subr.bf16.mxu0 0
    %2114 = vmatpush1.bf16.msra.mxu0 0
    %2115 = vmatprep.subr.bf16.mxu0 0
    %2116 = vmatpush1.bf16.msra.mxu0 0
    %2117 = vmatprep.subr.bf16.mxu0 0
    %2118 = vmatpush1.bf16.msra.mxu0 0
    %2119 = vmatprep.subr.bf16.mxu0 0
    %2120 = vmatpush1.bf16.msra.mxu0 0
    %2121 = vmatprep.subr.bf16.mxu0 0
    %2122 = vmatpush1.bf16.msra.mxu0 0
    %2123 = vmatprep.subr.bf16.mxu0 0
    %2124 = vmatpush1.bf16.msra.mxu0 0
    %2125 = vmatprep.subr.bf16.mxu0 0
    %2126 = vmatpush1.bf16.msra.mxu0 0
    %2127 = vmatprep.subr.bf16.mxu0 0
    %2128 = vmatpush1.bf16.msra.mxu0 0
    %2129 = vmatprep.subr.bf16.mxu0 0
    %2130 = vmatpush1.bf16.msra.mxu0 0
    %2131 = vmatprep.subr.bf16.mxu0 0
    %2132 = vmatpush1.bf16.msra.mxu0 0
    %2133 = vmatprep.subr.bf16.mxu0 0
    %2134 = vmatpush1.bf16.msra.mxu0 0
    %2135 = vmatprep.mubr.bf16.mxu0 0
    %2136 = vmatmul.mubr.bf16.gmra.mrb[0].mxu0 %v2101
    %v2137 = vpop.f32.mrb[0].mxu0
    %v2138 = vadd.f32 0.0, %v2137
    %v2139 = vpop.f32.mrb[0].mxu0
    %v2140 = vpop.f32.mrb[0].mxu0
    %v2141 = vpop.f32.mrb[0].mxu0
    %2142 = vdwg.mxu0
    %v2145 = vunpack.c.l.b16 %v1430
    %v2146 = vunpack.c.l.b16 %v1431
    %v2147 = vpack.c.b16 %v2146, %v2145
    %v2150 = vsel %vm1488, %v1480, 0
    %2152 = vmatprep.subr.bf16.mxu0 0
    %2153 = vmatpush1.bf16.msra.mxu0 %v2147
    %2154 = vmatprep.subr.bf16.mxu0 0
    %2155 = vmatpush1.bf16.msra.mxu0 0
    %2156 = vmatprep.subr.bf16.mxu0 0
    %2157 = vmatpush1.bf16.msra.mxu0 0
    %2158 = vmatprep.subr.bf16.mxu0 0
    %2159 = vmatpush1.bf16.msra.mxu0 0
    %2160 = vmatprep.subr.bf16.mxu0 0
    %2161 = vmatpush1.bf16.msra.mxu0 0
    %2162 = vmatprep.subr.bf16.mxu0 0
    %2163 = vmatpush1.bf16.msra.mxu0 0
    %2164 = vmatprep.subr.bf16.mxu0 0
    %2165 = vmatpush1.bf16.msra.mxu0 0
    %2166 = vmatprep.subr.bf16.mxu0 0
    %2167 = vmatpush1.bf16.msra.mxu0 0
    %2168 = vmatprep.subr.bf16.mxu0 0
    %2169 = vmatpush1.bf16.msra.mxu0 0
    %2170 = vmatprep.subr.bf16.mxu0 0
    %2171 = vmatpush1.bf16.msra.mxu0 0
    %2172 = vmatprep.subr.bf16.mxu0 0
    %2173 = vmatpush1.bf16.msra.mxu0 0
    %2174 = vmatprep.subr.bf16.mxu0 0
    %2175 = vmatpush1.bf16.msra.mxu0 0
    %2176 = vmatprep.subr.bf16.mxu0 0
    %2177 = vmatpush1.bf16.msra.mxu0 0
    %2178 = vmatprep.subr.bf16.mxu0 0
    %2179 = vmatpush1.bf16.msra.mxu0 0
    %2180 = vmatprep.subr.bf16.mxu0 0
    %2181 = vmatpush1.bf16.msra.mxu0 0
    %2182 = vmatprep.subr.bf16.mxu0 0
    %2183 = vmatpush1.bf16.msra.mxu0 0
    %2184 = vmatprep.mubr.bf16.mxu0 0
    %2185 = vmatmul.mubr.bf16.gmra.mrb[0].mxu0 %v2150
    %v2186 = vpop.f32.mrb[0].mxu0
    %v2187 = vadd.f32 %v1527, %v2186
    %v2188 = vpop.f32.mrb[0].mxu0
    %v2189 = vpop.f32.mrb[0].mxu0
    %v2190 = vpop.f32.mrb[0].mxu0
    %2191 = vdwg.mxu0
    %v2194 = vunpack.c.l.b16 %v1434
    %v2195 = vunpack.c.l.b16 %v1435
    %v2196 = vpack.c.b16 %v2195, %v2194
    %v2199 = vsel %vm1488, %v1532, 0
    %2201 = vmatprep.subr.bf16.mxu0 0
    %2202 = vmatpush1.bf16.msra.mxu0 %v2196
    %2203 = vmatprep.subr.bf16.mxu0 0
    %2204 = vmatpush1.bf16.msra.mxu0 0
    %2205 = vmatprep.subr.bf16.mxu0 0
    %2206 = vmatpush1.bf16.msra.mxu0 0
    %2207 = vmatprep.subr.bf16.mxu0 0
    %2208 = vmatpush1.bf16.msra.mxu0 0
    %2209 = vmatprep.subr.bf16.mxu0 0
    %2210 = vmatpush1.bf16.msra.mxu0 0
    %2211 = vmatprep.subr.bf16.mxu0 0
    %2212 = vmatpush1.bf16.msra.mxu0 0
    %2213 = vmatprep.subr.bf16.mxu0 0
    %2214 = vmatpush1.bf16.msra.mxu0 0
    %2215 = vmatprep.subr.bf16.mxu0 0
    %2216 = vmatpush1.bf16.msra.mxu0 0
    %2217 = vmatprep.subr.bf16.mxu0 0
    %2218 = vmatpush1.bf16.msra.mxu0 0
    %2219 = vmatprep.subr.bf16.mxu0 0
    %2220 = vmatpush1.bf16.msra.mxu0 0
    %2221 = vmatprep.subr.bf16.mxu0 0
    %2222 = vmatpush1.bf16.msra.mxu0 0
    %2223 = vmatprep.subr.bf16.mxu0 0
    %2224 = vmatpush1.bf16.msra.mxu0 0
    %2225 = vmatprep.subr.bf16.mxu0 0
    %2226 = vmatpush1.bf16.msra.mxu0 0
    %2227 = vmatprep.subr.bf16.mxu0 0
    %2228 = vmatpush1.bf16.msra.mxu0 0
    %2229 = vmatprep.subr.bf16.mxu0 0
    %2230 = vmatpush1.bf16.msra.mxu0 0
    %2231 = vmatprep.subr.bf16.mxu0 0
    %2232 = vmatpush1.bf16.msra.mxu0 0
    %2233 = vmatprep.mubr.bf16.mxu0 0
    %2234 = vmatmul.mubr.bf16.gmra.mrb[0].mxu0 %v2199
    %v2235 = vpop.f32.mrb[0].mxu0
    %v2236 = vadd.f32 %v1578, %v2235
    %v2237 = vpop.f32.mrb[0].mxu0
    %v2238 = vpop.f32.mrb[0].mxu0
    %v2239 = vpop.f32.mrb[0].mxu0
    %2240 = vdwg.mxu0
    %v2243 = vunpack.c.l.b16 %v1438
    %v2244 = vunpack.c.l.b16 %v1439
    %v2245 = vpack.c.b16 %v2244, %v2243
    %v2248 = vsel %vm1488, %v1583, 0
    %2250 = vmatprep.subr.bf16.mxu0 0
    %2251 = vmatpush1.bf16.msra.mxu0 %v2245
    %2252 = vmatprep.subr.bf16.mxu0 0
    %2253 = vmatpush1.bf16.msra.mxu0 0
    %2254 = vmatprep.subr.bf16.mxu0 0
    %2255 = vmatpush1.bf16.msra.mxu0 0
    %2256 = vmatprep.subr.bf16.mxu0 0
    %2257 = vmatpush1.bf16.msra.mxu0 0
    %2258 = vmatprep.subr.bf16.mxu0 0
    %2259 = vmatpush1.bf16.msra.mxu0 0
    %2260 = vmatprep.subr.bf16.mxu0 0
    %2261 = vmatpush1.bf16.msra.mxu0 0
    %2262 = vmatprep.subr.bf16.mxu0 0
    %2263 = vmatpush1.bf16.msra.mxu0 0
    %2264 = vmatprep.subr.bf16.mxu0 0
    %2265 = vmatpush1.bf16.msra.mxu0 0
    %2266 = vmatprep.subr.bf16.mxu0 0
    %2267 = vmatpush1.bf16.msra.mxu0 0
    %2268 = vmatprep.subr.bf16.mxu0 0
    %2269 = vmatpush1.bf16.msra.mxu0 0
    %2270 = vmatprep.subr.bf16.mxu0 0
    %2271 = vmatpush1.bf16.msra.mxu0 0
    %2272 = vmatprep.subr.bf16.mxu0 0
    %2273 = vmatpush1.bf16.msra.mxu0 0
    %2274 = vmatprep.subr.bf16.mxu0 0
    %2275 = vmatpush1.bf16.msra.mxu0 0
    %2276 = vmatprep.subr.bf16.mxu0 0
    %2277 = vmatpush1.bf16.msra.mxu0 0
    %2278 = vmatprep.subr.bf16.mxu0 0
    %2279 = vmatpush1.bf16.msra.mxu0 0
    %2280 = vmatprep.subr.bf16.mxu0 0
    %2281 = vmatpush1.bf16.msra.mxu0 0
    %2282 = vmatprep.mubr.bf16.mxu0 0
    %2283 = vmatmul.mubr.bf16.gmra.mrb[0].mxu0 %v2248
    %v2284 = vpop.f32.mrb[0].mxu0
    %v2285 = vadd.f32 %v1629, %v2284
    %v2286 = vpop.f32.mrb[0].mxu0
    %v2287 = vpop.f32.mrb[0].mxu0
    %v2288 = vpop.f32.mrb[0].mxu0
    %2289 = vdwg.mxu0
    %v2292 = vunpack.c.l.b16 %v1442
    %v2293 = vunpack.c.l.b16 %v1443
    %v2294 = vpack.c.b16 %v2293, %v2292
    %v2297 = vsel %vm1488, %v1634, 0
    %2299 = vmatprep.subr.bf16.mxu0 0
    %2300 = vmatpush1.bf16.msra.mxu0 %v2294
    %2301 = vmatprep.subr.bf16.mxu0 0
    %2302 = vmatpush1.bf16.msra.mxu0 0
    %2303 = vmatprep.subr.bf16.mxu0 0
    %2304 = vmatpush1.bf16.msra.mxu0 0
    %2305 = vmatprep.subr.bf16.mxu0 0
    %2306 = vmatpush1.bf16.msra.mxu0 0
    %2307 = vmatprep.subr.bf16.mxu0 0
    %2308 = vmatpush1.bf16.msra.mxu0 0
    %2309 = vmatprep.subr.bf16.mxu0 0
    %2310 = vmatpush1.bf16.msra.mxu0 0
    %2311 = vmatprep.subr.bf16.mxu0 0
    %2312 = vmatpush1.bf16.msra.mxu0 0
    %2313 = vmatprep.subr.bf16.mxu0 0
    %2314 = vmatpush1.bf16.msra.mxu0 0
    %2315 = vmatprep.subr.bf16.mxu0 0
    %2316 = vmatpush1.bf16.msra.mxu0 0
    %2317 = vmatprep.subr.bf16.mxu0 0
    %2318 = vmatpush1.bf16.msra.mxu0 0
    %2319 = vmatprep.subr.bf16.mxu0 0
    %2320 = vmatpush1.bf16.msra.mxu0 0
    %2321 = vmatprep.subr.bf16.mxu0 0
    %2322 = vmatpush1.bf16.msra.mxu0 0
    %2323 = vmatprep.subr.bf16.mxu0 0
    %2324 = vmatpush1.bf16.msra.mxu0 0
    %2325 = vmatprep.subr.bf16.mxu0 0
    %2326 = vmatpush1.bf16.msra.mxu0 0
    %2327 = vmatprep.subr.bf16.mxu0 0
    %2328 = vmatpush1.bf16.msra.mxu0 0
    %2329 = vmatprep.subr.bf16.mxu0 0
    %2330 = vmatpush1.bf16.msra.mxu0 0
    %2331 = vmatprep.mubr.bf16.mxu0 0
    %2332 = vmatmul.mubr.bf16.gmra.mrb[0].mxu0 %v2297
    %v2333 = vpop.f32.mrb[0].mxu0
    %v2334 = vadd.f32 %v1680, %v2333
    %v2335 = vpop.f32.mrb[0].mxu0
    %v2336 = vpop.f32.mrb[0].mxu0
    %v2337 = vpop.f32.mrb[0].mxu0
    %2338 = vdwg.mxu0
    %v2341 = vunpack.c.l.b16 %v1446
    %v2342 = vunpack.c.l.b16 %v1447
    %v2343 = vpack.c.b16 %v2342, %v2341
    %v2346 = vsel %vm1488, %v1685, 0
    %2348 = vmatprep.subr.bf16.mxu0 0
    %2349 = vmatpush1.bf16.msra.mxu0 %v2343
    %2350 = vmatprep.subr.bf16.mxu0 0
    %2351 = vmatpush1.bf16.msra.mxu0 0
    %2352 = vmatprep.subr.bf16.mxu0 0
    %2353 = vmatpush1.bf16.msra.mxu0 0
    %2354 = vmatprep.subr.bf16.mxu0 0
    %2355 = vmatpush1.bf16.msra.mxu0 0
    %2356 = vmatprep.subr.bf16.mxu0 0
    %2357 = vmatpush1.bf16.msra.mxu0 0
    %2358 = vmatprep.subr.bf16.mxu0 0
    %2359 = vmatpush1.bf16.msra.mxu0 0
    %2360 = vmatprep.subr.bf16.mxu0 0
    %2361 = vmatpush1.bf16.msra.mxu0 0
    %2362 = vmatprep.subr.bf16.mxu0 0
    %2363 = vmatpush1.bf16.msra.mxu0 0
    %2364 = vmatprep.subr.bf16.mxu0 0
    %2365 = vmatpush1.bf16.msra.mxu0 0
    %2366 = vmatprep.subr.bf16.mxu0 0
    %2367 = vmatpush1.bf16.msra.mxu0 0
    %2368 = vmatprep.subr.bf16.mxu0 0
    %2369 = vmatpush1.bf16.msra.mxu0 0
    %2370 = vmatprep.subr.bf16.mxu0 0
    %2371 = vmatpush1.bf16.msra.mxu0 0
    %2372 = vmatprep.subr.bf16.mxu0 0
    %2373 = vmatpush1.bf16.msra.mxu0 0
    %2374 = vmatprep.subr.bf16.mxu0 0
    %2375 = vmatpush1.bf16.msra.mxu0 0
    %2376 = vmatprep.subr.bf16.mxu0 0
    %2377 = vmatpush1.bf16.msra.mxu0 0
    %2378 = vmatprep.subr.bf16.mxu0 0
    %2379 = vmatpush1.bf16.msra.mxu0 0
    %2380 = vmatprep.mubr.bf16.mxu0 0
    %2381 = vmatmul.mubr.bf16.gmra.mrb[0].mxu0 %v2346
    %v2382 = vpop.f32.mrb[0].mxu0
    %v2383 = vadd.f32 %v1731, %v2382
    %v2384 = vpop.f32.mrb[0].mxu0
    %v2385 = vpop.f32.mrb[0].mxu0
    %v2386 = vpop.f32.mrb[0].mxu0
    %2387 = vdwg.mxu0
    %v2390 = vunpack.c.l.b16 %v1450
    %v2391 = vunpack.c.l.b16 %v1451
    %v2392 = vpack.c.b16 %v2391, %v2390
    %v2395 = vsel %vm1488, %v1736, 0
    %2397 = vmatprep.subr.bf16.mxu0 0
    %2398 = vmatpush1.bf16.msra.mxu0 %v2392
    %2399 = vmatprep.subr.bf16.mxu0 0
    %2400 = vmatpush1.bf16.msra.mxu0 0
    %2401 = vmatprep.subr.bf16.mxu0 0
    %2402 = vmatpush1.bf16.msra.mxu0 0
    %2403 = vmatprep.subr.bf16.mxu0 0
    %2404 = vmatpush1.bf16.msra.mxu0 0
    %2405 = vmatprep.subr.bf16.mxu0 0
    %2406 = vmatpush1.bf16.msra.mxu0 0
    %2407 = vmatprep.subr.bf16.mxu0 0
    %2408 = vmatpush1.bf16.msra.mxu0 0
    %2409 = vmatprep.subr.bf16.mxu0 0
    %2410 = vmatpush1.bf16.msra.mxu0 0
    %2411 = vmatprep.subr.bf16.mxu0 0
    %2412 = vmatpush1.bf16.msra.mxu0 0
    %2413 = vmatprep.subr.bf16.mxu0 0
    %2414 = vmatpush1.bf16.msra.mxu0 0
    %2415 = vmatprep.subr.bf16.mxu0 0
    %2416 = vmatpush1.bf16.msra.mxu0 0
    %2417 = vmatprep.subr.bf16.mxu0 0
    %2418 = vmatpush1.bf16.msra.mxu0 0
    %2419 = vmatprep.subr.bf16.mxu0 0
    %2420 = vmatpush1.bf16.msra.mxu0 0
    %2421 = vmatprep.subr.bf16.mxu0 0
    %2422 = vmatpush1.bf16.msra.mxu0 0
    %2423 = vmatprep.subr.bf16.mxu0 0
    %2424 = vmatpush1.bf16.msra.mxu0 0
    %2425 = vmatprep.subr.bf16.mxu0 0
    %2426 = vmatpush1.bf16.msra.mxu0 0
    %2427 = vmatprep.subr.bf16.mxu0 0
    %2428 = vmatpush1.bf16.msra.mxu0 0
    %2429 = vmatprep.mubr.bf16.mxu0 0
    %2430 = vmatmul.mubr.bf16.gmra.mrb[0].mxu0 %v2395
    %v2431 = vpop.f32.mrb[0].mxu0
    %v2432 = vadd.f32 %v1782, %v2431
    %v2433 = vpop.f32.mrb[0].mxu0
    %v2434 = vpop.f32.mrb[0].mxu0
    %v2435 = vpop.f32.mrb[0].mxu0
    %2436 = vdwg.mxu0
    %v2439 = vunpack.c.l.b16 %v1454
    %v2440 = vunpack.c.l.b16 %v1455
    %v2441 = vpack.c.b16 %v2440, %v2439
    %v2444 = vsel %vm1488, %v1787, 0
    %2446 = vmatprep.subr.bf16.mxu0 0
    %2447 = vmatpush1.bf16.msra.mxu0 %v2441
    %2448 = vmatprep.subr.bf16.mxu0 0
    %2449 = vmatpush1.bf16.msra.mxu0 0
    %2450 = vmatprep.subr.bf16.mxu0 0
    %2451 = vmatpush1.bf16.msra.mxu0 0
    %2452 = vmatprep.subr.bf16.mxu0 0
    %2453 = vmatpush1.bf16.msra.mxu0 0
    %2454 = vmatprep.subr.bf16.mxu0 0
    %2455 = vmatpush1.bf16.msra.mxu0 0
    %2456 = vmatprep.subr.bf16.mxu0 0
    %2457 = vmatpush1.bf16.msra.mxu0 0
    %2458 = vmatprep.subr.bf16.mxu0 0
    %2459 = vmatpush1.bf16.msra.mxu0 0
    %2460 = vmatprep.subr.bf16.mxu0 0
    %2461 = vmatpush1.bf16.msra.mxu0 0
    %2462 = vmatprep.subr.bf16.mxu0 0
    %2463 = vmatpush1.bf16.msra.mxu0 0
    %2464 = vmatprep.subr.bf16.mxu0 0
    %2465 = vmatpush1.bf16.msra.mxu0 0
    %2466 = vmatprep.subr.bf16.mxu0 0
    %2467 = vmatpush1.bf16.msra.mxu0 0
    %2468 = vmatprep.subr.bf16.mxu0 0
    %2469 = vmatpush1.bf16.msra.mxu0 0
    %2470 = vmatprep.subr.bf16.mxu0 0
    %2471 = vmatpush1.bf16.msra.mxu0 0
    %2472 = vmatprep.subr.bf16.mxu0 0
    %2473 = vmatpush1.bf16.msra.mxu0 0
    %2474 = vmatprep.subr.bf16.mxu0 0
    %2475 = vmatpush1.bf16.msra.mxu0 0
    %2476 = vmatprep.subr.bf16.mxu0 0
    %2477 = vmatpush1.bf16.msra.mxu0 0
    %2478 = vmatprep.mubr.bf16.mxu0 0
    %2479 = vmatmul.mubr.bf16.gmra.mrb[0].mxu0 %v2444
    %v2480 = vpop.f32.mrb[0].mxu0
    %v2481 = vadd.f32 %v1833, %v2480
    %v2482 = vpop.f32.mrb[0].mxu0
    %v2483 = vpop.f32.mrb[0].mxu0
    %v2484 = vpop.f32.mrb[0].mxu0
    %2485 = vdwg.mxu0
    %v2488 = vunpack.c.l.b16 %v1458
    %v2489 = vunpack.c.l.b16 %v1459
    %v2490 = vpack.c.b16 %v2489, %v2488
    %v2493 = vsel %vm1488, %v1838, 0
    %2495 = vmatprep.subr.bf16.mxu0 0
    %2496 = vmatpush1.bf16.msra.mxu0 %v2490
    %2497 = vmatprep.subr.bf16.mxu0 0
    %2498 = vmatpush1.bf16.msra.mxu0 0
    %2499 = vmatprep.subr.bf16.mxu0 0
    %2500 = vmatpush1.bf16.msra.mxu0 0
    %2501 = vmatprep.subr.bf16.mxu0 0
    %2502 = vmatpush1.bf16.msra.mxu0 0
    %2503 = vmatprep.subr.bf16.mxu0 0
    %2504 = vmatpush1.bf16.msra.mxu0 0
    %2505 = vmatprep.subr.bf16.mxu0 0
    %2506 = vmatpush1.bf16.msra.mxu0 0
    %2507 = vmatprep.subr.bf16.mxu0 0
    %2508 = vmatpush1.bf16.msra.mxu0 0
    %2509 = vmatprep.subr.bf16.mxu0 0
    %2510 = vmatpush1.bf16.msra.mxu0 0
    %2511 = vmatprep.subr.bf16.mxu0 0
    %2512 = vmatpush1.bf16.msra.mxu0 0
    %2513 = vmatprep.subr.bf16.mxu0 0
    %2514 = vmatpush1.bf16.msra.mxu0 0
    %2515 = vmatprep.subr.bf16.mxu0 0
    %2516 = vmatpush1.bf16.msra.mxu0 0
    %2517 = vmatprep.subr.bf16.mxu0 0
    %2518 = vmatpush1.bf16.msra.mxu0 0
    %2519 = vmatprep.subr.bf16.mxu0 0
    %2520 = vmatpush1.bf16.msra.mxu0 0
    %2521 = vmatprep.subr.bf16.mxu0 0
    %2522 = vmatpush1.bf16.msra.mxu0 0
    %2523 = vmatprep.subr.bf16.mxu0 0
    %2524 = vmatpush1.bf16.msra.mxu0 0
    %2525 = vmatprep.subr.bf16.mxu0 0
    %2526 = vmatpush1.bf16.msra.mxu0 0
    %2527 = vmatprep.mubr.bf16.mxu0 0
    %2528 = vmatmul.mubr.bf16.gmra.mrb[0].mxu0 %v2493
    %v2529 = vpop.f32.mrb[0].mxu0
    %v2530 = vadd.f32 %v1884, %v2529
    %v2531 = vpop.f32.mrb[0].mxu0
    %v2532 = vpop.f32.mrb[0].mxu0
    %v2533 = vpop.f32.mrb[0].mxu0
    %2534 = vdwg.mxu0
    %v2537 = vunpack.c.l.b16 %v1462
    %v2538 = vunpack.c.l.b16 %v1463
    %v2539 = vpack.c.b16 %v2538, %v2537
    %v2542 = vsel %vm1488, %v1889, 0
    %2544 = vmatprep.subr.bf16.mxu0 0
    %2545 = vmatpush1.bf16.msra.mxu0 %v2539
    %2546 = vmatprep.subr.bf16.mxu0 0
    %2547 = vmatpush1.bf16.msra.mxu0 0
    %2548 = vmatprep.subr.bf16.mxu0 0
    %2549 = vmatpush1.bf16.msra.mxu0 0
    %2550 = vmatprep.subr.bf16.mxu0 0
    %2551 = vmatpush1.bf16.msra.mxu0 0
    %2552 = vmatprep.subr.bf16.mxu0 0
    %2553 = vmatpush1.bf16.msra.mxu0 0
    %2554 = vmatprep.subr.bf16.mxu0 0
    %2555 = vmatpush1.bf16.msra.mxu0 0
    %2556 = vmatprep.subr.bf16.mxu0 0
    %2557 = vmatpush1.bf16.msra.mxu0 0
    %2558 = vmatprep.subr.bf16.mxu0 0
    %2559 = vmatpush1.bf16.msra.mxu0 0
    %2560 = vmatprep.subr.bf16.mxu0 0
    %2561 = vmatpush1.bf16.msra.mxu0 0
    %2562 = vmatprep.subr.bf16.mxu0 0
    %2563 = vmatpush1.bf16.msra.mxu0 0
    %2564 = vmatprep.subr.bf16.mxu0 0
    %2565 = vmatpush1.bf16.msra.mxu0 0
    %2566 = vmatprep.subr.bf16.mxu0 0
    %2567 = vmatpush1.bf16.msra.mxu0 0
    %2568 = vmatprep.subr.bf16.mxu0 0
    %2569 = vmatpush1.bf16.msra.mxu0 0
    %2570 = vmatprep.subr.bf16.mxu0 0
    %2571 = vmatpush1.bf16.msra.mxu0 0
    %2572 = vmatprep.subr.bf16.mxu0 0
    %2573 = vmatpush1.bf16.msra.mxu0 0
    %2574 = vmatprep.subr.bf16.mxu0 0
    %2575 = vmatpush1.bf16.msra.mxu0 0
    %2576 = vmatprep.mubr.bf16.mxu0 0
    %2577 = vmatmul.mubr.bf16.gmra.mrb[0].mxu0 %v2542
    %v2578 = vpop.f32.mrb[0].mxu0
    %v2579 = vadd.f32 %v1935, %v2578
    %v2580 = vpop.f32.mrb[0].mxu0
    %v2581 = vpop.f32.mrb[0].mxu0
    %v2582 = vpop.f32.mrb[0].mxu0
    %2583 = vdwg.mxu0
    %v2586 = vunpack.c.l.b16 %v1466
    %v2587 = vunpack.c.l.b16 %v1467
    %v2588 = vpack.c.b16 %v2587, %v2586
    %v2591 = vsel %vm1488, %v1940, 0
    %2593 = vmatprep.subr.bf16.mxu0 0
    %2594 = vmatpush1.bf16.msra.mxu0 %v2588
    %2595 = vmatprep.subr.bf16.mxu0 0
    %2596 = vmatpush1.bf16.msra.mxu0 0
    %2597 = vmatprep.subr.bf16.mxu0 0
    %2598 = vmatpush1.bf16.msra.mxu0 0
    %2599 = vmatprep.subr.bf16.mxu0 0
    %2600 = vmatpush1.bf16.msra.mxu0 0
    %2601 = vmatprep.subr.bf16.mxu0 0
    %2602 = vmatpush1.bf16.msra.mxu0 0
    %2603 = vmatprep.subr.bf16.mxu0 0
    %2604 = vmatpush1.bf16.msra.mxu0 0
    %2605 = vmatprep.subr.bf16.mxu0 0
    %2606 = vmatpush1.bf16.msra.mxu0 0
    %2607 = vmatprep.subr.bf16.mxu0 0
    %2608 = vmatpush1.bf16.msra.mxu0 0
    %2609 = vmatprep.subr.bf16.mxu0 0
    %2610 = vmatpush1.bf16.msra.mxu0 0
    %2611 = vmatprep.subr.bf16.mxu0 0
    %2612 = vmatpush1.bf16.msra.mxu0 0
    %2613 = vmatprep.subr.bf16.mxu0 0
    %2614 = vmatpush1.bf16.msra.mxu0 0
    %2615 = vmatprep.subr.bf16.mxu0 0
    %2616 = vmatpush1.bf16.msra.mxu0 0
    %2617 = vmatprep.subr.bf16.mxu0 0
    %2618 = vmatpush1.bf16.msra.mxu0 0
    %2619 = vmatprep.subr.bf16.mxu0 0
    %2620 = vmatpush1.bf16.msra.mxu0 0
    %2621 = vmatprep.subr.bf16.mxu0 0
    %2622 = vmatpush1.bf16.msra.mxu0 0
    %2623 = vmatprep.subr.bf16.mxu0 0
    %2624 = vmatpush1.bf16.msra.mxu0 0
    %2625 = vmatprep.mubr.bf16.mxu0 0
    %2626 = vmatmul.mubr.bf16.gmra.mrb[0].mxu0 %v2591
    %v2627 = vpop.f32.mrb[0].mxu0
    %v2628 = vadd.f32 %v1986, %v2627
    %v2629 = vpop.f32.mrb[0].mxu0
    %v2630 = vpop.f32.mrb[0].mxu0
    %v2631 = vpop.f32.mrb[0].mxu0
    %2632 = vdwg.mxu0
    %v2635 = vunpack.c.l.b16 %v1470
    %v2636 = vunpack.c.l.b16 %v1471
    %v2637 = vpack.c.b16 %v2636, %v2635
    %v2640 = vsel %vm1488, %v1991, 0
    %2642 = vmatprep.subr.bf16.mxu0 0
    %2643 = vmatpush1.bf16.msra.mxu0 %v2637
    %2644 = vmatprep.subr.bf16.mxu0 0
    %2645 = vmatpush1.bf16.msra.mxu0 0
    %2646 = vmatprep.subr.bf16.mxu0 0
    %2647 = vmatpush1.bf16.msra.mxu0 0
    %2648 = vmatprep.subr.bf16.mxu0 0
    %2649 = vmatpush1.bf16.msra.mxu0 0
    %2650 = vmatprep.subr.bf16.mxu0 0
    %2651 = vmatpush1.bf16.msra.mxu0 0
    %2652 = vmatprep.subr.bf16.mxu0 0
    %2653 = vmatpush1.bf16.msra.mxu0 0
    %2654 = vmatprep.subr.bf16.mxu0 0
    %2655 = vmatpush1.bf16.msra.mxu0 0
    %2656 = vmatprep.subr.bf16.mxu0 0
    %2657 = vmatpush1.bf16.msra.mxu0 0
    %2658 = vmatprep.subr.bf16.mxu0 0
    %2659 = vmatpush1.bf16.msra.mxu0 0
    %2660 = vmatprep.subr.bf16.mxu0 0
    %2661 = vmatpush1.bf16.msra.mxu0 0
    %2662 = vmatprep.subr.bf16.mxu0 0
    %2663 = vmatpush1.bf16.msra.mxu0 0
    %2664 = vmatprep.subr.bf16.mxu0 0
    %2665 = vmatpush1.bf16.msra.mxu0 0
    %2666 = vmatprep.subr.bf16.mxu0 0
    %2667 = vmatpush1.bf16.msra.mxu0 0
    %2668 = vmatprep.subr.bf16.mxu0 0
    %2669 = vmatpush1.bf16.msra.mxu0 0
    %2670 = vmatprep.subr.bf16.mxu0 0
    %2671 = vmatpush1.bf16.msra.mxu0 0
    %2672 = vmatprep.subr.bf16.mxu0 0
    %2673 = vmatpush1.bf16.msra.mxu0 0
    %2674 = vmatprep.mubr.bf16.mxu0 0
    %2675 = vmatmul.mubr.bf16.gmra.mrb[0].mxu0 %v2640
    %v2676 = vpop.f32.mrb[0].mxu0
    %v2677 = vadd.f32 %v2037, %v2676
    %v2678 = vpop.f32.mrb[0].mxu0
    %v2679 = vpop.f32.mrb[0].mxu0
    %v2680 = vpop.f32.mrb[0].mxu0
    %2681 = vdwg.mxu0
    %v2684 = vunpack.c.l.b16 %v1474
    %v2685 = vunpack.c.l.b16 %v1475
    %v2686 = vpack.c.b16 %v2685, %v2684
    %v2689 = vsel %vm1488, %v2042, 0
    %2691 = vmatprep.subr.bf16.mxu0 0
    %2692 = vmatpush1.bf16.msra.mxu0 %v2686
    %2693 = vmatprep.subr.bf16.mxu0 0
    %2694 = vmatpush1.bf16.msra.mxu0 0
    %2695 = vmatprep.subr.bf16.mxu0 0
    %2696 = vmatpush1.bf16.msra.mxu0 0
    %2697 = vmatprep.subr.bf16.mxu0 0
    %2698 = vmatpush1.bf16.msra.mxu0 0
    %2699 = vmatprep.subr.bf16.mxu0 0
    %2700 = vmatpush1.bf16.msra.mxu0 0
    %2701 = vmatprep.subr.bf16.mxu0 0
    %2702 = vmatpush1.bf16.msra.mxu0 0
    %2703 = vmatprep.subr.bf16.mxu0 0
    %2704 = vmatpush1.bf16.msra.mxu0 0
    %2705 = vmatprep.subr.bf16.mxu0 0
    %2706 = vmatpush1.bf16.msra.mxu0 0
    %2707 = vmatprep.subr.bf16.mxu0 0
    %2708 = vmatpush1.bf16.msra.mxu0 0
    %2709 = vmatprep.subr.bf16.mxu0 0
    %2710 = vmatpush1.bf16.msra.mxu0 0
    %2711 = vmatprep.subr.bf16.mxu0 0
    %2712 = vmatpush1.bf16.msra.mxu0 0
    %2713 = vmatprep.subr.bf16.mxu0 0
    %2714 = vmatpush1.bf16.msra.mxu0 0
    %2715 = vmatprep.subr.bf16.mxu0 0
    %2716 = vmatpush1.bf16.msra.mxu0 0
    %2717 = vmatprep.subr.bf16.mxu0 0
    %2718 = vmatpush1.bf16.msra.mxu0 0
    %2719 = vmatprep.subr.bf16.mxu0 0
    %2720 = vmatpush1.bf16.msra.mxu0 0
    %2721 = vmatprep.subr.bf16.mxu0 0
    %2722 = vmatpush1.bf16.msra.mxu0 0
    %2723 = vmatprep.mubr.bf16.mxu0 0
    %2724 = vmatmul.mubr.bf16.gmra.mrb[0].mxu0 %v2689
    %v2725 = vpop.f32.mrb[0].mxu0
    %v2726 = vadd.f32 %v2088, %v2725
    %v2727 = vpop.f32.mrb[0].mxu0
    %v2728 = vpop.f32.mrb[0].mxu0
    %v2729 = vpop.f32.mrb[0].mxu0
    %2730 = vdwg.mxu0
    %v2731 = vadd.f32 %v2187, %v2236
    %v2732 = vadd.f32 %v2285, %v2334
    %v2733 = vadd.f32 %v2383, %v2432
    %v2734 = vadd.f32 %v2481, %v2530
    %v2735 = vadd.f32 %v2579, %v2628
    %v2736 = vadd.f32 %v2677, %v2726
    %v2737 = vadd.f32 %v2731, %v2732
    %v2738 = vadd.f32 %v2733, %v2734
    %v2739 = vadd.f32 %v2735, %v2736
    %v2740 = vadd.f32 %v2737, %v2738
    %v2741 = vadd.f32 %v2739, %v2138
    %v2742 = vadd.f32 %v2740, %v2741
    %v2743 = vld [vmem:[%s4] sm:$0x1]
    %v2745 = vlaneseq
    %v2746 = vshrl.u32 %v2745, 7
    %v2747 = vsub.s32 0, %v2746
    %v2748 = vrot.slane %v2743, %v2747
    %v2750 = vadd.f32 %v2742, %v2748
    %v2751 = vmax.f32 %v2750, 0.0
    %v2752 = vpack.c.bf16 %v2751, %v2751
    %v2753 = vld [vmem:[%s5] sm:$0xf]
    %v2754 = vld [vmem:[%s5 + $0x4] sm:$0xf]
    %v2755 = vld [vmem:[%s5 + $0x8] sm:$0xf]
    %v2756 = vld [vmem:[%s5 + $0xc] sm:$0xf]
    %v2757 = vld [vmem:[%s5 + $0x10] sm:$0xf]
    %v2758 = vld [vmem:[%s5 + $0x14] sm:$0xf]
    %v2759 = vld [vmem:[%s5 + $0x18] sm:$0xf]
    %v2760 = vld [vmem:[%s5 + $0x1c] sm:$0xf]
    %v2761 = vld [vmem:[%s5 + $0x20] sm:$0xf]
    %v2762 = vld [vmem:[%s5 + $0x24] sm:$0xf]
    %v2763 = vld [vmem:[%s5 + $0x28] sm:$0xf]
    %v2764 = vld [vmem:[%s5 + $0x2c] sm:$0xf]
    %v2765 = vld [vmem:[%s5 + $0x30] sm:$0xf]
    %v2766 = vld [vmem:[%s5 + $0x34] sm:$0xf]
    %v2767 = vld [vmem:[%s5 + $0x38] sm:$0xf]
    %v2768 = vld [vmem:[%s5 + $0x3c] sm:$0xf]
    %v2769 = vld [vmem:[%s6] sm:$0x1]
    %v2771 = vlaneseq
    %v2772 = vshrl.u32 %v2771, 7
    %v2773 = vsub.s32 0, %v2772
    %v2774 = vrot.slane %v2769, %v2773
    %v2792 = vunpack.c.l.b16 %v2753
    %v2793 = vunpack.c.l.b16 %v2754
    %v2794 = vunpack.c.l.b16 %v2755
    %v2795 = vunpack.c.l.b16 %v2756
    %v2796 = vunpack.c.l.b16 %v2757
    %v2797 = vunpack.c.l.b16 %v2758
    %v2798 = vunpack.c.l.b16 %v2759
    %v2799 = vunpack.c.l.b16 %v2760
    %v2800 = vunpack.c.l.b16 %v2761
    %v2801 = vunpack.c.l.b16 %v2762
    %v2802 = vunpack.c.l.b16 %v2763
    %v2803 = vunpack.c.l.b16 %v2764
    %v2804 = vunpack.c.l.b16 %v2765
    %v2805 = vunpack.c.l.b16 %v2766
    %v2806 = vunpack.c.l.b16 %v2767
    %v2807 = vunpack.c.l.b16 %v2768
    %v2808 = vpack.c.b16 %v2793, %v2792
    %v2809 = vpack.c.b16 %v2795, %v2794
    %v2810 = vpack.c.b16 %v2797, %v2796
    %v2811 = vpack.c.b16 %v2799, %v2798
    %v2812 = vpack.c.b16 %v2801, %v2800
    %v2813 = vpack.c.b16 %v2803, %v2802
    %v2814 = vpack.c.b16 %v2805, %v2804
    %v2815 = vpack.c.b16 %v2807, %v2806
    %2824 = vmatprep.subr.bf16.mxu0 0
    %2825 = vmatpush1.bf16.msra.mxu0 %v2808
    %2826 = vmatprep.subr.bf16.mxu0 0
    %2827 = vmatpush1.bf16.msra.mxu0 %v2809
    %2828 = vmatprep.subr.bf16.mxu0 0
    %2829 = vmatpush1.bf16.msra.mxu0 %v2810
    %2830 = vmatprep.subr.bf16.mxu0 0
    %2831 = vmatpush1.bf16.msra.mxu0 %v2811
    %2832 = vmatprep.subr.bf16.mxu0 0
    %2833 = vmatpush1.bf16.msra.mxu0 %v2812
    %2834 = vmatprep.subr.bf16.mxu0 0
    %2835 = vmatpush1.bf16.msra.mxu0 %v2813
    %2836 = vmatprep.subr.bf16.mxu0 0
    %2837 = vmatpush1.bf16.msra.mxu0 %v2814
    %2838 = vmatprep.subr.bf16.mxu0 0
    %2839 = vmatpush1.bf16.msra.mxu0 %v2815
    %2840 = vmatprep.subr.bf16.mxu0 0
    %2841 = vmatpush1.bf16.msra.mxu0 0
    %2842 = vmatprep.subr.bf16.mxu0 0
    %2843 = vmatpush1.bf16.msra.mxu0 0
    %2844 = vmatprep.subr.bf16.mxu0 0
    %2845 = vmatpush1.bf16.msra.mxu0 0
    %2846 = vmatprep.subr.bf16.mxu0 0
    %2847 = vmatpush1.bf16.msra.mxu0 0
    %2848 = vmatprep.subr.bf16.mxu0 0
    %2849 = vmatpush1.bf16.msra.mxu0 0
    %2850 = vmatprep.subr.bf16.mxu0 0
    %2851 = vmatpush1.bf16.msra.mxu0 0
    %2852 = vmatprep.subr.bf16.mxu0 0
    %2853 = vmatpush1.bf16.msra.mxu0 0
    %2854 = vmatprep.subr.bf16.mxu0 0
    %2855 = vmatpush1.bf16.msra.mxu0 0
    %2856 = vmatprep.mubr.bf16.mxu0 0
    %2857 = vmatmul.mubr.bf16.gmra.mrb[0].mxu0 %v2752
    %v2858 = vpop.f32.mrb[0].mxu0
    %v2859 = vadd.f32 %v2774, %v2858
    %v2860 = vpop.f32.mrb[0].mxu0
    %v2861 = vpop.f32.mrb[0].mxu0
    %v2862 = vpop.f32.mrb[0].mxu0
    %2863 = vdwg.mxu0
    %v2864 = vmax.f32 %v2859, 0.0
    %v2865 = vpack.c.bf16 %v2864, %v2864
    %v2866 = vld [vmem:[%s7] sm:$0xf]
    %v2867 = vld [vmem:[%s7 + $0x4] sm:$0xf]
    %v2868 = vld [vmem:[%s7 + $0x8] sm:$0xf]
    %v2869 = vld [vmem:[%s7 + $0xc] sm:$0xf]
    %v2870 = vld [vmem:[%s7 + $0x10] sm:$0xf]
    %v2871 = vld [vmem:[%s7 + $0x14] sm:$0xf]
    %v2872 = vld [vmem:[%s7 + $0x18] sm:$0xf]
    %v2873 = vld [vmem:[%s7 + $0x1c] sm:$0xf]
    %v2874 = vld [vmem:[%s7 + $0x20] sm:$0xf]
    %v2875 = vld [vmem:[%s7 + $0x24] sm:$0xf]
    %v2876 = vld [vmem:[%s7 + $0x28] sm:$0xf]
    %v2877 = vld [vmem:[%s7 + $0x2c] sm:$0xf]
    %v2878 = vld [vmem:[%s7 + $0x30] sm:$0xf]
    %v2879 = vld [vmem:[%s7 + $0x34] sm:$0xf]
    %v2880 = vld [vmem:[%s7 + $0x38] sm:$0xf]
    %v2881 = vld [vmem:[%s7 + $0x3c] sm:$0xf]
    %v2882 = vld [vmem:[%s8] sm:$0x1]
    %v2884 = vlaneseq
    %v2885 = vshrl.u32 %v2884, 7
    %v2886 = vsub.s32 0, %v2885
    %v2887 = vrot.slane %v2882, %v2886
    %v2905 = vunpack.c.l.b16 %v2866
    %v2906 = vunpack.c.l.b16 %v2867
    %v2907 = vunpack.c.l.b16 %v2868
    %v2908 = vunpack.c.l.b16 %v2869
    %v2909 = vunpack.c.l.b16 %v2870
    %v2910 = vunpack.c.l.b16 %v2871
    %v2911 = vunpack.c.l.b16 %v2872
    %v2912 = vunpack.c.l.b16 %v2873
    %v2913 = vunpack.c.l.b16 %v2874
    %v2914 = vunpack.c.l.b16 %v2875
    %v2915 = vunpack.c.l.b16 %v2876
    %v2916 = vunpack.c.l.b16 %v2877
    %v2917 = vunpack.c.l.b16 %v2878
    %v2918 = vunpack.c.l.b16 %v2879
    %v2919 = vunpack.c.l.b16 %v2880
    %v2920 = vunpack.c.l.b16 %v2881
    %v2921 = vpack.c.b16 %v2906, %v2905
    %v2922 = vpack.c.b16 %v2908, %v2907
    %v2923 = vpack.c.b16 %v2910, %v2909
    %v2924 = vpack.c.b16 %v2912, %v2911
    %v2925 = vpack.c.b16 %v2914, %v2913
    %v2926 = vpack.c.b16 %v2916, %v2915
    %v2927 = vpack.c.b16 %v2918, %v2917
    %v2928 = vpack.c.b16 %v2920, %v2919
    %2937 = vmatprep.subr.bf16.mxu0 0
    %2938 = vmatpush1.bf16.msra.mxu0 %v2921
    %2939 = vmatprep.subr.bf16.mxu0 0
    %2940 = vmatpush1.bf16.msra.mxu0 %v2922
    %2941 = vmatprep.subr.bf16.mxu0 0
    %2942 = vmatpush1.bf16.msra.mxu0 %v2923
    %2943 = vmatprep.subr.bf16.mxu0 0
    %2944 = vmatpush1.bf16.msra.mxu0 %v2924
    %2945 = vmatprep.subr.bf16.mxu0 0
    %2946 = vmatpush1.bf16.msra.mxu0 %v2925
    %2947 = vmatprep.subr.bf16.mxu0 0
    %2948 = vmatpush1.bf16.msra.mxu0 %v2926
    %2949 = vmatprep.subr.bf16.mxu0 0
    %2950 = vmatpush1.bf16.msra.mxu0 %v2927
    %2951 = vmatprep.subr.bf16.mxu0 0
    %2952 = vmatpush1.bf16.msra.mxu0 %v2928
    %2953 = vmatprep.subr.bf16.mxu0 0
    %2954 = vmatpush1.bf16.msra.mxu0 0
    %2955 = vmatprep.subr.bf16.mxu0 0
    %2956 = vmatpush1.bf16.msra.mxu0 0
    %2957 = vmatprep.subr.bf16.mxu0 0
    %2958 = vmatpush1.bf16.msra.mxu0 0
    %2959 = vmatprep.subr.bf16.mxu0 0
    %2960 = vmatpush1.bf16.msra.mxu0 0
    %2961 = vmatprep.subr.bf16.mxu0 0
    %2962 = vmatpush1.bf16.msra.mxu0 0
    %2963 = vmatprep.subr.bf16.mxu0 0
    %2964 = vmatpush1.bf16.msra.mxu0 0
    %2965 = vmatprep.subr.bf16.mxu0 0
    %2966 = vmatpush1.bf16.msra.mxu0 0
    %2967 = vmatprep.subr.bf16.mxu0 0
    %2968 = vmatpush1.bf16.msra.mxu0 0
    %2969 = vmatprep.mubr.bf16.mxu0 0
    %2970 = vmatmul.mubr.bf16.gmra.mrb[0].mxu0 %v2865
    %v2971 = vpop.f32.mrb[0].mxu0
    %v2972 = vadd.f32 %v2887, %v2971
    %v2973 = vpop.f32.mrb[0].mxu0
    %v2974 = vpop.f32.mrb[0].mxu0
    %v2975 = vpop.f32.mrb[0].mxu0
    %2976 = vdwg.mxu0
    %vm2977 = vcmask 74752
    %2978 = vst.msk [vmem:[#allocation2] sm:$0x3] %vm2977, %v2972
    // Predicated region
    $region38: #{lenet5_forward.3} parent=1 // pred_check
      _
    $region39: #{lenet5_forward.3} parent=1 // pred_check_branch
      %2980 = sbr.rel (0) target = $region41
    $region40: #{lenet5_forward.3} parent=1 // pred_region
      %s2982 = ssub.s32 32, 32
      %2983 = vsyncadd [#allocation3], %s2982
      %s2985 = sshll.u32 [#allocation2], 4
      %s2986 = int_to_ptr.vmem [resolvable:$true] %s2985
      %2988 = dma.vmem_to_hbm [thread:$0]  %s2986, 32, %s9, [#allocation3]
    $region41: #{lenet5_forward.3} parent=1 // pred_fallthru
      _
    // Predicated region
    $region42: #{lenet5_forward.3} parent=1 // pred_check
      _
    $region43: #{lenet5_forward.3} parent=1 // pred_check_branch
      %2990 = sbr.rel (0) target = $region45
    $region44: #{lenet5_forward.3} parent=1 // pred_region
      %2991 = dma.done [#allocation3], 32
    $region45: #{lenet5_forward.3} parent=1 // pred_fallthru
      _
    %2992 = vsyncpa [#allocation3], 1

</llo_original>
